<compile_context>
chip_gen: v6e
topology: v6e:2x2x1
jax: 0.10.0
libtpu: 0.0.40
codegen_flags: <defaults>
</compile_context>

<pallas_src>
import functools
import random

import jax
import jax.numpy as jnp
from jax import lax
from jax.experimental import pallas as pl
from jax.experimental.pallas import tpu as pltpu


# ----------------------------------------------------------------------------
# Encoder kernel: grid=(2,) over direction; time loop fully in-kernel.
# ----------------------------------------------------------------------------
def encoder_kernel(gx_ref, whh_ref, states_ref, hfin_ref, cfin_ref, *, S, H):
    d = pl.program_id(0)                       # 0 = forward, 1 = backward
    whh = whh_ref[...]                         # (H, 4H), resident
    Np = hfin_ref.shape[0]

    def step(t, carry):
        h, c = carry
        tt = jnp.where(d == 0, t, S - 1 - t)   # original time index
        gates = gx_ref[tt] + jnp.dot(h, whh, preferred_element_type=jnp.float32)
        i_g = jax.nn.sigmoid(gates[:, 0 * H:1 * H])
        f_g = jax.nn.sigmoid(gates[:, 1 * H:2 * H])
        g_g = jnp.tanh(gates[:, 2 * H:3 * H])
        o_g = jax.nn.sigmoid(gates[:, 3 * H:4 * H])
        c_new = f_g * c + i_g * g_g
        h_new = o_g * jnp.tanh(c_new)
        states_ref[tt] = h_new                 # written in original time order
        return h_new, c_new

    init = (jnp.zeros((Np, H), jnp.float32), jnp.zeros((Np, H), jnp.float32))
    h_fin, c_fin = lax.fori_loop(0, S, step, init, unroll=True)
    hfin_ref[...] = h_fin                      # stored once (last step only)
    cfin_ref[...] = c_fin


def run_encoder(gates_x, whh, H):
    # gates_x: (2, S, Np, 4H) precomputed x@Wih + b ; whh: (2, H, 4H)
    _, S, Np, G = gates_x.shape
    kernel = functools.partial(encoder_kernel, S=S, H=H)
    return pl.pallas_call(
        kernel,
        grid=(2,),
        in_specs=[
            pl.BlockSpec((None, S, Np, G), lambda d: (d, 0, 0, 0)),
            pl.BlockSpec((None, H, G), lambda d: (d, 0, 0)),
        ],
        out_specs=(
            pl.BlockSpec((None, S, Np, H), lambda d: (d, 0, 0, 0)),
            pl.BlockSpec((None, Np, H), lambda d: (d, 0, 0)),
            pl.BlockSpec((None, Np, H), lambda d: (d, 0, 0)),
        ),
        out_shape=(
            jax.ShapeDtypeStruct((2, S, Np, H), jnp.float32),
            jax.ShapeDtypeStruct((2, Np, H), jnp.float32),
            jax.ShapeDtypeStruct((2, Np, H), jnp.float32),
        ),
        compiler_params=pltpu.CompilerParams(
            dimension_semantics=("parallel",)),
    )(gates_x, whh)


# ----------------------------------------------------------------------------
# Decoder kernel: grid=(1,), whole T-1 decode loop in-kernel.
# ----------------------------------------------------------------------------
def decoder_kernel(tf_ref, tgt_ref, ee_ref, encw_ref, h0_ref, c0_ref,
                   embw_ref, whh_ref, b_ref, wh_ref, fcow_ref, fcob_ref,
                   out_ref, *, H, T):
    Np, S = ee_ref.shape
    Vp = embw_ref.shape[0]

    # step-invariant operands, loaded once
    ee = ee_ref[...]          # (Np, S)     enc-side energy term (+bias folded)
    encw = encw_ref[...]      # (Np, S, 4H) encoder states pre-projected to gates
    whh = whh_ref[...]        # (H, 4H)
    b = b_ref[...]            # (1, 4H)
    wh = wh_ref[...]          # (1, H)
    embw = embw_ref[...]      # (Vp, 4H)    embedding fused with its gate proj
    fcow = fcow_ref[...]      # (H, Vp)
    fcob = fcob_ref[...]      # (1, Vp)     padded cols pre-biased to -1e30
    col = lax.broadcasted_iota(jnp.int32, (Np, Vp), 1)   # hoisted out of loop

    def step(i, carry):
        h, c, x = carry                                   # (Np,H),(Np,H),(Np,1)

        # --- additive attention, lane-major (Np, S) ---
        eh = jnp.sum(h * wh, axis=-1, keepdims=True)      # (Np, 1)
        energy = jnp.maximum(ee + eh, 0.0)                # relu
        m = jnp.max(energy, axis=-1, keepdims=True)
        e = jnp.exp(energy - m)
        attn = e / jnp.sum(e, axis=-1, keepdims=True)     # exact division
        # context already in gate space -> no concat, no per-step ctx @ W matmul
        ctx_g = jnp.sum(attn[:, :, None] * encw, axis=1)  # (Np, 4H)

        # --- LSTM cell: accumulated matmuls instead of [ctx|emb|h] concat ---
        onehot = (col == x).astype(jnp.float32)           # (Np, Vp)
        gates = (ctx_g
                 + jnp.dot(onehot, embw, preferred_element_type=jnp.float32)
                 + jnp.dot(h, whh, preferred_element_type=jnp.float32)
                 + b)
        i_g = jax.nn.sigmoid(gates[:, 0 * H:1 * H])
        f_g = jax.nn.sigmoid(gates[:, 1 * H:2 * H])
        g_g = jnp.tanh(gates[:, 2 * H:3 * H])
        o_g = jax.nn.sigmoid(gates[:, 3 * H:4 * H])
        c_new = f_g * c + i_g * g_g
        h_new = o_g * jnp.tanh(c_new)

        # --- lane-dense vocab projection (pad mask baked into fcob) ---
        logits = jnp.dot(h_new, fcow, preferred_element_type=jnp.float32) + fcob
        out_ref[i] = logits                               # (Np, Vp) store

        # greedy argmax over lanes
        mx = jnp.max(logits, axis=-1, keepdims=True)
        cand = jnp.where(logits >= mx, col, Vp)
        best = jnp.min(cand, axis=-1, keepdims=True)      # (Np, 1) int32

        # teacher-forcing select for the next input token
        tf = tf_ref[i]                                    # SMEM scalar
        x_next = jnp.where(tf != 0, tgt_ref[i + 1], best)
        return h_new, c_new, x_next

    x0 = tgt_ref[0]                                       # x = target[0]
    lax.fori_loop(0, T - 1, step, (h0_ref[...], c0_ref[...], x0), unroll=True)


def run_decoder(tf_flags, tgt3, ee_ns, encw, h0, c0, embw, whh, dec_b, wh,
                fcow, fcob, *, H, T):
    Np, S = ee_ns.shape
    Vp = embw.shape[0]
    kernel = functools.partial(decoder_kernel, H=H, T=T)

    def vmem_full(shape):
        zeros = (0,) * len(shape)
        return pl.BlockSpec(shape, lambda i: zeros)

    return pl.pallas_call(
        kernel,
        grid=(1,),
        in_specs=[
            pl.BlockSpec(memory_space=pltpu.MemorySpace.SMEM),  # tf flags
            vmem_full((T, Np, 1)),          # targets
            vmem_full((Np, S)),             # enc-side energy (+bias)
            vmem_full((Np, S, 4 * H)),      # enc states in gate space
            vmem_full((Np, H)),             # h0
            vmem_full((Np, H)),             # c0
            vmem_full((Vp, 4 * H)),         # fused embedding->gate table
            vmem_full((H, 4 * H)),          # decoder Whh
            vmem_full((1, 4 * H)),          # decoder bias
            vmem_full((1, H)),              # energy wh
            vmem_full((H, Vp)),             # fc_out W (vocab lane-padded)
            vmem_full((1, Vp)),             # fc_out b (pad cols = -1e30)
        ],
        out_specs=vmem_full((T - 1, Np, Vp)),
        out_shape=jax.ShapeDtypeStruct((T - 1, Np, Vp), jnp.float32),
        compiler_params=pltpu.CompilerParams(
            dimension_semantics=("arbitrary",)),
    )(tf_flags, tgt3, ee_ns, encw, h0, c0, embw, whh, dec_b, wh, fcow, fcob)


# ----------------------------------------------------------------------------
# Forward pass: recurrences in the two fused kernels, one-time packing /
# step-invariant precompute in plain JAX.
# ----------------------------------------------------------------------------
@jax.jit
def seq2seq_forward(params, source, target, teacher_flags):
    S, N = source.shape
    T = target.shape[0]
    H = params['enc_whh_f'].shape[0]
    V = params['fc_out_w'].shape[1]
    Np = max(8, ((N + 7) // 8) * 8)          # pad batch to f32 sublane width
    Vp = max(128, ((V + 127) // 128) * 128)  # pad vocab to lane width

    # pad batch (padded rows use token 0; results sliced away at the end)
    src_p = jnp.zeros((S, Np), jnp.int32).at[:, :N].set(source)
    tgt_p = jnp.zeros((T, Np), jnp.int32).at[:, :N].set(target)

    # ---- encoder: hoist x@Wih (+bias) out of the recurrence -----------------
    # TODO(synk): nn.Dropout on embeddings treated as identity (eval mode).
    emb_src = params['enc_emb'][src_p]                                # (S,Np,E)
    gx_f = jnp.einsum('sne,eg->sng', emb_src, params['enc_wih_f']) + params['enc_b_f']
    gx_b = jnp.einsum('sne,eg->sng', emb_src, params['enc_wih_b']) + params['enc_b_b']
    gates_x = jnp.stack([gx_f, gx_b], axis=0)                         # (2,S,Np,4H)
    whh_enc = jnp.stack([params['enc_whh_f'], params['enc_whh_b']], axis=0)

    states, hfin, cfin = run_encoder(gates_x, whh_enc, H)
    enc_f, enc_b = states[0], states[1]                               # (S,Np,H)

    # ---- step-invariant decoder precompute (hoisted out of the decode loop) -
    wih = params['dec_wih']                                           # (2H+E,4H)
    w_ctx_f, w_ctx_b, w_emb = wih[:H], wih[H:2 * H], wih[2 * H:]
    # encoder states projected straight into LSTM-gate space (no lane concat)
    encw = (jnp.einsum('snh,hg->nsg', enc_f, w_ctx_f)
            + jnp.einsum('snh,hg->nsg', enc_b, w_ctx_b))              # (Np,S,4H)
    # Bahdanau precompute: enc-side energy term, bias folded in, lane-major
    we = params['energy_we'][0]
    ee_ns = (jnp.einsum('snh,h->ns', enc_f, we[:H])
             + jnp.einsum('snh,h->ns', enc_b, we[H:])
             + params['energy_b'][0, 0])                              # (Np,S)
    # fc_hidden / fc_cell init from final encoder states (split weights, no concat)
    h0 = (hfin[0] @ params['fc_hidden_w'][:H]
          + hfin[1] @ params['fc_hidden_w'][H:] + params['fc_hidden_b'])
    c0 = (cfin[0] @ params['fc_cell_w'][:H]
          + cfin[1] @ params['fc_cell_w'][H:] + params['fc_cell_b'])
    # fused embedding -> gate table, vocab lane-padded
    embw = jnp.zeros((Vp, 4 * H), jnp.float32).at[:V].set(params['dec_emb'] @ w_emb)
    # vocab projection; padded-column bias = -1e30 masks the in-kernel argmax
    fcow = jnp.zeros((H, Vp), jnp.float32).at[:, :V].set(params['fc_out_w'])
    fcob = jnp.full((1, Vp), -1e30, jnp.float32).at[:, :V].set(params['fc_out_b'])

    tgt3 = tgt_p[:, :, None]                                          # (T,Np,1)
    dec_out = run_decoder(teacher_flags, tgt3, ee_ns, encw, h0, c0, embw,
                          params['dec_whh'], params['dec_b'],
                          params['energy_wh'], fcow, fcob, H=H, T=T)

    # outputs[0] stays zeros, like the PyTorch module
    outputs = jnp.concatenate(
        [jnp.zeros((1, N, V), jnp.float32), dec_out[:, :N, :V]], axis=0)
    return outputs                                                    # (T,N,V)


# ----------------------------------------------------------------------------
# Deterministic parameter init (shapes follow the PyTorch Encoder/Decoder)
# ----------------------------------------------------------------------------
def init_params(key, src_vocab, tgt_vocab, E, H):
    ks = jax.random.split(key, 20)

    def rn(k, shape, scale=0.1):
        return jax.random.normal(k, shape, jnp.float32) * scale

    return dict(
        # Encoder: Embedding(src_vocab, E), bidirectional LSTM(E -> H)
        enc_emb=rn(ks[0], (src_vocab, E)),
        enc_wih_f=rn(ks[1], (E, 4 * H)), enc_whh_f=rn(ks[2], (H, 4 * H)),
        enc_b_f=rn(ks[3], (1, 4 * H)),
        enc_wih_b=rn(ks[4], (E, 4 * H)), enc_whh_b=rn(ks[5], (H, 4 * H)),
        enc_b_b=rn(ks[6], (1, 4 * H)),
        # fc_hidden / fc_cell : Linear(2H -> H)
        fc_hidden_w=rn(ks[7], (2 * H, H)), fc_hidden_b=rn(ks[8], (1, H)),
        fc_cell_w=rn(ks[9], (2 * H, H)), fc_cell_b=rn(ks[10], (1, H)),
        # Decoder: Embedding(tgt_vocab, E), energy Linear(3H -> 1) split as
        # [wh | we] + b, LSTM(2H+E -> H), fc Linear(H -> tgt_vocab)
        dec_emb=rn(ks[11], (tgt_vocab, E)),
        energy_wh=rn(ks[12], (1, H)),
        energy_we=rn(ks[13], (1, 2 * H)),
        energy_b=rn(ks[14], (1, 1)),
        dec_wih=rn(ks[15], (2 * H + E, 4 * H)), dec_whh=rn(ks[16], (H, 4 * H)),
        dec_b=rn(ks[17], (1, 4 * H)),
        fc_out_w=rn(ks[18], (H, tgt_vocab)), fc_out_b=rn(ks[19], (1, tgt_vocab)),
    )


# ----------------------------------------------------------------------------
if __name__ == "__main__":
    SRC_VOCAB = 30
    TGT_VOCAB = 30
    EMB = 16
    HID = 32
    SRC_LEN = 8
    TGT_LEN = 6
    BATCH = 2

    key = jax.random.PRNGKey(0)
    kp, ks, kt = jax.random.split(key, 3)

    params = init_params(kp, SRC_VOCAB, TGT_VOCAB, EMB, HID)
    source = jax.random.randint(ks, (SRC_LEN, BATCH), 0, SRC_VOCAB, jnp.int32)
    target = jax.random.randint(kt, (TGT_LEN, BATCH), 0, TGT_VOCAB, jnp.int32)

    # Per-step teacher-forcing decisions (mirroring random.random() < 0.5),
    # passed as int32 data into SMEM (no retraces per random pattern).
    random.seed(0)
    teacher_flags = jnp.asarray(
        [1 if random.random() < 0.5 else 0 for _ in range(TGT_LEN - 1)],
        dtype=jnp.int32)

    outputs = seq2seq_forward(params, source, target, teacher_flags)
    outputs = jax.block_until_ready(outputs)

    assert outputs.shape == (TGT_LEN, BATCH, TGT_VOCAB)
    assert bool(jnp.all(outputs[0] == 0.0))
    assert bool(jnp.all(jnp.isfinite(outputs)))
    print("KERNEL_OK")
</pallas_src>

<mosaic_0001>
module attributes {stable_mosaic.version = 11 : i64} {
  func.func @encoder_kernel(%arg0: i32, %arg1: memref<1x8x8x128xf32, #tpu.memory_space<vmem>>, %arg2: memref<1x32x128xf32, #tpu.memory_space<vmem>>, %arg3: memref<1x8x8x32xf32, #tpu.memory_space<vmem>>, %arg4: memref<1x8x32xf32, #tpu.memory_space<vmem>>, %arg5: memref<1x8x32xf32, #tpu.memory_space<vmem>>) attributes {dimension_semantics = [#tpu.dimension_semantics<parallel>], iteration_bounds = array<i64: 2>, scalar_prefetch = 0 : i64, scratch_operands = 0 : i64, tpu.core_type = #tpu.core_type<tc>, window_params = [{transform_indices = @transform_0, window_bounds = array<i64: 1, 8, 8, 128>}, {transform_indices = @transform_1, window_bounds = array<i64: 1, 32, 128>}, {transform_indices = @transform_2, window_bounds = array<i64: 1, 8, 8, 32>}, {transform_indices = @transform_3, window_bounds = array<i64: 1, 8, 32>}, {transform_indices = @transform_4, window_bounds = array<i64: 1, 8, 32>}]} {
    %c0 = arith.constant 0 : index
    %c0_0 = arith.constant 0 : index
    %c0_1 = arith.constant 0 : index
    %0 = vector.load %arg2[%c0, %c0_0, %c0_1] : memref<1x32x128xf32, #tpu.memory_space<vmem>>, vector<1x32x128xf32>
    %1 = vector.shape_cast %0 : vector<1x32x128xf32> to vector<32x128xf32>
    %cst = arith.constant 0.000000e+00 : f32
    %2 = vector.broadcast %cst : f32 to vector<8x32xf32>
    %cst_2 = arith.constant 0.000000e+00 : f32
    %3 = vector.broadcast %cst_2 : f32 to vector<8x32xf32>
    %c0_i32 = arith.constant 0 : i32
    %c0_i32_3 = arith.constant 0 : i32
    %4 = arith.cmpi eq, %arg0, %c0_i32_3 : i32
    %c7_i32 = arith.constant 7 : i32
    %5 = arith.subi %c7_i32, %c0_i32 : i32
    %6 = arith.select %4, %c0_i32, %5 : i32
    %c0_4 = arith.constant 0 : index
    %7 = arith.index_cast %6 : i32 to index
    %c0_5 = arith.constant 0 : index
    %c0_6 = arith.constant 0 : index
    %8 = vector.load %arg1[%c0_4, %7, %c0_5, %c0_6] : memref<1x8x8x128xf32, #tpu.memory_space<vmem>>, vector<1x1x8x128xf32>
    %9 = vector.shape_cast %8 : vector<1x1x8x128xf32> to vector<8x128xf32>
    %cst_7 = arith.constant dense<0.000000e+00> : vector<8x128xf32>
    %10 = tpu.matmul %2, %1, %cst_7 {dimension_numbers = #tpu.dot_dimension_numbers<[1], [0], [0], [1], [0, 0, 1, 1], [], []>} : vector<8x32xf32>, vector<32x128xf32>, vector<8x128xf32> -> vector<8x128xf32>
    %11 = arith.addf %9, %10 : vector<8x128xf32>
    %12 = vector.extract_strided_slice %11 {offsets = [0, 0], sizes = [8, 32], strides = [1, 1]} : vector<8x128xf32> to vector<8x32xf32>
    %13 = arith.negf %12 : vector<8x32xf32>
    %14 = math.exp %13 : vector<8x32xf32>
    %cst_8 = arith.constant 1.000000e+00 : f32
    %15 = vector.broadcast %cst_8 : f32 to vector<8x32xf32>
    %16 = arith.addf %15, %14 : vector<8x32xf32>
    %17 = arith.divf %15, %16 : vector<8x32xf32>
    %18 = vector.extract_strided_slice %11 {offsets = [0, 32], sizes = [8, 32], strides = [1, 1]} : vector<8x128xf32> to vector<8x32xf32>
    %19 = arith.negf %18 : vector<8x32xf32>
    %20 = math.exp %19 : vector<8x32xf32>
    %cst_9 = arith.constant 1.000000e+00 : f32
    %21 = vector.broadcast %cst_9 : f32 to vector<8x32xf32>
    %22 = arith.addf %21, %20 : vector<8x32xf32>
    %23 = arith.divf %21, %22 : vector<8x32xf32>
    %24 = vector.extract_strided_slice %11 {offsets = [0, 64], sizes = [8, 32], strides = [1, 1]} : vector<8x128xf32> to vector<8x32xf32>
    %25 = math.tanh %24 : vector<8x32xf32>
    %26 = vector.extract_strided_slice %11 {offsets = [0, 96], sizes = [8, 32], strides = [1, 1]} : vector<8x128xf32> to vector<8x32xf32>
    %27 = arith.negf %26 : vector<8x32xf32>
    %28 = math.exp %27 : vector<8x32xf32>
    %cst_10 = arith.constant 1.000000e+00 : f32
    %29 = vector.broadcast %cst_10 : f32 to vector<8x32xf32>
    %30 = arith.addf %29, %28 : vector<8x32xf32>
    %31 = arith.divf %29, %30 : vector<8x32xf32>
    %32 = arith.mulf %23, %3 : vector<8x32xf32>
    %33 = arith.mulf %17, %25 : vector<8x32xf32>
    %34 = arith.addf %32, %33 : vector<8x32xf32>
    %35 = math.tanh %34 : vector<8x32xf32>
    %36 = arith.mulf %31, %35 : vector<8x32xf32>
    %c0_11 = arith.constant 0 : index
    %37 = arith.index_cast %6 : i32 to index
    %c0_12 = arith.constant 0 : index
    %c0_13 = arith.constant 0 : index
    %38 = vector.load %arg3[%c0_11, %37, %c0_12, %c0_13] : memref<1x8x8x32xf32, #tpu.memory_space<vmem>>, vector<1x1x8x32xf32>
    %39 = vector.shape_cast %38 : vector<1x1x8x32xf32> to vector<8x32xf32>
    %40 = vector.shape_cast %36 : vector<8x32xf32> to vector<1x1x8x32xf32>
    tpu.vector_store %arg3[%c0_11, %37, %c0_12, %c0_13], %40 {strides = array<i32>} : memref<1x8x8x32xf32, #tpu.memory_space<vmem>>, vector<1x1x8x32xf32>,
    %c1_i32 = arith.constant 1 : i32
    %c0_i32_14 = arith.constant 0 : i32
    %41 = arith.cmpi eq, %arg0, %c0_i32_14 : i32
    %c7_i32_15 = arith.constant 7 : i32
    %42 = arith.subi %c7_i32_15, %c1_i32 : i32
    %43 = arith.select %41, %c1_i32, %42 : i32
    %c0_16 = arith.constant 0 : index
    %44 = arith.index_cast %43 : i32 to index
    %c0_17 = arith.constant 0 : index
    %c0_18 = arith.constant 0 : index
    %45 = vector.load %arg1[%c0_16, %44, %c0_17, %c0_18] : memref<1x8x8x128xf32, #tpu.memory_space<vmem>>, vector<1x1x8x128xf32>
    %46 = vector.shape_cast %45 : vector<1x1x8x128xf32> to vector<8x128xf32>
    %cst_19 = arith.constant dense<0.000000e+00> : vector<8x128xf32>
    %47 = tpu.matmul %36, %1, %cst_19 {dimension_numbers = #tpu.dot_dimension_numbers<[1], [0], [0], [1], [0, 0, 1, 1], [], []>} : vector<8x32xf32>, vector<32x128xf32>, vector<8x128xf32> -> vector<8x128xf32>
    %48 = arith.addf %46, %47 : vector<8x128xf32>
    %49 = vector.extract_strided_slice %48 {offsets = [0, 0], sizes = [8, 32], strides = [1, 1]} : vector<8x128xf32> to vector<8x32xf32>
    %50 = arith.negf %49 : vector<8x32xf32>
    %51 = math.exp %50 : vector<8x32xf32>
    %cst_20 = arith.constant 1.000000e+00 : f32
    %52 = vector.broadcast %cst_20 : f32 to vector<8x32xf32>
    %53 = arith.addf %52, %51 : vector<8x32xf32>
    %54 = arith.divf %52, %53 : vector<8x32xf32>
    %55 = vector.extract_strided_slice %48 {offsets = [0, 32], sizes = [8, 32], strides = [1, 1]} : vector<8x128xf32> to vector<8x32xf32>
    %56 = arith.negf %55 : vector<8x32xf32>
    %57 = math.exp %56 : vector<8x32xf32>
    %cst_21 = arith.constant 1.000000e+00 : f32
    %58 = vector.broadcast %cst_21 : f32 to vector<8x32xf32>
    %59 = arith.addf %58, %57 : vector<8x32xf32>
    %60 = arith.divf %58, %59 : vector<8x32xf32>
    %61 = vector.extract_strided_slice %48 {offsets = [0, 64], sizes = [8, 32], strides = [1, 1]} : vector<8x128xf32> to vector<8x32xf32>
    %62 = math.tanh %61 : vector<8x32xf32>
    %63 = vector.extract_strided_slice %48 {offsets = [0, 96], sizes = [8, 32], strides = [1, 1]} : vector<8x128xf32> to vector<8x32xf32>
    %64 = arith.negf %63 : vector<8x32xf32>
    %65 = math.exp %64 : vector<8x32xf32>
    %cst_22 = arith.constant 1.000000e+00 : f32
    %66 = vector.broadcast %cst_22 : f32 to vector<8x32xf32>
    %67 = arith.addf %66, %65 : vector<8x32xf32>
    %68 = arith.divf %66, %67 : vector<8x32xf32>
    %69 = arith.mulf %60, %34 : vector<8x32xf32>
    %70 = arith.mulf %54, %62 : vector<8x32xf32>
    %71 = arith.addf %69, %70 : vector<8x32xf32>
    %72 = math.tanh %71 : vector<8x32xf32>
    %73 = arith.mulf %68, %72 : vector<8x32xf32>
    %c0_23 = arith.constant 0 : index
    %74 = arith.index_cast %43 : i32 to index
    %c0_24 = arith.constant 0 : index
    %c0_25 = arith.constant 0 : index
    %75 = vector.load %arg3[%c0_23, %74, %c0_24, %c0_25] : memref<1x8x8x32xf32, #tpu.memory_space<vmem>>, vector<1x1x8x32xf32>
    %76 = vector.shape_cast %75 : vector<1x1x8x32xf32> to vector<8x32xf32>
    %77 = vector.shape_cast %73 : vector<8x32xf32> to vector<1x1x8x32xf32>
    tpu.vector_store %arg3[%c0_23, %74, %c0_24, %c0_25], %77 {strides = array<i32>} : memref<1x8x8x32xf32, #tpu.memory_space<vmem>>, vector<1x1x8x32xf32>,
    %c2_i32 = arith.constant 2 : i32
    %c0_i32_26 = arith.constant 0 : i32
    %78 = arith.cmpi eq, %arg0, %c0_i32_26 : i32
    %c7_i32_27 = arith.constant 7 : i32
    %79 = arith.subi %c7_i32_27, %c2_i32 : i32
    %80 = arith.select %78, %c2_i32, %79 : i32
    %c0_28 = arith.constant 0 : index
    %81 = arith.index_cast %80 : i32 to index
    %c0_29 = arith.constant 0 : index
    %c0_30 = arith.constant 0 : index
    %82 = vector.load %arg1[%c0_28, %81, %c0_29, %c0_30] : memref<1x8x8x128xf32, #tpu.memory_space<vmem>>, vector<1x1x8x128xf32>
    %83 = vector.shape_cast %82 : vector<1x1x8x128xf32> to vector<8x128xf32>
    %cst_31 = arith.constant dense<0.000000e+00> : vector<8x128xf32>
    %84 = tpu.matmul %73, %1, %cst_31 {dimension_numbers = #tpu.dot_dimension_numbers<[1], [0], [0], [1], [0, 0, 1, 1], [], []>} : vector<8x32xf32>, vector<32x128xf32>, vector<8x128xf32> -> vector<8x128xf32>
    %85 = arith.addf %83, %84 : vector<8x128xf32>
    %86 = vector.extract_strided_slice %85 {offsets = [0, 0], sizes = [8, 32], strides = [1, 1]} : vector<8x128xf32> to vector<8x32xf32>
    %87 = arith.negf %86 : vector<8x32xf32>
    %88 = math.exp %87 : vector<8x32xf32>
    %cst_32 = arith.constant 1.000000e+00 : f32
    %89 = vector.broadcast %cst_32 : f32 to vector<8x32xf32>
    %90 = arith.addf %89, %88 : vector<8x32xf32>
    %91 = arith.divf %89, %90 : vector<8x32xf32>
    %92 = vector.extract_strided_slice %85 {offsets = [0, 32], sizes = [8, 32], strides = [1, 1]} : vector<8x128xf32> to vector<8x32xf32>
    %93 = arith.negf %92 : vector<8x32xf32>
    %94 = math.exp %93 : vector<8x32xf32>
    %cst_33 = arith.constant 1.000000e+00 : f32
    %95 = vector.broadcast %cst_33 : f32 to vector<8x32xf32>
    %96 = arith.addf %95, %94 : vector<8x32xf32>
    %97 = arith.divf %95, %96 : vector<8x32xf32>
    %98 = vector.extract_strided_slice %85 {offsets = [0, 64], sizes = [8, 32], strides = [1, 1]} : vector<8x128xf32> to vector<8x32xf32>
    %99 = math.tanh %98 : vector<8x32xf32>
    %100 = vector.extract_strided_slice %85 {offsets = [0, 96], sizes = [8, 32], strides = [1, 1]} : vector<8x128xf32> to vector<8x32xf32>
    %101 = arith.negf %100 : vector<8x32xf32>
    %102 = math.exp %101 : vector<8x32xf32>
    %cst_34 = arith.constant 1.000000e+00 : f32
    %103 = vector.broadcast %cst_34 : f32 to vector<8x32xf32>
    %104 = arith.addf %103, %102 : vector<8x32xf32>
    %105 = arith.divf %103, %104 : vector<8x32xf32>
    %106 = arith.mulf %97, %71 : vector<8x32xf32>
    %107 = arith.mulf %91, %99 : vector<8x32xf32>
    %108 = arith.addf %106, %107 : vector<8x32xf32>
    %109 = math.tanh %108 : vector<8x32xf32>
    %110 = arith.mulf %105, %109 : vector<8x32xf32>
    %c0_35 = arith.constant 0 : index
    %111 = arith.index_cast %80 : i32 to index
    %c0_36 = arith.constant 0 : index
    %c0_37 = arith.constant 0 : index
    %112 = vector.load %arg3[%c0_35, %111, %c0_36, %c0_37] : memref<1x8x8x32xf32, #tpu.memory_space<vmem>>, vector<1x1x8x32xf32>
    %113 = vector.shape_cast %112 : vector<1x1x8x32xf32> to vector<8x32xf32>
    %114 = vector.shape_cast %110 : vector<8x32xf32> to vector<1x1x8x32xf32>
    tpu.vector_store %arg3[%c0_35, %111, %c0_36, %c0_37], %114 {strides = array<i32>} : memref<1x8x8x32xf32, #tpu.memory_space<vmem>>, vector<1x1x8x32xf32>,
    %c3_i32 = arith.constant 3 : i32
    %c0_i32_38 = arith.constant 0 : i32
    %115 = arith.cmpi eq, %arg0, %c0_i32_38 : i32
    %c7_i32_39 = arith.constant 7 : i32
    %116 = arith.subi %c7_i32_39, %c3_i32 : i32
    %117 = arith.select %115, %c3_i32, %116 : i32
    %c0_40 = arith.constant 0 : index
    %118 = arith.index_cast %117 : i32 to index
    %c0_41 = arith.constant 0 : index
    %c0_42 = arith.constant 0 : index
    %119 = vector.load %arg1[%c0_40, %118, %c0_41, %c0_42] : memref<1x8x8x128xf32, #tpu.memory_space<vmem>>, vector<1x1x8x128xf32>
    %120 = vector.shape_cast %119 : vector<1x1x8x128xf32> to vector<8x128xf32>
    %cst_43 = arith.constant dense<0.000000e+00> : vector<8x128xf32>
    %121 = tpu.matmul %110, %1, %cst_43 {dimension_numbers = #tpu.dot_dimension_numbers<[1], [0], [0], [1], [0, 0, 1, 1], [], []>} : vector<8x32xf32>, vector<32x128xf32>, vector<8x128xf32> -> vector<8x128xf32>
    %122 = arith.addf %120, %121 : vector<8x128xf32>
    %123 = vector.extract_strided_slice %122 {offsets = [0, 0], sizes = [8, 32], strides = [1, 1]} : vector<8x128xf32> to vector<8x32xf32>
    %124 = arith.negf %123 : vector<8x32xf32>
    %125 = math.exp %124 : vector<8x32xf32>
    %cst_44 = arith.constant 1.000000e+00 : f32
    %126 = vector.broadcast %cst_44 : f32 to vector<8x32xf32>
    %127 = arith.addf %126, %125 : vector<8x32xf32>
    %128 = arith.divf %126, %127 : vector<8x32xf32>
    %129 = vector.extract_strided_slice %122 {offsets = [0, 32], sizes = [8, 32], strides = [1, 1]} : vector<8x128xf32> to vector<8x32xf32>
    %130 = arith.negf %129 : vector<8x32xf32>
    %131 = math.exp %130 : vector<8x32xf32>
    %cst_45 = arith.constant 1.000000e+00 : f32
    %132 = vector.broadcast %cst_45 : f32 to vector<8x32xf32>
    %133 = arith.addf %132, %131 : vector<8x32xf32>
    %134 = arith.divf %132, %133 : vector<8x32xf32>
    %135 = vector.extract_strided_slice %122 {offsets = [0, 64], sizes = [8, 32], strides = [1, 1]} : vector<8x128xf32> to vector<8x32xf32>
    %136 = math.tanh %135 : vector<8x32xf32>
    %137 = vector.extract_strided_slice %122 {offsets = [0, 96], sizes = [8, 32], strides = [1, 1]} : vector<8x128xf32> to vector<8x32xf32>
    %138 = arith.negf %137 : vector<8x32xf32>
    %139 = math.exp %138 : vector<8x32xf32>
    %cst_46 = arith.constant 1.000000e+00 : f32
    %140 = vector.broadcast %cst_46 : f32 to vector<8x32xf32>
    %141 = arith.addf %140, %139 : vector<8x32xf32>
    %142 = arith.divf %140, %141 : vector<8x32xf32>
    %143 = arith.mulf %134, %108 : vector<8x32xf32>
    %144 = arith.mulf %128, %136 : vector<8x32xf32>
    %145 = arith.addf %143, %144 : vector<8x32xf32>
    %146 = math.tanh %145 : vector<8x32xf32>
    %147 = arith.mulf %142, %146 : vector<8x32xf32>
    %c0_47 = arith.constant 0 : index
    %148 = arith.index_cast %117 : i32 to index
    %c0_48 = arith.constant 0 : index
    %c0_49 = arith.constant 0 : index
    %149 = vector.load %arg3[%c0_47, %148, %c0_48, %c0_49] : memref<1x8x8x32xf32, #tpu.memory_space<vmem>>, vector<1x1x8x32xf32>
    %150 = vector.shape_cast %149 : vector<1x1x8x32xf32> to vector<8x32xf32>
    %151 = vector.shape_cast %147 : vector<8x32xf32> to vector<1x1x8x32xf32>
    tpu.vector_store %arg3[%c0_47, %148, %c0_48, %c0_49], %151 {strides = array<i32>} : memref<1x8x8x32xf32, #tpu.memory_space<vmem>>, vector<1x1x8x32xf32>,
    %c4_i32 = arith.constant 4 : i32
    %c0_i32_50 = arith.constant 0 : i32
    %152 = arith.cmpi eq, %arg0, %c0_i32_50 : i32
    %c7_i32_51 = arith.constant 7 : i32
    %153 = arith.subi %c7_i32_51, %c4_i32 : i32
    %154 = arith.select %152, %c4_i32, %153 : i32
    %c0_52 = arith.constant 0 : index
    %155 = arith.index_cast %154 : i32 to index
    %c0_53 = arith.constant 0 : index
    %c0_54 = arith.constant 0 : index
    %156 = vector.load %arg1[%c0_52, %155, %c0_53, %c0_54] : memref<1x8x8x128xf32, #tpu.memory_space<vmem>>, vector<1x1x8x128xf32>
    %157 = vector.shape_cast %156 : vector<1x1x8x128xf32> to vector<8x128xf32>
    %cst_55 = arith.constant dense<0.000000e+00> : vector<8x128xf32>
    %158 = tpu.matmul %147, %1, %cst_55 {dimension_numbers = #tpu.dot_dimension_numbers<[1], [0], [0], [1], [0, 0, 1, 1], [], []>} : vector<8x32xf32>, vector<32x128xf32>, vector<8x128xf32> -> vector<8x128xf32>
    %159 = arith.addf %157, %158 : vector<8x128xf32>
    %160 = vector.extract_strided_slice %159 {offsets = [0, 0], sizes = [8, 32], strides = [1, 1]} : vector<8x128xf32> to vector<8x32xf32>
    %161 = arith.negf %160 : vector<8x32xf32>
    %162 = math.exp %161 : vector<8x32xf32>
    %cst_56 = arith.constant 1.000000e+00 : f32
    %163 = vector.broadcast %cst_56 : f32 to vector<8x32xf32>
    %164 = arith.addf %163, %162 : vector<8x32xf32>
    %165 = arith.divf %163, %164 : vector<8x32xf32>
    %166 = vector.extract_strided_slice %159 {offsets = [0, 32], sizes = [8, 32], strides = [1, 1]} : vector<8x128xf32> to vector<8x32xf32>
    %167 = arith.negf %166 : vector<8x32xf32>
    %168 = math.exp %167 : vector<8x32xf32>
    %cst_57 = arith.constant 1.000000e+00 : f32
    %169 = vector.broadcast %cst_57 : f32 to vector<8x32xf32>
    %170 = arith.addf %169, %168 : vector<8x32xf32>
    %171 = arith.divf %169, %170 : vector<8x32xf32>
    %172 = vector.extract_strided_slice %159 {offsets = [0, 64], sizes = [8, 32], strides = [1, 1]} : vector<8x128xf32> to vector<8x32xf32>
    %173 = math.tanh %172 : vector<8x32xf32>
    %174 = vector.extract_strided_slice %159 {offsets = [0, 96], sizes = [8, 32], strides = [1, 1]} : vector<8x128xf32> to vector<8x32xf32>
    %175 = arith.negf %174 : vector<8x32xf32>
    %176 = math.exp %175 : vector<8x32xf32>
    %cst_58 = arith.constant 1.000000e+00 : f32
    %177 = vector.broadcast %cst_58 : f32 to vector<8x32xf32>
    %178 = arith.addf %177, %176 : vector<8x32xf32>
    %179 = arith.divf %177, %178 : vector<8x32xf32>
    %180 = arith.mulf %171, %145 : vector<8x32xf32>
    %181 = arith.mulf %165, %173 : vector<8x32xf32>
    %182 = arith.addf %180, %181 : vector<8x32xf32>
    %183 = math.tanh %182 : vector<8x32xf32>
    %184 = arith.mulf %179, %183 : vector<8x32xf32>
    %c0_59 = arith.constant 0 : index
    %185 = arith.index_cast %154 : i32 to index
    %c0_60 = arith.constant 0 : index
    %c0_61 = arith.constant 0 : index
    %186 = vector.load %arg3[%c0_59, %185, %c0_60, %c0_61] : memref<1x8x8x32xf32, #tpu.memory_space<vmem>>, vector<1x1x8x32xf32>
    %187 = vector.shape_cast %186 : vector<1x1x8x32xf32> to vector<8x32xf32>
    %188 = vector.shape_cast %184 : vector<8x32xf32> to vector<1x1x8x32xf32>
    tpu.vector_store %arg3[%c0_59, %185, %c0_60, %c0_61], %188 {strides = array<i32>} : memref<1x8x8x32xf32, #tpu.memory_space<vmem>>, vector<1x1x8x32xf32>,
    %c5_i32 = arith.constant 5 : i32
    %c0_i32_62 = arith.constant 0 : i32
    %189 = arith.cmpi eq, %arg0, %c0_i32_62 : i32
    %c7_i32_63 = arith.constant 7 : i32
    %190 = arith.subi %c7_i32_63, %c5_i32 : i32
    %191 = arith.select %189, %c5_i32, %190 : i32
    %c0_64 = arith.constant 0 : index
    %192 = arith.index_cast %191 : i32 to index
    %c0_65 = arith.constant 0 : index
    %c0_66 = arith.constant 0 : index
    %193 = vector.load %arg1[%c0_64, %192, %c0_65, %c0_66] : memref<1x8x8x128xf32, #tpu.memory_space<vmem>>, vector<1x1x8x128xf32>
    %194 = vector.shape_cast %193 : vector<1x1x8x128xf32> to vector<8x128xf32>
    %cst_67 = arith.constant dense<0.000000e+00> : vector<8x128xf32>
    %195 = tpu.matmul %184, %1, %cst_67 {dimension_numbers = #tpu.dot_dimension_numbers<[1], [0], [0], [1], [0, 0, 1, 1], [], []>} : vector<8x32xf32>, vector<32x128xf32>, vector<8x128xf32> -> vector<8x128xf32>
    %196 = arith.addf %194, %195 : vector<8x128xf32>
    %197 = vector.extract_strided_slice %196 {offsets = [0, 0], sizes = [8, 32], strides = [1, 1]} : vector<8x128xf32> to vector<8x32xf32>
    %198 = arith.negf %197 : vector<8x32xf32>
    %199 = math.exp %198 : vector<8x32xf32>
    %cst_68 = arith.constant 1.000000e+00 : f32
    %200 = vector.broadcast %cst_68 : f32 to vector<8x32xf32>
    %201 = arith.addf %200, %199 : vector<8x32xf32>
    %202 = arith.divf %200, %201 : vector<8x32xf32>
    %203 = vector.extract_strided_slice %196 {offsets = [0, 32], sizes = [8, 32], strides = [1, 1]} : vector<8x128xf32> to vector<8x32xf32>
    %204 = arith.negf %203 : vector<8x32xf32>
    %205 = math.exp %204 : vector<8x32xf32>
    %cst_69 = arith.constant 1.000000e+00 : f32
    %206 = vector.broadcast %cst_69 : f32 to vector<8x32xf32>
    %207 = arith.addf %206, %205 : vector<8x32xf32>
    %208 = arith.divf %206, %207 : vector<8x32xf32>
    %209 = vector.extract_strided_slice %196 {offsets = [0, 64], sizes = [8, 32], strides = [1, 1]} : vector<8x128xf32> to vector<8x32xf32>
    %210 = math.tanh %209 : vector<8x32xf32>
    %211 = vector.extract_strided_slice %196 {offsets = [0, 96], sizes = [8, 32], strides = [1, 1]} : vector<8x128xf32> to vector<8x32xf32>
    %212 = arith.negf %211 : vector<8x32xf32>
    %213 = math.exp %212 : vector<8x32xf32>
    %cst_70 = arith.constant 1.000000e+00 : f32
    %214 = vector.broadcast %cst_70 : f32 to vector<8x32xf32>
    %215 = arith.addf %214, %213 : vector<8x32xf32>
    %216 = arith.divf %214, %215 : vector<8x32xf32>
    %217 = arith.mulf %208, %182 : vector<8x32xf32>
    %218 = arith.mulf %202, %210 : vector<8x32xf32>
    %219 = arith.addf %217, %218 : vector<8x32xf32>
    %220 = math.tanh %219 : vector<8x32xf32>
    %221 = arith.mulf %216, %220 : vector<8x32xf32>
    %c0_71 = arith.constant 0 : index
    %222 = arith.index_cast %191 : i32 to index
    %c0_72 = arith.constant 0 : index
    %c0_73 = arith.constant 0 : index
    %223 = vector.load %arg3[%c0_71, %222, %c0_72, %c0_73] : memref<1x8x8x32xf32, #tpu.memory_space<vmem>>, vector<1x1x8x32xf32>
    %224 = vector.shape_cast %223 : vector<1x1x8x32xf32> to vector<8x32xf32>
    %225 = vector.shape_cast %221 : vector<8x32xf32> to vector<1x1x8x32xf32>
    tpu.vector_store %arg3[%c0_71, %222, %c0_72, %c0_73], %225 {strides = array<i32>} : memref<1x8x8x32xf32, #tpu.memory_space<vmem>>, vector<1x1x8x32xf32>,
    %c6_i32 = arith.constant 6 : i32
    %c0_i32_74 = arith.constant 0 : i32
    %226 = arith.cmpi eq, %arg0, %c0_i32_74 : i32
    %c7_i32_75 = arith.constant 7 : i32
    %227 = arith.subi %c7_i32_75, %c6_i32 : i32
    %228 = arith.select %226, %c6_i32, %227 : i32
    %c0_76 = arith.constant 0 : index
    %229 = arith.index_cast %228 : i32 to index
    %c0_77 = arith.constant 0 : index
    %c0_78 = arith.constant 0 : index
    %230 = vector.load %arg1[%c0_76, %229, %c0_77, %c0_78] : memref<1x8x8x128xf32, #tpu.memory_space<vmem>>, vector<1x1x8x128xf32>
    %231 = vector.shape_cast %230 : vector<1x1x8x128xf32> to vector<8x128xf32>
    %cst_79 = arith.constant dense<0.000000e+00> : vector<8x128xf32>
    %232 = tpu.matmul %221, %1, %cst_79 {dimension_numbers = #tpu.dot_dimension_numbers<[1], [0], [0], [1], [0, 0, 1, 1], [], []>} : vector<8x32xf32>, vector<32x128xf32>, vector<8x128xf32> -> vector<8x128xf32>
    %233 = arith.addf %231, %232 : vector<8x128xf32>
    %234 = vector.extract_strided_slice %233 {offsets = [0, 0], sizes = [8, 32], strides = [1, 1]} : vector<8x128xf32> to vector<8x32xf32>
    %235 = arith.negf %234 : vector<8x32xf32>
    %236 = math.exp %235 : vector<8x32xf32>
    %cst_80 = arith.constant 1.000000e+00 : f32
    %237 = vector.broadcast %cst_80 : f32 to vector<8x32xf32>
    %238 = arith.addf %237, %236 : vector<8x32xf32>
    %239 = arith.divf %237, %238 : vector<8x32xf32>
    %240 = vector.extract_strided_slice %233 {offsets = [0, 32], sizes = [8, 32], strides = [1, 1]} : vector<8x128xf32> to vector<8x32xf32>
    %241 = arith.negf %240 : vector<8x32xf32>
    %242 = math.exp %241 : vector<8x32xf32>
    %cst_81 = arith.constant 1.000000e+00 : f32
    %243 = vector.broadcast %cst_81 : f32 to vector<8x32xf32>
    %244 = arith.addf %243, %242 : vector<8x32xf32>
    %245 = arith.divf %243, %244 : vector<8x32xf32>
    %246 = vector.extract_strided_slice %233 {offsets = [0, 64], sizes = [8, 32], strides = [1, 1]} : vector<8x128xf32> to vector<8x32xf32>
    %247 = math.tanh %246 : vector<8x32xf32>
    %248 = vector.extract_strided_slice %233 {offsets = [0, 96], sizes = [8, 32], strides = [1, 1]} : vector<8x128xf32> to vector<8x32xf32>
    %249 = arith.negf %248 : vector<8x32xf32>
    %250 = math.exp %249 : vector<8x32xf32>
    %cst_82 = arith.constant 1.000000e+00 : f32
    %251 = vector.broadcast %cst_82 : f32 to vector<8x32xf32>
    %252 = arith.addf %251, %250 : vector<8x32xf32>
    %253 = arith.divf %251, %252 : vector<8x32xf32>
    %254 = arith.mulf %245, %219 : vector<8x32xf32>
    %255 = arith.mulf %239, %247 : vector<8x32xf32>
    %256 = arith.addf %254, %255 : vector<8x32xf32>
    %257 = math.tanh %256 : vector<8x32xf32>
    %258 = arith.mulf %253, %257 : vector<8x32xf32>
    %c0_83 = arith.constant 0 : index
    %259 = arith.index_cast %228 : i32 to index
    %c0_84 = arith.constant 0 : index
    %c0_85 = arith.constant 0 : index
    %260 = vector.load %arg3[%c0_83, %259, %c0_84, %c0_85] : memref<1x8x8x32xf32, #tpu.memory_space<vmem>>, vector<1x1x8x32xf32>
    %261 = vector.shape_cast %260 : vector<1x1x8x32xf32> to vector<8x32xf32>
    %262 = vector.shape_cast %258 : vector<8x32xf32> to vector<1x1x8x32xf32>
    tpu.vector_store %arg3[%c0_83, %259, %c0_84, %c0_85], %262 {strides = array<i32>} : memref<1x8x8x32xf32, #tpu.memory_space<vmem>>, vector<1x1x8x32xf32>,
    %c7_i32_86 = arith.constant 7 : i32
    %c0_i32_87 = arith.constant 0 : i32
    %263 = arith.cmpi eq, %arg0, %c0_i32_87 : i32
    %c7_i32_88 = arith.constant 7 : i32
    %264 = arith.subi %c7_i32_88, %c7_i32_86 : i32
    %265 = arith.select %263, %c7_i32_86, %264 : i32
    %c0_89 = arith.constant 0 : index
    %266 = arith.index_cast %265 : i32 to index
    %c0_90 = arith.constant 0 : index
    %c0_91 = arith.constant 0 : index
    %267 = vector.load %arg1[%c0_89, %266, %c0_90, %c0_91] : memref<1x8x8x128xf32, #tpu.memory_space<vmem>>, vector<1x1x8x128xf32>
    %268 = vector.shape_cast %267 : vector<1x1x8x128xf32> to vector<8x128xf32>
    %cst_92 = arith.constant dense<0.000000e+00> : vector<8x128xf32>
    %269 = tpu.matmul %258, %1, %cst_92 {dimension_numbers = #tpu.dot_dimension_numbers<[1], [0], [0], [1], [0, 0, 1, 1], [], []>} : vector<8x32xf32>, vector<32x128xf32>, vector<8x128xf32> -> vector<8x128xf32>
    %270 = arith.addf %268, %269 : vector<8x128xf32>
    %271 = vector.extract_strided_slice %270 {offsets = [0, 0], sizes = [8, 32], strides = [1, 1]} : vector<8x128xf32> to vector<8x32xf32>
    %272 = arith.negf %271 : vector<8x32xf32>
    %273 = math.exp %272 : vector<8x32xf32>
    %cst_93 = arith.constant 1.000000e+00 : f32
    %274 = vector.broadcast %cst_93 : f32 to vector<8x32xf32>
    %275 = arith.addf %274, %273 : vector<8x32xf32>
    %276 = arith.divf %274, %275 : vector<8x32xf32>
    %277 = vector.extract_strided_slice %270 {offsets = [0, 32], sizes = [8, 32], strides = [1, 1]} : vector<8x128xf32> to vector<8x32xf32>
    %278 = arith.negf %277 : vector<8x32xf32>
    %279 = math.exp %278 : vector<8x32xf32>
    %cst_94 = arith.constant 1.000000e+00 : f32
    %280 = vector.broadcast %cst_94 : f32 to vector<8x32xf32>
    %281 = arith.addf %280, %279 : vector<8x32xf32>
    %282 = arith.divf %280, %281 : vector<8x32xf32>
    %283 = vector.extract_strided_slice %270 {offsets = [0, 64], sizes = [8, 32], strides = [1, 1]} : vector<8x128xf32> to vector<8x32xf32>
    %284 = math.tanh %283 : vector<8x32xf32>
    %285 = vector.extract_strided_slice %270 {offsets = [0, 96], sizes = [8, 32], strides = [1, 1]} : vector<8x128xf32> to vector<8x32xf32>
    %286 = arith.negf %285 : vector<8x32xf32>
    %287 = math.exp %286 : vector<8x32xf32>
    %cst_95 = arith.constant 1.000000e+00 : f32
    %288 = vector.broadcast %cst_95 : f32 to vector<8x32xf32>
    %289 = arith.addf %288, %287 : vector<8x32xf32>
    %290 = arith.divf %288, %289 : vector<8x32xf32>
    %291 = arith.mulf %282, %256 : vector<8x32xf32>
    %292 = arith.mulf %276, %284 : vector<8x32xf32>
    %293 = arith.addf %291, %292 : vector<8x32xf32>
    %294 = math.tanh %293 : vector<8x32xf32>
    %295 = arith.mulf %290, %294 : vector<8x32xf32>
    %c0_96 = arith.constant 0 : index
    %296 = arith.index_cast %265 : i32 to index
    %c0_97 = arith.constant 0 : index
    %c0_98 = arith.constant 0 : index
    %297 = vector.load %arg3[%c0_96, %296, %c0_97, %c0_98] : memref<1x8x8x32xf32, #tpu.memory_space<vmem>>, vector<1x1x8x32xf32>
    %298 = vector.shape_cast %297 : vector<1x1x8x32xf32> to vector<8x32xf32>
    %299 = vector.shape_cast %295 : vector<8x32xf32> to vector<1x1x8x32xf32>
    tpu.vector_store %arg3[%c0_96, %296, %c0_97, %c0_98], %299 {strides = array<i32>} : memref<1x8x8x32xf32, #tpu.memory_space<vmem>>, vector<1x1x8x32xf32>,
    %c8_i32 = arith.constant 8 : i32
    %c0_99 = arith.constant 0 : index
    %c0_100 = arith.constant 0 : index
    %c0_101 = arith.constant 0 : index
    %300 = vector.load %arg4[%c0_99, %c0_100, %c0_101] : memref<1x8x32xf32, #tpu.memory_space<vmem>>, vector<1x8x32xf32>
    %301 = vector.shape_cast %300 : vector<1x8x32xf32> to vector<8x32xf32>
    %302 = vector.shape_cast %295 : vector<8x32xf32> to vector<1x8x32xf32>
    tpu.vector_store %arg4[%c0_99, %c0_100, %c0_101], %302 {strides = array<i32>} : memref<1x8x32xf32, #tpu.memory_space<vmem>>, vector<1x8x32xf32>,
    %c0_102 = arith.constant 0 : index
    %c0_103 = arith.constant 0 : index
    %c0_104 = arith.constant 0 : index
    %303 = vector.load %arg5[%c0_102, %c0_103, %c0_104] : memref<1x8x32xf32, #tpu.memory_space<vmem>>, vector<1x8x32xf32>
    %304 = vector.shape_cast %303 : vector<1x8x32xf32> to vector<8x32xf32>
    %305 = vector.shape_cast %293 : vector<8x32xf32> to vector<1x8x32xf32>
    tpu.vector_store %arg5[%c0_102, %c0_103, %c0_104], %305 {strides = array<i32>} : memref<1x8x32xf32, #tpu.memory_space<vmem>>, vector<1x8x32xf32>,
    return
  }
  func.func @transform_0(%arg0: i32) -> (i32, i32, i32, i32) {
    %c0_i32 = arith.constant 0 : i32
    %c0_i32_0 = arith.constant 0 : i32
    %c0_i32_1 = arith.constant 0 : i32
    %c0_i32_2 = arith.constant 0 : i32
    return %arg0, %c0_i32, %c0_i32_0, %c0_i32_1 : i32, i32, i32, i32
  }
  func.func @transform_1(%arg0: i32) -> (i32, i32, i32) {
    %c0_i32 = arith.constant 0 : i32
    %c0_i32_0 = arith.constant 0 : i32
    %c0_i32_1 = arith.constant 0 : i32
    return %arg0, %c0_i32, %c0_i32_0 : i32, i32, i32
  }
  func.func @transform_2(%arg0: i32) -> (i32, i32, i32, i32) {
    %c0_i32 = arith.constant 0 : i32
    %c0_i32_0 = arith.constant 0 : i32
    %c0_i32_1 = arith.constant 0 : i32
    %c0_i32_2 = arith.constant 0 : i32
    return %arg0, %c0_i32, %c0_i32_0, %c0_i32_1 : i32, i32, i32, i32
  }
  func.func @transform_3(%arg0: i32) -> (i32, i32, i32) {
    %c0_i32 = arith.constant 0 : i32
    %c0_i32_0 = arith.constant 0 : i32
    %c0_i32_1 = arith.constant 0 : i32
    return %arg0, %c0_i32, %c0_i32_0 : i32, i32, i32
  }
  func.func @transform_4(%arg0: i32) -> (i32, i32, i32) {
    %c0_i32 = arith.constant 0 : i32
    %c0_i32_0 = arith.constant 0 : i32
    %c0_i32_1 = arith.constant 0 : i32
    return %arg0, %c0_i32, %c0_i32_0 : i32, i32, i32
  }
}

module attributes {stable_mosaic.version = 11 : i64} {
  func.func @decoder_kernel(%arg0: i32, %arg1: memref<5xi32, #tpu.memory_space<smem>>, %arg2: memref<6x8x1xi32, #tpu.memory_space<vmem>>, %arg3: memref<8x8xf32, #tpu.memory_space<vmem>>, %arg4: memref<8x8x128xf32, #tpu.memory_space<vmem>>, %arg5: memref<8x32xf32, #tpu.memory_space<vmem>>, %arg6: memref<8x32xf32, #tpu.memory_space<vmem>>, %arg7: memref<128x128xf32, #tpu.memory_space<vmem>>, %arg8: memref<32x128xf32, #tpu.memory_space<vmem>>, %arg9: memref<1x128xf32, #tpu.memory_space<vmem>>, %arg10: memref<1x32xf32, #tpu.memory_space<vmem>>, %arg11: memref<32x128xf32, #tpu.memory_space<vmem>>, %arg12: memref<1x128xf32, #tpu.memory_space<vmem>>, %arg13: memref<5x8x128xf32, #tpu.memory_space<vmem>>) attributes {dimension_semantics = [#tpu.dimension_semantics<arbitrary>], iteration_bounds = array<i64: 1>, scalar_prefetch = 0 : i64, scratch_operands = 0 : i64, tpu.core_type = #tpu.core_type<tc>, window_params = [{transform_indices = @transform_0, window_bounds = array<i64: 5>}, {pipeline_mode = #tpu.pipeline_mode<synchronous>, transform_indices = @transform_1, window_bounds = array<i64: 6, 8, 1>}, {pipeline_mode = #tpu.pipeline_mode<synchronous>, transform_indices = @transform_2, window_bounds = array<i64: 8, 8>}, {pipeline_mode = #tpu.pipeline_mode<synchronous>, transform_indices = @transform_3, window_bounds = array<i64: 8, 8, 128>}, {pipeline_mode = #tpu.pipeline_mode<synchronous>, transform_indices = @transform_4, window_bounds = array<i64: 8, 32>}, {pipeline_mode = #tpu.pipeline_mode<synchronous>, transform_indices = @transform_5, window_bounds = array<i64: 8, 32>}, {pipeline_mode = #tpu.pipeline_mode<synchronous>, transform_indices = @transform_6, window_bounds = array<i64: 128, 128>}, {pipeline_mode = #tpu.pipeline_mode<synchronous>, transform_indices = @transform_7, window_bounds = array<i64: 32, 128>}, {pipeline_mode = #tpu.pipeline_mode<synchronous>, transform_indices = @transform_8, window_bounds = array<i64: 1, 128>}, {pipeline_mode = #tpu.pipeline_mode<synchronous>, transform_indices = @transform_9, window_bounds = array<i64: 1, 32>}, {pipeline_mode = #tpu.pipeline_mode<synchronous>, transform_indices = @transform_10, window_bounds = array<i64: 32, 128>}, {pipeline_mode = #tpu.pipeline_mode<synchronous>, transform_indices = @transform_11, window_bounds = array<i64: 1, 128>}, {pipeline_mode = #tpu.pipeline_mode<synchronous>, transform_indices = @transform_12, window_bounds = array<i64: 5, 8, 128>}]} {
    %c0 = arith.constant 0 : index
    %c0_0 = arith.constant 0 : index
    %0 = vector.load %arg3[%c0, %c0_0] : memref<8x8xf32, #tpu.memory_space<vmem>>, vector<8x8xf32>
    %c0_1 = arith.constant 0 : index
    %c0_2 = arith.constant 0 : index
    %c0_3 = arith.constant 0 : index
    %1 = vector.load %arg4[%c0_1, %c0_2, %c0_3] : memref<8x8x128xf32, #tpu.memory_space<vmem>>, vector<8x8x128xf32>
    %c0_4 = arith.constant 0 : index
    %c0_5 = arith.constant 0 : index
    %2 = vector.load %arg8[%c0_4, %c0_5] : memref<32x128xf32, #tpu.memory_space<vmem>>, vector<32x128xf32>
    %c0_6 = arith.constant 0 : index
    %c0_7 = arith.constant 0 : index
    %3 = vector.load %arg9[%c0_6, %c0_7] : memref<1x128xf32, #tpu.memory_space<vmem>>, vector<1x128xf32>
    %c0_8 = arith.constant 0 : index
    %c0_9 = arith.constant 0 : index
    %4 = vector.load %arg10[%c0_8, %c0_9] : memref<1x32xf32, #tpu.memory_space<vmem>>, vector<1x32xf32>
    %c0_10 = arith.constant 0 : index
    %c0_11 = arith.constant 0 : index
    %5 = vector.load %arg7[%c0_10, %c0_11] : memref<128x128xf32, #tpu.memory_space<vmem>>, vector<128x128xf32>
    %c0_12 = arith.constant 0 : index
    %c0_13 = arith.constant 0 : index
    %6 = vector.load %arg11[%c0_12, %c0_13] : memref<32x128xf32, #tpu.memory_space<vmem>>, vector<32x128xf32>
    %c0_14 = arith.constant 0 : index
    %c0_15 = arith.constant 0 : index
    %7 = vector.load %arg12[%c0_14, %c0_15] : memref<1x128xf32, #tpu.memory_space<vmem>>, vector<1x128xf32>
    %8 = tpu.iota {dimensions = array<i32: 1>} : vector<8x128xi32>
    %c0_16 = arith.constant 0 : index
    %c0_17 = arith.constant 0 : index
    %c0_18 = arith.constant 0 : index
    %9 = vector.load %arg2[%c0_16, %c0_17, %c0_18] : memref<6x8x1xi32, #tpu.memory_space<vmem>>, vector<1x8x1xi32>
    %10 = vector.shape_cast %9 : vector<1x8x1xi32> to vector<8x1xi32>
    %c0_19 = arith.constant 0 : index
    %c0_20 = arith.constant 0 : index
    %11 = vector.load %arg5[%c0_19, %c0_20] : memref<8x32xf32, #tpu.memory_space<vmem>>, vector<8x32xf32>
    %c0_21 = arith.constant 0 : index
    %c0_22 = arith.constant 0 : index
    %12 = vector.load %arg6[%c0_21, %c0_22] : memref<8x32xf32, #tpu.memory_space<vmem>>, vector<8x32xf32>
    %c0_i32 = arith.constant 0 : i32
    %13 = vector.broadcast %4 : vector<1x32xf32> to vector<8x32xf32>
    %14 = arith.mulf %11, %13 : vector<8x32xf32>
    %cst = arith.constant dense<0.000000e+00> : vector<8xf32>
    %15 = vector.multi_reduction <add>, %14, %cst [1] : vector<8x32xf32> to vector<8xf32>
    %16 = vector.shape_cast %15 : vector<8xf32> to vector<8x1xf32>
    %17 = vector.broadcast %16 : vector<8x1xf32> to vector<8x8xf32>
    %18 = arith.addf %0, %17 : vector<8x8xf32>
    %cst_23 = arith.constant 0.000000e+00 : f32
    %19 = vector.broadcast %cst_23 : f32 to vector<8x8xf32>
    %20 = arith.maximumf %18, %19 : vector<8x8xf32>
    %cst_24 = arith.constant dense<0xFF800000> : vector<8xf32>
    %21 = vector.multi_reduction <maximumf>, %20, %cst_24 [1] : vector<8x8xf32> to vector<8xf32>
    %22 = vector.shape_cast %21 : vector<8xf32> to vector<8x1xf32>
    %23 = vector.broadcast %22 : vector<8x1xf32> to vector<8x8xf32>
    %24 = arith.subf %20, %23 : vector<8x8xf32>
    %25 = math.exp %24 : vector<8x8xf32>
    %cst_25 = arith.constant dense<0.000000e+00> : vector<8xf32>
    %26 = vector.multi_reduction <add>, %25, %cst_25 [1] : vector<8x8xf32> to vector<8xf32>
    %27 = vector.shape_cast %26 : vector<8xf32> to vector<8x1xf32>
    %28 = vector.broadcast %27 : vector<8x1xf32> to vector<8x8xf32>
    %29 = arith.divf %25, %28 : vector<8x8xf32>
    %30 = vector.shape_cast %29 : vector<8x8xf32> to vector<8x8x1xf32>
    %31 = vector.broadcast %30 : vector<8x8x1xf32> to vector<8x8x128xf32>
    %32 = arith.mulf %31, %1 : vector<8x8x128xf32>
    %cst_26 = arith.constant dense<0.000000e+00> : vector<8x128xf32>
    %33 = vector.multi_reduction <add>, %32, %cst_26 [1] : vector<8x8x128xf32> to vector<8x128xf32>
    %34 = vector.broadcast %10 : vector<8x1xi32> to vector<8x128xi32>
    %35 = arith.cmpi eq, %8, %34 : vector<8x128xi32>
    %36 = arith.extui %35 : vector<8x128xi1> to vector<8x128xi32>
    %37 = arith.sitofp %36 : vector<8x128xi32> to vector<8x128xf32>
    %cst_27 = arith.constant dense<0.000000e+00> : vector<8x128xf32>
    %38 = tpu.matmul %37, %5, %cst_27 {dimension_numbers = #tpu.dot_dimension_numbers<[1], [0], [0], [1], [0, 0, 1, 1], [], []>} : vector<8x128xf32>, vector<128x128xf32>, vector<8x128xf32> -> vector<8x128xf32>
    %39 = arith.addf %33, %38 : vector<8x128xf32>
    %cst_28 = arith.constant dense<0.000000e+00> : vector<8x128xf32>
    %40 = tpu.matmul %11, %2, %cst_28 {dimension_numbers = #tpu.dot_dimension_numbers<[1], [0], [0], [1], [0, 0, 1, 1], [], []>} : vector<8x32xf32>, vector<32x128xf32>, vector<8x128xf32> -> vector<8x128xf32>
    %41 = arith.addf %39, %40 : vector<8x128xf32>
    %42 = vector.broadcast %3 : vector<1x128xf32> to vector<8x128xf32>
    %43 = arith.addf %41, %42 : vector<8x128xf32>
    %44 = vector.extract_strided_slice %43 {offsets = [0, 0], sizes = [8, 32], strides = [1, 1]} : vector<8x128xf32> to vector<8x32xf32>
    %45 = arith.negf %44 : vector<8x32xf32>
    %46 = math.exp %45 : vector<8x32xf32>
    %cst_29 = arith.constant 1.000000e+00 : f32
    %47 = vector.broadcast %cst_29 : f32 to vector<8x32xf32>
    %48 = arith.addf %47, %46 : vector<8x32xf32>
    %49 = arith.divf %47, %48 : vector<8x32xf32>
    %50 = vector.extract_strided_slice %43 {offsets = [0, 32], sizes = [8, 32], strides = [1, 1]} : vector<8x128xf32> to vector<8x32xf32>
    %51 = arith.negf %50 : vector<8x32xf32>
    %52 = math.exp %51 : vector<8x32xf32>
    %cst_30 = arith.constant 1.000000e+00 : f32
    %53 = vector.broadcast %cst_30 : f32 to vector<8x32xf32>
    %54 = arith.addf %53, %52 : vector<8x32xf32>
    %55 = arith.divf %53, %54 : vector<8x32xf32>
    %56 = vector.extract_strided_slice %43 {offsets = [0, 64], sizes = [8, 32], strides = [1, 1]} : vector<8x128xf32> to vector<8x32xf32>
    %57 = math.tanh %56 : vector<8x32xf32>
    %58 = vector.extract_strided_slice %43 {offsets = [0, 96], sizes = [8, 32], strides = [1, 1]} : vector<8x128xf32> to vector<8x32xf32>
    %59 = arith.negf %58 : vector<8x32xf32>
    %60 = math.exp %59 : vector<8x32xf32>
    %cst_31 = arith.constant 1.000000e+00 : f32
    %61 = vector.broadcast %cst_31 : f32 to vector<8x32xf32>
    %62 = arith.addf %61, %60 : vector<8x32xf32>
    %63 = arith.divf %61, %62 : vector<8x32xf32>
    %64 = arith.mulf %55, %12 : vector<8x32xf32>
    %65 = arith.mulf %49, %57 : vector<8x32xf32>
    %66 = arith.addf %64, %65 : vector<8x32xf32>
    %67 = math.tanh %66 : vector<8x32xf32>
    %68 = arith.mulf %63, %67 : vector<8x32xf32>
    %cst_32 = arith.constant dense<0.000000e+00> : vector<8x128xf32>
    %69 = tpu.matmul %68, %6, %cst_32 {dimension_numbers = #tpu.dot_dimension_numbers<[1], [0], [0], [1], [0, 0, 1, 1], [], []>} : vector<8x32xf32>, vector<32x128xf32>, vector<8x128xf32> -> vector<8x128xf32>
    %70 = vector.broadcast %7 : vector<1x128xf32> to vector<8x128xf32>
    %71 = arith.addf %69, %70 : vector<8x128xf32>
    %72 = arith.index_cast %c0_i32 : i32 to index
    %c0_33 = arith.constant 0 : index
    %c0_34 = arith.constant 0 : index
    %73 = vector.load %arg13[%72, %c0_33, %c0_34] : memref<5x8x128xf32, #tpu.memory_space<vmem>>, vector<1x8x128xf32>
    %74 = vector.shape_cast %73 : vector<1x8x128xf32> to vector<8x128xf32>
    %75 = vector.shape_cast %71 : vector<8x128xf32> to vector<1x8x128xf32>
    tpu.vector_store %arg13[%72, %c0_33, %c0_34], %75 {strides = array<i32>} : memref<5x8x128xf32, #tpu.memory_space<vmem>>, vector<1x8x128xf32>,
    %cst_35 = arith.constant dense<0xFF800000> : vector<8xf32>
    %76 = vector.multi_reduction <maximumf>, %71, %cst_35 [1] : vector<8x128xf32> to vector<8xf32>
    %77 = vector.shape_cast %76 : vector<8xf32> to vector<8x1xf32>
    %78 = vector.broadcast %77 : vector<8x1xf32> to vector<8x128xf32>
    %79 = arith.cmpf oge, %71, %78 : vector<8x128xf32>
    %c128_i32 = arith.constant 128 : i32
    %80 = vector.broadcast %c128_i32 : i32 to vector<8x128xi32>
    %81 = arith.select %79, %8, %80 : vector<8x128xi1>, vector<8x128xi32>
    %cst_36 = arith.constant dense<2147483647> : vector<8xi32>
    %82 = vector.multi_reduction <minsi>, %81, %cst_36 [1] : vector<8x128xi32> to vector<8xi32>
    %83 = vector.shape_cast %82 : vector<8xi32> to vector<8x1xi32>
    %84 = arith.index_cast %c0_i32 : i32 to index
    %85 = memref.load %arg1[%84] : memref<5xi32, #tpu.memory_space<smem>>
    %c0_i32_37 = arith.constant 0 : i32
    %86 = arith.cmpi ne, %85, %c0_i32_37 : i32
    %c1_i32 = arith.constant 1 : i32
    %87 = arith.addi %c0_i32, %c1_i32 : i32
    %88 = arith.index_cast %87 : i32 to index
    %c0_38 = arith.constant 0 : index
    %c0_39 = arith.constant 0 : index
    %89 = vector.load %arg2[%88, %c0_38, %c0_39] : memref<6x8x1xi32, #tpu.memory_space<vmem>>, vector<1x8x1xi32>
    %90 = vector.shape_cast %89 : vector<1x8x1xi32> to vector<8x1xi32>
    %91 = arith.select %86, %90, %83 : vector<8x1xi32>
    %c1_i32_40 = arith.constant 1 : i32
    %92 = vector.broadcast %4 : vector<1x32xf32> to vector<8x32xf32>
    %93 = arith.mulf %68, %92 : vector<8x32xf32>
    %cst_41 = arith.constant dense<0.000000e+00> : vector<8xf32>
    %94 = vector.multi_reduction <add>, %93, %cst_41 [1] : vector<8x32xf32> to vector<8xf32>
    %95 = vector.shape_cast %94 : vector<8xf32> to vector<8x1xf32>
    %96 = vector.broadcast %95 : vector<8x1xf32> to vector<8x8xf32>
    %97 = arith.addf %0, %96 : vector<8x8xf32>
    %cst_42 = arith.constant 0.000000e+00 : f32
    %98 = vector.broadcast %cst_42 : f32 to vector<8x8xf32>
    %99 = arith.maximumf %97, %98 : vector<8x8xf32>
    %cst_43 = arith.constant dense<0xFF800000> : vector<8xf32>
    %100 = vector.multi_reduction <maximumf>, %99, %cst_43 [1] : vector<8x8xf32> to vector<8xf32>
    %101 = vector.shape_cast %100 : vector<8xf32> to vector<8x1xf32>
    %102 = vector.broadcast %101 : vector<8x1xf32> to vector<8x8xf32>
    %103 = arith.subf %99, %102 : vector<8x8xf32>
    %104 = math.exp %103 : vector<8x8xf32>
    %cst_44 = arith.constant dense<0.000000e+00> : vector<8xf32>
    %105 = vector.multi_reduction <add>, %104, %cst_44 [1] : vector<8x8xf32> to vector<8xf32>
    %106 = vector.shape_cast %105 : vector<8xf32> to vector<8x1xf32>
    %107 = vector.broadcast %106 : vector<8x1xf32> to vector<8x8xf32>
    %108 = arith.divf %104, %107 : vector<8x8xf32>
    %109 = vector.shape_cast %108 : vector<8x8xf32> to vector<8x8x1xf32>
    %110 = vector.broadcast %109 : vector<8x8x1xf32> to vector<8x8x128xf32>
    %111 = arith.mulf %110, %1 : vector<8x8x128xf32>
    %cst_45 = arith.constant dense<0.000000e+00> : vector<8x128xf32>
    %112 = vector.multi_reduction <add>, %111, %cst_45 [1] : vector<8x8x128xf32> to vector<8x128xf32>
    %113 = vector.broadcast %91 : vector<8x1xi32> to vector<8x128xi32>
    %114 = arith.cmpi eq, %8, %113 : vector<8x128xi32>
    %115 = arith.extui %114 : vector<8x128xi1> to vector<8x128xi32>
    %116 = arith.sitofp %115 : vector<8x128xi32> to vector<8x128xf32>
    %cst_46 = arith.constant dense<0.000000e+00> : vector<8x128xf32>
    %117 = tpu.matmul %116, %5, %cst_46 {dimension_numbers = #tpu.dot_dimension_numbers<[1], [0], [0], [1], [0, 0, 1, 1], [], []>} : vector<8x128xf32>, vector<128x128xf32>, vector<8x128xf32> -> vector<8x128xf32>
    %118 = arith.addf %112, %117 : vector<8x128xf32>
    %cst_47 = arith.constant dense<0.000000e+00> : vector<8x128xf32>
    %119 = tpu.matmul %68, %2, %cst_47 {dimension_numbers = #tpu.dot_dimension_numbers<[1], [0], [0], [1], [0, 0, 1, 1], [], []>} : vector<8x32xf32>, vector<32x128xf32>, vector<8x128xf32> -> vector<8x128xf32>
    %120 = arith.addf %118, %119 : vector<8x128xf32>
    %121 = vector.broadcast %3 : vector<1x128xf32> to vector<8x128xf32>
    %122 = arith.addf %120, %121 : vector<8x128xf32>
    %123 = vector.extract_strided_slice %122 {offsets = [0, 0], sizes = [8, 32], strides = [1, 1]} : vector<8x128xf32> to vector<8x32xf32>
    %124 = arith.negf %123 : vector<8x32xf32>
    %125 = math.exp %124 : vector<8x32xf32>
    %cst_48 = arith.constant 1.000000e+00 : f32
    %126 = vector.broadcast %cst_48 : f32 to vector<8x32xf32>
    %127 = arith.addf %126, %125 : vector<8x32xf32>
    %128 = arith.divf %126, %127 : vector<8x32xf32>
    %129 = vector.extract_strided_slice %122 {offsets = [0, 32], sizes = [8, 32], strides = [1, 1]} : vector<8x128xf32> to vector<8x32xf32>
    %130 = arith.negf %129 : vector<8x32xf32>
    %131 = math.exp %130 : vector<8x32xf32>
    %cst_49 = arith.constant 1.000000e+00 : f32
    %132 = vector.broadcast %cst_49 : f32 to vector<8x32xf32>
    %133 = arith.addf %132, %131 : vector<8x32xf32>
    %134 = arith.divf %132, %133 : vector<8x32xf32>
    %135 = vector.extract_strided_slice %122 {offsets = [0, 64], sizes = [8, 32], strides = [1, 1]} : vector<8x128xf32> to vector<8x32xf32>
    %136 = math.tanh %135 : vector<8x32xf32>
    %137 = vector.extract_strided_slice %122 {offsets = [0, 96], sizes = [8, 32], strides = [1, 1]} : vector<8x128xf32> to vector<8x32xf32>
    %138 = arith.negf %137 : vector<8x32xf32>
    %139 = math.exp %138 : vector<8x32xf32>
    %cst_50 = arith.constant 1.000000e+00 : f32
    %140 = vector.broadcast %cst_50 : f32 to vector<8x32xf32>
    %141 = arith.addf %140, %139 : vector<8x32xf32>
    %142 = arith.divf %140, %141 : vector<8x32xf32>
    %143 = arith.mulf %134, %66 : vector<8x32xf32>
    %144 = arith.mulf %128, %136 : vector<8x32xf32>
    %145 = arith.addf %143, %144 : vector<8x32xf32>
    %146 = math.tanh %145 : vector<8x32xf32>
    %147 = arith.mulf %142, %146 : vector<8x32xf32>
    %cst_51 = arith.constant dense<0.000000e+00> : vector<8x128xf32>
    %148 = tpu.matmul %147, %6, %cst_51 {dimension_numbers = #tpu.dot_dimension_numbers<[1], [0], [0], [1], [0, 0, 1, 1], [], []>} : vector<8x32xf32>, vector<32x128xf32>, vector<8x128xf32> -> vector<8x128xf32>
    %149 = vector.broadcast %7 : vector<1x128xf32> to vector<8x128xf32>
    %150 = arith.addf %148, %149 : vector<8x128xf32>
    %151 = arith.index_cast %c1_i32_40 : i32 to index
    %c0_52 = arith.constant 0 : index
    %c0_53 = arith.constant 0 : index
    %152 = vector.load %arg13[%151, %c0_52, %c0_53] : memref<5x8x128xf32, #tpu.memory_space<vmem>>, vector<1x8x128xf32>
    %153 = vector.shape_cast %152 : vector<1x8x128xf32> to vector<8x128xf32>
    %154 = vector.shape_cast %150 : vector<8x128xf32> to vector<1x8x128xf32>
    tpu.vector_store %arg13[%151, %c0_52, %c0_53], %154 {strides = array<i32>} : memref<5x8x128xf32, #tpu.memory_space<vmem>>, vector<1x8x128xf32>,
    %cst_54 = arith.constant dense<0xFF800000> : vector<8xf32>
    %155 = vector.multi_reduction <maximumf>, %150, %cst_54 [1] : vector<8x128xf32> to vector<8xf32>
    %156 = vector.shape_cast %155 : vector<8xf32> to vector<8x1xf32>
    %157 = vector.broadcast %156 : vector<8x1xf32> to vector<8x128xf32>
    %158 = arith.cmpf oge, %150, %157 : vector<8x128xf32>
    %c128_i32_55 = arith.constant 128 : i32
    %159 = vector.broadcast %c128_i32_55 : i32 to vector<8x128xi32>
    %160 = arith.select %158, %8, %159 : vector<8x128xi1>, vector<8x128xi32>
    %cst_56 = arith.constant dense<2147483647> : vector<8xi32>
    %161 = vector.multi_reduction <minsi>, %160, %cst_56 [1] : vector<8x128xi32> to vector<8xi32>
    %162 = vector.shape_cast %161 : vector<8xi32> to vector<8x1xi32>
    %163 = arith.index_cast %c1_i32_40 : i32 to index
    %164 = memref.load %arg1[%163] : memref<5xi32, #tpu.memory_space<smem>>
    %c0_i32_57 = arith.constant 0 : i32
    %165 = arith.cmpi ne, %164, %c0_i32_57 : i32
    %c1_i32_58 = arith.constant 1 : i32
    %166 = arith.addi %c1_i32_40, %c1_i32_58 : i32
    %167 = arith.index_cast %166 : i32 to index
    %c0_59 = arith.constant 0 : index
    %c0_60 = arith.constant 0 : index
    %168 = vector.load %arg2[%167, %c0_59, %c0_60] : memref<6x8x1xi32, #tpu.memory_space<vmem>>, vector<1x8x1xi32>
    %169 = vector.shape_cast %168 : vector<1x8x1xi32> to vector<8x1xi32>
    %170 = arith.select %165, %169, %162 : vector<8x1xi32>
    %c2_i32 = arith.constant 2 : i32
    %171 = vector.broadcast %4 : vector<1x32xf32> to vector<8x32xf32>
    %172 = arith.mulf %147, %171 : vector<8x32xf32>
    %cst_61 = arith.constant dense<0.000000e+00> : vector<8xf32>
    %173 = vector.multi_reduction <add>, %172, %cst_61 [1] : vector<8x32xf32> to vector<8xf32>
    %174 = vector.shape_cast %173 : vector<8xf32> to vector<8x1xf32>
    %175 = vector.broadcast %174 : vector<8x1xf32> to vector<8x8xf32>
    %176 = arith.addf %0, %175 : vector<8x8xf32>
    %cst_62 = arith.constant 0.000000e+00 : f32
    %177 = vector.broadcast %cst_62 : f32 to vector<8x8xf32>
    %178 = arith.maximumf %176, %177 : vector<8x8xf32>
    %cst_63 = arith.constant dense<0xFF800000> : vector<8xf32>
    %179 = vector.multi_reduction <maximumf>, %178, %cst_63 [1] : vector<8x8xf32> to vector<8xf32>
    %180 = vector.shape_cast %179 : vector<8xf32> to vector<8x1xf32>
    %181 = vector.broadcast %180 : vector<8x1xf32> to vector<8x8xf32>
    %182 = arith.subf %178, %181 : vector<8x8xf32>
    %183 = math.exp %182 : vector<8x8xf32>
    %cst_64 = arith.constant dense<0.000000e+00> : vector<8xf32>
    %184 = vector.multi_reduction <add>, %183, %cst_64 [1] : vector<8x8xf32> to vector<8xf32>
    %185 = vector.shape_cast %184 : vector<8xf32> to vector<8x1xf32>
    %186 = vector.broadcast %185 : vector<8x1xf32> to vector<8x8xf32>
    %187 = arith.divf %183, %186 : vector<8x8xf32>
    %188 = vector.shape_cast %187 : vector<8x8xf32> to vector<8x8x1xf32>
    %189 = vector.broadcast %188 : vector<8x8x1xf32> to vector<8x8x128xf32>
    %190 = arith.mulf %189, %1 : vector<8x8x128xf32>
    %cst_65 = arith.constant dense<0.000000e+00> : vector<8x128xf32>
    %191 = vector.multi_reduction <add>, %190, %cst_65 [1] : vector<8x8x128xf32> to vector<8x128xf32>
    %192 = vector.broadcast %170 : vector<8x1xi32> to vector<8x128xi32>
    %193 = arith.cmpi eq, %8, %192 : vector<8x128xi32>
    %194 = arith.extui %193 : vector<8x128xi1> to vector<8x128xi32>
    %195 = arith.sitofp %194 : vector<8x128xi32> to vector<8x128xf32>
    %cst_66 = arith.constant dense<0.000000e+00> : vector<8x128xf32>
    %196 = tpu.matmul %195, %5, %cst_66 {dimension_numbers = #tpu.dot_dimension_numbers<[1], [0], [0], [1], [0, 0, 1, 1], [], []>} : vector<8x128xf32>, vector<128x128xf32>, vector<8x128xf32> -> vector<8x128xf32>
    %197 = arith.addf %191, %196 : vector<8x128xf32>
    %cst_67 = arith.constant dense<0.000000e+00> : vector<8x128xf32>
    %198 = tpu.matmul %147, %2, %cst_67 {dimension_numbers = #tpu.dot_dimension_numbers<[1], [0], [0], [1], [0, 0, 1, 1], [], []>} : vector<8x32xf32>, vector<32x128xf32>, vector<8x128xf32> -> vector<8x128xf32>
    %199 = arith.addf %197, %198 : vector<8x128xf32>
    %200 = vector.broadcast %3 : vector<1x128xf32> to vector<8x128xf32>
    %201 = arith.addf %199, %200 : vector<8x128xf32>
    %202 = vector.extract_strided_slice %201 {offsets = [0, 0], sizes = [8, 32], strides = [1, 1]} : vector<8x128xf32> to vector<8x32xf32>
    %203 = arith.negf %202 : vector<8x32xf32>
    %204 = math.exp %203 : vector<8x32xf32>
    %cst_68 = arith.constant 1.000000e+00 : f32
    %205 = vector.broadcast %cst_68 : f32 to vector<8x32xf32>
    %206 = arith.addf %205, %204 : vector<8x32xf32>
    %207 = arith.divf %205, %206 : vector<8x32xf32>
    %208 = vector.extract_strided_slice %201 {offsets = [0, 32], sizes = [8, 32], strides = [1, 1]} : vector<8x128xf32> to vector<8x32xf32>
    %209 = arith.negf %208 : vector<8x32xf32>
    %210 = math.exp %209 : vector<8x32xf32>
    %cst_69 = arith.constant 1.000000e+00 : f32
    %211 = vector.broadcast %cst_69 : f32 to vector<8x32xf32>
    %212 = arith.addf %211, %210 : vector<8x32xf32>
    %213 = arith.divf %211, %212 : vector<8x32xf32>
    %214 = vector.extract_strided_slice %201 {offsets = [0, 64], sizes = [8, 32], strides = [1, 1]} : vector<8x128xf32> to vector<8x32xf32>
    %215 = math.tanh %214 : vector<8x32xf32>
    %216 = vector.extract_strided_slice %201 {offsets = [0, 96], sizes = [8, 32], strides = [1, 1]} : vector<8x128xf32> to vector<8x32xf32>
    %217 = arith.negf %216 : vector<8x32xf32>
    %218 = math.exp %217 : vector<8x32xf32>
    %cst_70 = arith.constant 1.000000e+00 : f32
    %219 = vector.broadcast %cst_70 : f32 to vector<8x32xf32>
    %220 = arith.addf %219, %218 : vector<8x32xf32>
    %221 = arith.divf %219, %220 : vector<8x32xf32>
    %222 = arith.mulf %213, %145 : vector<8x32xf32>
    %223 = arith.mulf %207, %215 : vector<8x32xf32>
    %224 = arith.addf %222, %223 : vector<8x32xf32>
    %225 = math.tanh %224 : vector<8x32xf32>
    %226 = arith.mulf %221, %225 : vector<8x32xf32>
    %cst_71 = arith.constant dense<0.000000e+00> : vector<8x128xf32>
    %227 = tpu.matmul %226, %6, %cst_71 {dimension_numbers = #tpu.dot_dimension_numbers<[1], [0], [0], [1], [0, 0, 1, 1], [], []>} : vector<8x32xf32>, vector<32x128xf32>, vector<8x128xf32> -> vector<8x128xf32>
    %228 = vector.broadcast %7 : vector<1x128xf32> to vector<8x128xf32>
    %229 = arith.addf %227, %228 : vector<8x128xf32>
    %230 = arith.index_cast %c2_i32 : i32 to index
    %c0_72 = arith.constant 0 : index
    %c0_73 = arith.constant 0 : index
    %231 = vector.load %arg13[%230, %c0_72, %c0_73] : memref<5x8x128xf32, #tpu.memory_space<vmem>>, vector<1x8x128xf32>
    %232 = vector.shape_cast %231 : vector<1x8x128xf32> to vector<8x128xf32>
    %233 = vector.shape_cast %229 : vector<8x128xf32> to vector<1x8x128xf32>
    tpu.vector_store %arg13[%230, %c0_72, %c0_73], %233 {strides = array<i32>} : memref<5x8x128xf32, #tpu.memory_space<vmem>>, vector<1x8x128xf32>,
    %cst_74 = arith.constant dense<0xFF800000> : vector<8xf32>
    %234 = vector.multi_reduction <maximumf>, %229, %cst_74 [1] : vector<8x128xf32> to vector<8xf32>
    %235 = vector.shape_cast %234 : vector<8xf32> to vector<8x1xf32>
    %236 = vector.broadcast %235 : vector<8x1xf32> to vector<8x128xf32>
    %237 = arith.cmpf oge, %229, %236 : vector<8x128xf32>
    %c128_i32_75 = arith.constant 128 : i32
    %238 = vector.broadcast %c128_i32_75 : i32 to vector<8x128xi32>
    %239 = arith.select %237, %8, %238 : vector<8x128xi1>, vector<8x128xi32>
    %cst_76 = arith.constant dense<2147483647> : vector<8xi32>
    %240 = vector.multi_reduction <minsi>, %239, %cst_76 [1] : vector<8x128xi32> to vector<8xi32>
    %241 = vector.shape_cast %240 : vector<8xi32> to vector<8x1xi32>
    %242 = arith.index_cast %c2_i32 : i32 to index
    %243 = memref.load %arg1[%242] : memref<5xi32, #tpu.memory_space<smem>>
    %c0_i32_77 = arith.constant 0 : i32
    %244 = arith.cmpi ne, %243, %c0_i32_77 : i32
    %c1_i32_78 = arith.constant 1 : i32
    %245 = arith.addi %c2_i32, %c1_i32_78 : i32
    %246 = arith.index_cast %245 : i32 to index
    %c0_79 = arith.constant 0 : index
    %c0_80 = arith.constant 0 : index
    %247 = vector.load %arg2[%246, %c0_79, %c0_80] : memref<6x8x1xi32, #tpu.memory_space<vmem>>, vector<1x8x1xi32>
    %248 = vector.shape_cast %247 : vector<1x8x1xi32> to vector<8x1xi32>
    %249 = arith.select %244, %248, %241 : vector<8x1xi32>
    %c3_i32 = arith.constant 3 : i32
    %250 = vector.broadcast %4 : vector<1x32xf32> to vector<8x32xf32>
    %251 = arith.mulf %226, %250 : vector<8x32xf32>
    %cst_81 = arith.constant dense<0.000000e+00> : vector<8xf32>
    %252 = vector.multi_reduction <add>, %251, %cst_81 [1] : vector<8x32xf32> to vector<8xf32>
    %253 = vector.shape_cast %252 : vector<8xf32> to vector<8x1xf32>
    %254 = vector.broadcast %253 : vector<8x1xf32> to vector<8x8xf32>
    %255 = arith.addf %0, %254 : vector<8x8xf32>
    %cst_82 = arith.constant 0.000000e+00 : f32
    %256 = vector.broadcast %cst_82 : f32 to vector<8x8xf32>
    %257 = arith.maximumf %255, %256 : vector<8x8xf32>
    %cst_83 = arith.constant dense<0xFF800000> : vector<8xf32>
    %258 = vector.multi_reduction <maximumf>, %257, %cst_83 [1] : vector<8x8xf32> to vector<8xf32>
    %259 = vector.shape_cast %258 : vector<8xf32> to vector<8x1xf32>
    %260 = vector.broadcast %259 : vector<8x1xf32> to vector<8x8xf32>
    %261 = arith.subf %257, %260 : vector<8x8xf32>
    %262 = math.exp %261 : vector<8x8xf32>
    %cst_84 = arith.constant dense<0.000000e+00> : vector<8xf32>
    %263 = vector.multi_reduction <add>, %262, %cst_84 [1] : vector<8x8xf32> to vector<8xf32>
    %264 = vector.shape_cast %263 : vector<8xf32> to vector<8x1xf32>
    %265 = vector.broadcast %264 : vector<8x1xf32> to vector<8x8xf32>
    %266 = arith.divf %262, %265 : vector<8x8xf32>
    %267 = vector.shape_cast %266 : vector<8x8xf32> to vector<8x8x1xf32>
    %268 = vector.broadcast %267 : vector<8x8x1xf32> to vector<8x8x128xf32>
    %269 = arith.mulf %268, %1 : vector<8x8x128xf32>
    %cst_85 = arith.constant dense<0.000000e+00> : vector<8x128xf32>
    %270 = vector.multi_reduction <add>, %269, %cst_85 [1] : vector<8x8x128xf32> to vector<8x128xf32>
    %271 = vector.broadcast %249 : vector<8x1xi32> to vector<8x128xi32>
    %272 = arith.cmpi eq, %8, %271 : vector<8x128xi32>
    %273 = arith.extui %272 : vector<8x128xi1> to vector<8x128xi32>
    %274 = arith.sitofp %273 : vector<8x128xi32> to vector<8x128xf32>
    %cst_86 = arith.constant dense<0.000000e+00> : vector<8x128xf32>
    %275 = tpu.matmul %274, %5, %cst_86 {dimension_numbers = #tpu.dot_dimension_numbers<[1], [0], [0], [1], [0, 0, 1, 1], [], []>} : vector<8x128xf32>, vector<128x128xf32>, vector<8x128xf32> -> vector<8x128xf32>
    %276 = arith.addf %270, %275 : vector<8x128xf32>
    %cst_87 = arith.constant dense<0.000000e+00> : vector<8x128xf32>
    %277 = tpu.matmul %226, %2, %cst_87 {dimension_numbers = #tpu.dot_dimension_numbers<[1], [0], [0], [1], [0, 0, 1, 1], [], []>} : vector<8x32xf32>, vector<32x128xf32>, vector<8x128xf32> -> vector<8x128xf32>
    %278 = arith.addf %276, %277 : vector<8x128xf32>
    %279 = vector.broadcast %3 : vector<1x128xf32> to vector<8x128xf32>
    %280 = arith.addf %278, %279 : vector<8x128xf32>
    %281 = vector.extract_strided_slice %280 {offsets = [0, 0], sizes = [8, 32], strides = [1, 1]} : vector<8x128xf32> to vector<8x32xf32>
    %282 = arith.negf %281 : vector<8x32xf32>
    %283 = math.exp %282 : vector<8x32xf32>
    %cst_88 = arith.constant 1.000000e+00 : f32
    %284 = vector.broadcast %cst_88 : f32 to vector<8x32xf32>
    %285 = arith.addf %284, %283 : vector<8x32xf32>
    %286 = arith.divf %284, %285 : vector<8x32xf32>
    %287 = vector.extract_strided_slice %280 {offsets = [0, 32], sizes = [8, 32], strides = [1, 1]} : vector<8x128xf32> to vector<8x32xf32>
    %288 = arith.negf %287 : vector<8x32xf32>
    %289 = math.exp %288 : vector<8x32xf32>
    %cst_89 = arith.constant 1.000000e+00 : f32
    %290 = vector.broadcast %cst_89 : f32 to vector<8x32xf32>
    %291 = arith.addf %290, %289 : vector<8x32xf32>
    %292 = arith.divf %290, %291 : vector<8x32xf32>
    %293 = vector.extract_strided_slice %280 {offsets = [0, 64], sizes = [8, 32], strides = [1, 1]} : vector<8x128xf32> to vector<8x32xf32>
    %294 = math.tanh %293 : vector<8x32xf32>
    %295 = vector.extract_strided_slice %280 {offsets = [0, 96], sizes = [8, 32], strides = [1, 1]} : vector<8x128xf32> to vector<8x32xf32>
    %296 = arith.negf %295 : vector<8x32xf32>
    %297 = math.exp %296 : vector<8x32xf32>
    %cst_90 = arith.constant 1.000000e+00 : f32
    %298 = vector.broadcast %cst_90 : f32 to vector<8x32xf32>
    %299 = arith.addf %298, %297 : vector<8x32xf32>
    %300 = arith.divf %298, %299 : vector<8x32xf32>
    %301 = arith.mulf %292, %224 : vector<8x32xf32>
    %302 = arith.mulf %286, %294 : vector<8x32xf32>
    %303 = arith.addf %301, %302 : vector<8x32xf32>
    %304 = math.tanh %303 : vector<8x32xf32>
    %305 = arith.mulf %300, %304 : vector<8x32xf32>
    %cst_91 = arith.constant dense<0.000000e+00> : vector<8x128xf32>
    %306 = tpu.matmul %305, %6, %cst_91 {dimension_numbers = #tpu.dot_dimension_numbers<[1], [0], [0], [1], [0, 0, 1, 1], [], []>} : vector<8x32xf32>, vector<32x128xf32>, vector<8x128xf32> -> vector<8x128xf32>
    %307 = vector.broadcast %7 : vector<1x128xf32> to vector<8x128xf32>
    %308 = arith.addf %306, %307 : vector<8x128xf32>
    %309 = arith.index_cast %c3_i32 : i32 to index
    %c0_92 = arith.constant 0 : index
    %c0_93 = arith.constant 0 : index
    %310 = vector.load %arg13[%309, %c0_92, %c0_93] : memref<5x8x128xf32, #tpu.memory_space<vmem>>, vector<1x8x128xf32>
    %311 = vector.shape_cast %310 : vector<1x8x128xf32> to vector<8x128xf32>
    %312 = vector.shape_cast %308 : vector<8x128xf32> to vector<1x8x128xf32>
    tpu.vector_store %arg13[%309, %c0_92, %c0_93], %312 {strides = array<i32>} : memref<5x8x128xf32, #tpu.memory_space<vmem>>, vector<1x8x128xf32>,
    %cst_94 = arith.constant dense<0xFF800000> : vector<8xf32>
    %313 = vector.multi_reduction <maximumf>, %308, %cst_94 [1] : vector<8x128xf32> to vector<8xf32>
    %314 = vector.shape_cast %313 : vector<8xf32> to vector<8x1xf32>
    %315 = vector.broadcast %314 : vector<8x1xf32> to vector<8x128xf32>
    %316 = arith.cmpf oge, %308, %315 : vector<8x128xf32>
    %c128_i32_95 = arith.constant 128 : i32
    %317 = vector.broadcast %c128_i32_95 : i32 to vector<8x128xi32>
    %318 = arith.select %316, %8, %317 : vector<8x128xi1>, vector<8x128xi32>
    %cst_96 = arith.constant dense<2147483647> : vector<8xi32>
    %319 = vector.multi_reduction <minsi>, %318, %cst_96 [1] : vector<8x128xi32> to vector<8xi32>
    %320 = vector.shape_cast %319 : vector<8xi32> to vector<8x1xi32>
    %321 = arith.index_cast %c3_i32 : i32 to index
    %322 = memref.load %arg1[%321] : memref<5xi32, #tpu.memory_space<smem>>
    %c0_i32_97 = arith.constant 0 : i32
    %323 = arith.cmpi ne, %322, %c0_i32_97 : i32
    %c1_i32_98 = arith.constant 1 : i32
    %324 = arith.addi %c3_i32, %c1_i32_98 : i32
    %325 = arith.index_cast %324 : i32 to index
    %c0_99 = arith.constant 0 : index
    %c0_100 = arith.constant 0 : index
    %326 = vector.load %arg2[%325, %c0_99, %c0_100] : memref<6x8x1xi32, #tpu.memory_space<vmem>>, vector<1x8x1xi32>
    %327 = vector.shape_cast %326 : vector<1x8x1xi32> to vector<8x1xi32>
    %328 = arith.select %323, %327, %320 : vector<8x1xi32>
    %c4_i32 = arith.constant 4 : i32
    %329 = vector.broadcast %4 : vector<1x32xf32> to vector<8x32xf32>
    %330 = arith.mulf %305, %329 : vector<8x32xf32>
    %cst_101 = arith.constant dense<0.000000e+00> : vector<8xf32>
    %331 = vector.multi_reduction <add>, %330, %cst_101 [1] : vector<8x32xf32> to vector<8xf32>
    %332 = vector.shape_cast %331 : vector<8xf32> to vector<8x1xf32>
    %333 = vector.broadcast %332 : vector<8x1xf32> to vector<8x8xf32>
    %334 = arith.addf %0, %333 : vector<8x8xf32>
    %cst_102 = arith.constant 0.000000e+00 : f32
    %335 = vector.broadcast %cst_102 : f32 to vector<8x8xf32>
    %336 = arith.maximumf %334, %335 : vector<8x8xf32>
    %cst_103 = arith.constant dense<0xFF800000> : vector<8xf32>
    %337 = vector.multi_reduction <maximumf>, %336, %cst_103 [1] : vector<8x8xf32> to vector<8xf32>
    %338 = vector.shape_cast %337 : vector<8xf32> to vector<8x1xf32>
    %339 = vector.broadcast %338 : vector<8x1xf32> to vector<8x8xf32>
    %340 = arith.subf %336, %339 : vector<8x8xf32>
    %341 = math.exp %340 : vector<8x8xf32>
    %cst_104 = arith.constant dense<0.000000e+00> : vector<8xf32>
    %342 = vector.multi_reduction <add>, %341, %cst_104 [1] : vector<8x8xf32> to vector<8xf32>
    %343 = vector.shape_cast %342 : vector<8xf32> to vector<8x1xf32>
    %344 = vector.broadcast %343 : vector<8x1xf32> to vector<8x8xf32>
    %345 = arith.divf %341, %344 : vector<8x8xf32>
    %346 = vector.shape_cast %345 : vector<8x8xf32> to vector<8x8x1xf32>
    %347 = vector.broadcast %346 : vector<8x8x1xf32> to vector<8x8x128xf32>
    %348 = arith.mulf %347, %1 : vector<8x8x128xf32>
    %cst_105 = arith.constant dense<0.000000e+00> : vector<8x128xf32>
    %349 = vector.multi_reduction <add>, %348, %cst_105 [1] : vector<8x8x128xf32> to vector<8x128xf32>
    %350 = vector.broadcast %328 : vector<8x1xi32> to vector<8x128xi32>
    %351 = arith.cmpi eq, %8, %350 : vector<8x128xi32>
    %352 = arith.extui %351 : vector<8x128xi1> to vector<8x128xi32>
    %353 = arith.sitofp %352 : vector<8x128xi32> to vector<8x128xf32>
    %cst_106 = arith.constant dense<0.000000e+00> : vector<8x128xf32>
    %354 = tpu.matmul %353, %5, %cst_106 {dimension_numbers = #tpu.dot_dimension_numbers<[1], [0], [0], [1], [0, 0, 1, 1], [], []>} : vector<8x128xf32>, vector<128x128xf32>, vector<8x128xf32> -> vector<8x128xf32>
    %355 = arith.addf %349, %354 : vector<8x128xf32>
    %cst_107 = arith.constant dense<0.000000e+00> : vector<8x128xf32>
    %356 = tpu.matmul %305, %2, %cst_107 {dimension_numbers = #tpu.dot_dimension_numbers<[1], [0], [0], [1], [0, 0, 1, 1], [], []>} : vector<8x32xf32>, vector<32x128xf32>, vector<8x128xf32> -> vector<8x128xf32>
    %357 = arith.addf %355, %356 : vector<8x128xf32>
    %358 = vector.broadcast %3 : vector<1x128xf32> to vector<8x128xf32>
    %359 = arith.addf %357, %358 : vector<8x128xf32>
    %360 = vector.extract_strided_slice %359 {offsets = [0, 0], sizes = [8, 32], strides = [1, 1]} : vector<8x128xf32> to vector<8x32xf32>
    %361 = arith.negf %360 : vector<8x32xf32>
    %362 = math.exp %361 : vector<8x32xf32>
    %cst_108 = arith.constant 1.000000e+00 : f32
    %363 = vector.broadcast %cst_108 : f32 to vector<8x32xf32>
    %364 = arith.addf %363, %362 : vector<8x32xf32>
    %365 = arith.divf %363, %364 : vector<8x32xf32>
    %366 = vector.extract_strided_slice %359 {offsets = [0, 32], sizes = [8, 32], strides = [1, 1]} : vector<8x128xf32> to vector<8x32xf32>
    %367 = arith.negf %366 : vector<8x32xf32>
    %368 = math.exp %367 : vector<8x32xf32>
    %cst_109 = arith.constant 1.000000e+00 : f32
    %369 = vector.broadcast %cst_109 : f32 to vector<8x32xf32>
    %370 = arith.addf %369, %368 : vector<8x32xf32>
    %371 = arith.divf %369, %370 : vector<8x32xf32>
    %372 = vector.extract_strided_slice %359 {offsets = [0, 64], sizes = [8, 32], strides = [1, 1]} : vector<8x128xf32> to vector<8x32xf32>
    %373 = math.tanh %372 : vector<8x32xf32>
    %374 = vector.extract_strided_slice %359 {offsets = [0, 96], sizes = [8, 32], strides = [1, 1]} : vector<8x128xf32> to vector<8x32xf32>
    %375 = arith.negf %374 : vector<8x32xf32>
    %376 = math.exp %375 : vector<8x32xf32>
    %cst_110 = arith.constant 1.000000e+00 : f32
    %377 = vector.broadcast %cst_110 : f32 to vector<8x32xf32>
    %378 = arith.addf %377, %376 : vector<8x32xf32>
    %379 = arith.divf %377, %378 : vector<8x32xf32>
    %380 = arith.mulf %371, %303 : vector<8x32xf32>
    %381 = arith.mulf %365, %373 : vector<8x32xf32>
    %382 = arith.addf %380, %381 : vector<8x32xf32>
    %383 = math.tanh %382 : vector<8x32xf32>
    %384 = arith.mulf %379, %383 : vector<8x32xf32>
    %cst_111 = arith.constant dense<0.000000e+00> : vector<8x128xf32>
    %385 = tpu.matmul %384, %6, %cst_111 {dimension_numbers = #tpu.dot_dimension_numbers<[1], [0], [0], [1], [0, 0, 1, 1], [], []>} : vector<8x32xf32>, vector<32x128xf32>, vector<8x128xf32> -> vector<8x128xf32>
    %386 = vector.broadcast %7 : vector<1x128xf32> to vector<8x128xf32>
    %387 = arith.addf %385, %386 : vector<8x128xf32>
    %388 = arith.index_cast %c4_i32 : i32 to index
    %c0_112 = arith.constant 0 : index
    %c0_113 = arith.constant 0 : index
    %389 = vector.load %arg13[%388, %c0_112, %c0_113] : memref<5x8x128xf32, #tpu.memory_space<vmem>>, vector<1x8x128xf32>
    %390 = vector.shape_cast %389 : vector<1x8x128xf32> to vector<8x128xf32>
    %391 = vector.shape_cast %387 : vector<8x128xf32> to vector<1x8x128xf32>
    tpu.vector_store %arg13[%388, %c0_112, %c0_113], %391 {strides = array<i32>} : memref<5x8x128xf32, #tpu.memory_space<vmem>>, vector<1x8x128xf32>,
    %cst_114 = arith.constant dense<0xFF800000> : vector<8xf32>
    %392 = vector.multi_reduction <maximumf>, %387, %cst_114 [1] : vector<8x128xf32> to vector<8xf32>
    %393 = vector.shape_cast %392 : vector<8xf32> to vector<8x1xf32>
    %394 = vector.broadcast %393 : vector<8x1xf32> to vector<8x128xf32>
    %395 = arith.cmpf oge, %387, %394 : vector<8x128xf32>
    %c128_i32_115 = arith.constant 128 : i32
    %396 = vector.broadcast %c128_i32_115 : i32 to vector<8x128xi32>
    %397 = arith.select %395, %8, %396 : vector<8x128xi1>, vector<8x128xi32>
    %cst_116 = arith.constant dense<2147483647> : vector<8xi32>
    %398 = vector.multi_reduction <minsi>, %397, %cst_116 [1] : vector<8x128xi32> to vector<8xi32>
    %399 = vector.shape_cast %398 : vector<8xi32> to vector<8x1xi32>
    %400 = arith.index_cast %c4_i32 : i32 to index
    %401 = memref.load %arg1[%400] : memref<5xi32, #tpu.memory_space<smem>>
    %c0_i32_117 = arith.constant 0 : i32
    %402 = arith.cmpi ne, %401, %c0_i32_117 : i32
    %c1_i32_118 = arith.constant 1 : i32
    %403 = arith.addi %c4_i32, %c1_i32_118 : i32
    %404 = arith.index_cast %403 : i32 to index
    %c0_119 = arith.constant 0 : index
    %c0_120 = arith.constant 0 : index
    %405 = vector.load %arg2[%404, %c0_119, %c0_120] : memref<6x8x1xi32, #tpu.memory_space<vmem>>, vector<1x8x1xi32>
    %406 = vector.shape_cast %405 : vector<1x8x1xi32> to vector<8x1xi32>
    %407 = arith.select %402, %406, %399 : vector<8x1xi32>
    %c5_i32 = arith.constant 5 : i32
    return
  }
  func.func @transform_0(%arg0: i32) -> i32 {
    %c0_i32 = arith.constant 0 : i32
    %c0_i32_0 = arith.constant 0 : i32
    return %c0_i32 : i32
  }
  func.func @transform_1(%arg0: i32) -> (i32, i32, i32) {
    %c0_i32 = arith.constant 0 : i32
    %c0_i32_0 = arith.constant 0 : i32
    %c0_i32_1 = arith.constant 0 : i32
    %c0_i32_2 = arith.constant 0 : i32
    return %c0_i32, %c0_i32_0, %c0_i32_1 : i32, i32, i32
  }
  func.func @transform_2(%arg0: i32) -> (i32, i32) {
    %c0_i32 = arith.constant 0 : i32
    %c0_i32_0 = arith.constant 0 : i32
    %c0_i32_1 = arith.constant 0 : i32
    return %c0_i32, %c0_i32_0 : i32, i32
  }
  func.func @transform_3(%arg0: i32) -> (i32, i32, i32) {
    %c0_i32 = arith.constant 0 : i32
    %c0_i32_0 = arith.constant 0 : i32
    %c0_i32_1 = arith.constant 0 : i32
    %c0_i32_2 = arith.constant 0 : i32
    return %c0_i32, %c0_i32_0, %c0_i32_1 : i32, i32, i32
  }
  func.func @transform_4(%arg0: i32) -> (i32, i32) {
    %c0_i32 = arith.constant 0 : i32
    %c0_i32_0 = arith.constant 0 : i32
    %c0_i32_1 = arith.constant 0 : i32
    return %c0_i32, %c0_i32_0 : i32, i32
  }
  func.func @transform_5(%arg0: i32) -> (i32, i32) {
    %c0_i32 = arith.constant 0 : i32
    %c0_i32_0 = arith.constant 0 : i32
    %c0_i32_1 = arith.constant 0 : i32
    return %c0_i32, %c0_i32_0 : i32, i32
  }
  func.func @transform_6(%arg0: i32) -> (i32, i32) {
    %c0_i32 = arith.constant 0 : i32
    %c0_i32_0 = arith.constant 0 : i32
    %c0_i32_1 = arith.constant 0 : i32
    return %c0_i32, %c0_i32_0 : i32, i32
  }
  func.func @transform_7(%arg0: i32) -> (i32, i32) {
    %c0_i32 = arith.constant 0 : i32
    %c0_i32_0 = arith.constant 0 : i32
    %c0_i32_1 = arith.constant 0 : i32
    return %c0_i32, %c0_i32_0 : i32, i32
  }
  func.func @transform_8(%arg0: i32) -> (i32, i32) {
    %c0_i32 = arith.constant 0 : i32
    %c0_i32_0 = arith.constant 0 : i32
    %c0_i32_1 = arith.constant 0 : i32
    return %c0_i32, %c0_i32_0 : i32, i32
  }
  func.func @transform_9(%arg0: i32) -> (i32, i32) {
    %c0_i32 = arith.constant 0 : i32
    %c0_i32_0 = arith.constant 0 : i32
    %c0_i32_1 = arith.constant 0 : i32
    return %c0_i32, %c0_i32_0 : i32, i32
  }
  func.func @transform_10(%arg0: i32) -> (i32, i32) {
    %c0_i32 = arith.constant 0 : i32
    %c0_i32_0 = arith.constant 0 : i32
    %c0_i32_1 = arith.constant 0 : i32
    return %c0_i32, %c0_i32_0 : i32, i32
  }
  func.func @transform_11(%arg0: i32) -> (i32, i32) {
    %c0_i32 = arith.constant 0 : i32
    %c0_i32_0 = arith.constant 0 : i32
    %c0_i32_1 = arith.constant 0 : i32
    return %c0_i32, %c0_i32_0 : i32, i32
  }
  func.func @transform_12(%arg0: i32) -> (i32, i32, i32) {
    %c0_i32 = arith.constant 0 : i32
    %c0_i32_0 = arith.constant 0 : i32
    %c0_i32_1 = arith.constant 0 : i32
    %c0_i32_2 = arith.constant 0 : i32
    return %c0_i32, %c0_i32_0, %c0_i32_1 : i32, i32, i32
  }
}

</mosaic_0001>

<llo_original>
// kernel: seq2seq_forward.2
$region0: #{seq2seq_forward.2}
  #allocation0 [shape = 'u32[]', space=smem, size = 0x4, offset = 0x4, fixed_abs, tag = 'smem constant byte address 0x4 - core index']
  #allocation1 [shape = 'u32[144,128]{1,0:T(1,128)}', space=vmem, size = 0x12000, scoped, tag = 'internal scratch']
  %s0 = inlined_call_operand.vmem [shape: f32[2,8,8,128], index: 0, kind: input, shape index: {}]
  %s1 = inlined_call_operand.vmem [shape: f32[2,32,128], index: 1, kind: input, shape index: {}]
  %s2 = inlined_call_operand.vmem [shape: f32[2,8,8,32], index: 2, kind: output, shape index: {0}]
  %s3 = inlined_call_operand.vmem [shape: f32[2,8,32], index: 3, kind: output, shape index: {1}]
  %s4 = inlined_call_operand.vmem [shape: f32[2,8,32], index: 4, kind: output, shape index: {2}]
  %5 = xla_tuple %s2, %s3, %s4
  %s6 = sld [smem:[#allocation0]]
  $region57: #{seq2seq_forward.2} parent=0
    _
  %s8 = ssub.s32 1, %s6
  %s9 = scalar_select 0, %s8, %s6
  loop: start=0, step=1, limit=4
  $region2: #{seq2seq_forward.2} parent=0 // loop_pre_header
    _
  $region3: #{seq2seq_forward.2} parent=0 // loop_header
    %s11 = sphi 0, %s15
    %p12 = scmp.ge.s32.totalorder %s11, 4
    %s21 = sphi 0, %s23
    %s24 = sphi 0, %s21
    %s25 = sphi 0, %s24
    %s41 = sphi 0, %s25
    %s47 = sphi 0, %s49
    %s50 = sphi 0, %s47
    %s51 = sphi 0, %s50
    %s67 = sphi 0, %s51
    %s73 = sphi 0, %s75
    %s76 = sphi 0, %s73
    %s77 = sphi 0, %s76
    %s93 = sphi 0, %s77
    %s99 = sphi 0, %s101
    %s102 = sphi 0, %s99
    %s103 = sphi 0, %s102
    %s119 = sphi 0, %s103
    %s125 = sphi 0, %s127
    %s128 = sphi 0, %s125
    %s129 = sphi 0, %s128
    %s145 = sphi 0, %s129
  $region4: #{seq2seq_forward.2} parent=0 // loop_header_branch
    %14 = sbr.rel (%p12) target = $region8
  $region5: #{seq2seq_forward.2} parent=0 // loop_body
    %s16 = ssub.s32 %s11, 1
    %s17 = ssub.s32 %s11, 2
    %s18 = sadd.s32 %s11, 1
    %s19 = ssub.s32 %s11, %s18
    %p20 = scmp.eq.s32.totalorder %s19, 0
    %s22 = sadd.s32 %s21, 1
    %s23 = scalar_select %p20, %s21, %s22
    %p26 = pneg %p20
    %p27 = scmp.eq.s32.totalorder %s11, 1
    %p28 = por %p26, %p27
    %p29 = scmp.ne.s32.totalorder %s21, %s24
    %p30 = scmp.eq.s32.totalorder %s11, 0
    %p31 = por %p29, %p30
    %p32 = scmp.ne.s32.totalorder %s21, %s24
    %p33 = scmp.eq.s32.totalorder %s16, 1
    %p34 = por %p32, %p33
    %p35 = scmp.ne.s32.totalorder %s24, %s25
    %p36 = scmp.eq.s32.totalorder %s16, 0
    %p37 = por %p35, %p36
    %p38 = scmp.ne.s32.totalorder %s24, %s25
    %p39 = scmp.eq.s32.totalorder %s17, 1
    %p40 = por %p38, %p39
    %p42 = scmp.ne.s32.totalorder %s25, %s41
    %p43 = scmp.eq.s32.totalorder %s17, 0
    %p44 = por %p42, %p43
    %s45 = ssub.s32 %s11, %s18
    %p46 = scmp.eq.s32.totalorder %s45, 0
    %s48 = sadd.s32 %s47, 1
    %s49 = scalar_select %p46, %s47, %s48
    %p52 = pneg %p46
    %p53 = scmp.eq.s32.totalorder %s11, 1
    %p54 = por %p52, %p53
    %p55 = scmp.ne.s32.totalorder %s47, %s50
    %p56 = scmp.eq.s32.totalorder %s11, 0
    %p57 = por %p55, %p56
    %p58 = scmp.ne.s32.totalorder %s47, %s50
    %p59 = scmp.eq.s32.totalorder %s16, 1
    %p60 = por %p58, %p59
    %p61 = scmp.ne.s32.totalorder %s50, %s51
    %p62 = scmp.eq.s32.totalorder %s16, 0
    %p63 = por %p61, %p62
    %p64 = scmp.ne.s32.totalorder %s50, %s51
    %p65 = scmp.eq.s32.totalorder %s17, 1
    %p66 = por %p64, %p65
    %p68 = scmp.ne.s32.totalorder %s51, %s67
    %p69 = scmp.eq.s32.totalorder %s17, 0
    %p70 = por %p68, %p69
    %s71 = ssub.s32 %s11, %s18
    %p72 = scmp.eq.s32.totalorder %s71, 0
    %s74 = sadd.s32 %s73, 1
    %s75 = scalar_select %p72, %s73, %s74
    %p78 = pneg %p72
    %p79 = scmp.eq.s32.totalorder %s11, 1
    %p80 = por %p78, %p79
    %p81 = scmp.ne.s32.totalorder %s73, %s76
    %p82 = scmp.eq.s32.totalorder %s11, 0
    %p83 = por %p81, %p82
    %p84 = scmp.ne.s32.totalorder %s73, %s76
    %p85 = scmp.eq.s32.totalorder %s16, 1
    %p86 = por %p84, %p85
    %p87 = scmp.ne.s32.totalorder %s76, %s77
    %p88 = scmp.eq.s32.totalorder %s16, 0
    %p89 = por %p87, %p88
    %p90 = scmp.ne.s32.totalorder %s76, %s77
    %p91 = scmp.eq.s32.totalorder %s17, 1
    %p92 = por %p90, %p91
    %p94 = scmp.ne.s32.totalorder %s77, %s93
    %p95 = scmp.eq.s32.totalorder %s17, 0
    %p96 = por %p94, %p95
    %s97 = ssub.s32 %s11, %s18
    %p98 = scmp.eq.s32.totalorder %s97, 0
    %s100 = sadd.s32 %s99, 1
    %s101 = scalar_select %p98, %s99, %s100
    %p104 = pneg %p98
    %p105 = scmp.eq.s32.totalorder %s11, 1
    %p106 = por %p104, %p105
    %p107 = scmp.ne.s32.totalorder %s99, %s102
    %p108 = scmp.eq.s32.totalorder %s11, 0
    %p109 = por %p107, %p108
    %p110 = scmp.ne.s32.totalorder %s99, %s102
    %p111 = scmp.eq.s32.totalorder %s16, 1
    %p112 = por %p110, %p111
    %p113 = scmp.ne.s32.totalorder %s102, %s103
    %p114 = scmp.eq.s32.totalorder %s16, 0
    %p115 = por %p113, %p114
    %p116 = scmp.ne.s32.totalorder %s102, %s103
    %p117 = scmp.eq.s32.totalorder %s17, 1
    %p118 = por %p116, %p117
    %p120 = scmp.ne.s32.totalorder %s103, %s119
    %p121 = scmp.eq.s32.totalorder %s17, 0
    %p122 = por %p120, %p121
    %s123 = ssub.s32 %s11, %s18
    %p124 = scmp.eq.s32.totalorder %s123, 0
    %s126 = sadd.s32 %s125, 1
    %s127 = scalar_select %p124, %s125, %s126
    %p130 = pneg %p124
    %p131 = scmp.eq.s32.totalorder %s11, 1
    %p132 = por %p130, %p131
    %p133 = scmp.ne.s32.totalorder %s125, %s128
    %p134 = scmp.eq.s32.totalorder %s11, 0
    %p135 = por %p133, %p134
    %p136 = scmp.ne.s32.totalorder %s125, %s128
    %p137 = scmp.eq.s32.totalorder %s16, 1
    %p138 = por %p136, %p137
    %p139 = scmp.ne.s32.totalorder %s128, %s129
    %p140 = scmp.eq.s32.totalorder %s16, 0
    %p141 = por %p139, %p140
    %p142 = scmp.ne.s32.totalorder %s128, %s129
    %p143 = scmp.eq.s32.totalorder %s17, 1
    %p144 = por %p142, %p143
    %p146 = scmp.ne.s32.totalorder %s129, %s145
    %p147 = scmp.eq.s32.totalorder %s17, 0
    %p148 = por %p146, %p147
    %p149 = scmp.le.s32.totalorder 1, %s11
    %p150 = scmp.lt.s32.totalorder %s11, 3
    %p151 = pnand %p149, %p150
    %p152 = pneg %p151
    // Predicated region
    $region9: #{seq2seq_forward.2} parent=5 // pred_check
      _
    $region10: #{seq2seq_forward.2} parent=5 // pred_check_branch
      %154 = sbr.rel (%p151) target = $region12
    $region11: #{seq2seq_forward.2} parent=5 // pred_region
      %s155 = ssub.s32 %s11, 1
    $region12: #{seq2seq_forward.2} parent=5 // pred_fallthru
      _
    %p156 = scmp.lt.s32.totalorder %s11, 2
    // Predicated region
    $region13: #{seq2seq_forward.2} parent=5 // pred_check
      %p157 = pneg %p156
    $region14: #{seq2seq_forward.2} parent=5 // pred_check_branch
      %159 = sbr.rel (%p157) target = $region16
    $region15: #{seq2seq_forward.2} parent=5 // pred_region
      // Predicated region
      $region17: #{seq2seq_forward.2} parent=15 // pred_check
        %p160 = pneg %p31
      $region18: #{seq2seq_forward.2} parent=15 // pred_check_branch
        %162 = sbr.rel (%p160) target = $region20
      $region19: #{seq2seq_forward.2} parent=15 // pred_region
        %p163 = scmp.lt.s32.totalorder %s11, 1
        %s164 = scalar_select %p163, %s11, 1
        %s165 = smul.addr %s164, 8
        %s166 = smul.addr %s165, 8
        %s167 = scalar_lea.vmem %s0, %s166
      $region20: #{seq2seq_forward.2} parent=15 // pred_fallthru
        _
      // Predicated region
      $region21: #{seq2seq_forward.2} parent=15 // pred_check
        %p168 = pneg %p57
      $region22: #{seq2seq_forward.2} parent=15 // pred_check_branch
        %170 = sbr.rel (%p168) target = $region24
      $region23: #{seq2seq_forward.2} parent=15 // pred_region
        %p171 = scmp.lt.s32.totalorder %s11, 1
        %s172 = scalar_select %p171, %s11, 1
        %s173 = smul.addr %s172, 4
        %s174 = smul.addr %s173, 8
        %s175 = scalar_lea.vmem %s1, %s174
      $region24: #{seq2seq_forward.2} parent=15 // pred_fallthru
        _
    $region16: #{seq2seq_forward.2} parent=5 // pred_fallthru
      _
    %p176 = scmp.le.s32.totalorder 1, %s11
    %p177 = scmp.lt.s32.totalorder %s11, 3
    %p178 = pnand %p176, %p177
    %p179 = pneg %p178
    // Predicated region
    $region25: #{seq2seq_forward.2} parent=5 // pred_check
      _
    $region26: #{seq2seq_forward.2} parent=5 // pred_check_branch
      %181 = sbr.rel (%p178) target = $region28
    $region27: #{seq2seq_forward.2} parent=5 // pred_region
      %s182 = ssub.s32 %s11, 1
      %p183 = scmp.lt.s32.totalorder %s16, 1
      %s184 = scalar_select %p183, %s16, 1
      %s185 = smul.addr %s184, 8
      %s186 = smul.addr %s185, 8
      %s187 = scalar_lea.vmem %s0, %s186
      %p188 = pneg %p37
      %p189 = pneg %p34
      %p190 = scmp.lt.s32.totalorder %s16, 1
      %s191 = scalar_select %p190, %s16, 1
      %s192 = smul.addr %s191, 4
      %s193 = smul.addr %s192, 8
      %s194 = scalar_lea.vmem %s1, %s193
      %p195 = pneg %p63
      %p196 = pneg %p60
      %p197 = pneg %p89
      %p198 = pneg %p86
      %p199 = scmp.lt.s32.totalorder %s16, 1
      %s200 = scalar_select %p199, %s16, 1
      %s201 = smul.addr %s200, 8
      %s202 = smul.addr %s201, 8
      %s203 = scalar_lea.vmem %s2, %s202
      %p204 = pneg %p115
      %p205 = pneg %p112
      %p206 = scmp.lt.s32.totalorder %s16, 1
      %s207 = scalar_select %p206, %s16, 1
      %s208 = smul.addr %s207, 8
      %s209 = scalar_lea.vmem %s3, %s208
      %p210 = pneg %p141
      %p211 = pneg %p138
      %p212 = scmp.lt.s32.totalorder %s16, 1
      %s213 = scalar_select %p212, %s16, 1
      %s214 = smul.addr %s213, 8
      %s215 = scalar_lea.vmem %s4, %s214
      %p216 = scmp.lt.s32.totalorder %s16, 1
      %s217 = scalar_select %p216, %s16, 1
      %s218 = smul.addr %s217, 8
      %s219 = smul.addr %s218, 8
      %s220 = scalar_lea.vmem %s0, %s219
      %p221 = scmp.lt.s32.totalorder %s16, 1
      %s222 = scalar_select %p221, %s16, 1
      %s223 = smul.addr %s222, 4
      %s224 = smul.addr %s223, 8
      %s225 = scalar_lea.vmem %s1, %s224
      %p226 = scmp.lt.s32.totalorder %s16, 1
      %s227 = scalar_select %p226, %s16, 1
      %s228 = smul.addr %s227, 8
      %s229 = smul.addr %s228, 8
      %s230 = scalar_lea.vmem %s2, %s229
      %p231 = scmp.lt.s32.totalorder %s16, 1
      %s232 = scalar_select %p231, %s16, 1
      %s233 = smul.addr %s232, 8
      %s234 = scalar_lea.vmem %s3, %s233
      %p235 = scmp.lt.s32.totalorder %s16, 1
      %s236 = scalar_select %p235, %s16, 1
      %s237 = smul.addr %s236, 8
      %s238 = scalar_lea.vmem %s4, %s237
      %v239 = vld [vmem:[%s225] sm:$0xff]
      %v240 = vld [vmem:[%s225 + $0x8] sm:$0xff]
      %v241 = vld [vmem:[%s225 + $0x10] sm:$0xff]
      %v242 = vld [vmem:[%s225 + $0x18] sm:$0xff]
      %p243 = scmp.eq.s32.totalorder %s16, 0
      %s244 = scalar_select %p243, 0, 7
      %s245 = smul.u32 %s244, 8
      %s246 = scalar_lea.vmem %s220, %s245
      %v247 = vld [vmem:[%s246] sm:$0xff]
      %vm248 = vcmask 261120
      %v250 = vsel %vm248, 0.0, 0
      %252 = vmatprep.subr.mxu0 0.0
      %253 = vmatpush1.msra.mxu0 0.0
      %254 = vmatprep.subr.mxu0 0.0
      %255 = vmatpush1.msra.mxu0 0.0
      %256 = vmatprep.subr.mxu0 0.0
      %257 = vmatpush1.msra.mxu0 0.0
      %258 = vmatprep.subr.mxu0 0.0
      %259 = vmatpush1.msra.mxu0 0.0
      %260 = vmatprep.subr.mxu0 0.0
      %261 = vmatpush1.msra.mxu0 0.0
      %262 = vmatprep.subr.mxu0 0.0
      %263 = vmatpush1.msra.mxu0 0.0
      %264 = vmatprep.subr.mxu0 0.0
      %265 = vmatpush1.msra.mxu0 0.0
      %266 = vmatprep.subr.mxu0 0.0
      %267 = vmatpush1.msra.mxu0 0.0
      %268 = vmatprep.subr.mxu0 0.0
      %269 = vmatpush1.msra.mxu0 0.0
      %270 = vmatprep.subr.mxu0 0.0
      %271 = vmatpush1.msra.mxu0 0.0
      %272 = vmatprep.subr.mxu0 0.0
      %273 = vmatpush1.msra.mxu0 0.0
      %274 = vmatprep.subr.mxu0 0.0
      %275 = vmatpush1.msra.mxu0 0.0
      %276 = vmatprep.subr.mxu0 0.0
      %277 = vmatpush1.msra.mxu0 %v242
      %278 = vmatprep.subr.mxu0 0.0
      %279 = vmatpush1.msra.mxu0 %v241
      %280 = vmatprep.subr.mxu0 0.0
      %281 = vmatpush1.msra.mxu0 %v240
      %282 = vmatprep.subr.mxu0 0.0
      %283 = vmatpush1.msra.mxu0 %v239
      %284 = vmatprep.subr.mxu0 0.0
      %285 = vmatpush2.msra.mxu0 0.0
      %286 = vmatprep.subr.mxu0 0.0
      %287 = vmatpush2.msra.mxu0 0.0
      %288 = vmatprep.subr.mxu0 0.0
      %289 = vmatpush2.msra.mxu0 0.0
      %290 = vmatprep.subr.mxu0 0.0
      %291 = vmatpush2.msra.mxu0 0.0
      %292 = vmatprep.subr.mxu0 0.0
      %293 = vmatpush2.msra.mxu0 0.0
      %294 = vmatprep.subr.mxu0 0.0
      %295 = vmatpush2.msra.mxu0 0.0
      %296 = vmatprep.subr.mxu0 0.0
      %297 = vmatpush2.msra.mxu0 0.0
      %298 = vmatprep.subr.mxu0 0.0
      %299 = vmatpush2.msra.mxu0 0.0
      %300 = vmatprep.subr.mxu0 0.0
      %301 = vmatpush2.msra.mxu0 0.0
      %302 = vmatprep.subr.mxu0 0.0
      %303 = vmatpush2.msra.mxu0 0.0
      %304 = vmatprep.subr.mxu0 0.0
      %305 = vmatpush2.msra.mxu0 0.0
      %306 = vmatprep.subr.mxu0 0.0
      %307 = vmatpush2.msra.mxu0 0.0
      %308 = vmatprep.subr.mxu0 0.0
      %309 = vmatpush2.msra.mxu0 0.0
      %310 = vmatprep.subr.mxu0 0.0
      %311 = vmatpush2.msra.mxu0 0.0
      %312 = vmatprep.subr.mxu0 0.0
      %313 = vmatpush2.msra.mxu0 0.0
      %314 = vmatprep.subr.mxu0 0.0
      %315 = vmatpush2.msra.mxu0 0.0
      %316 = vmatprep.mubr.f32.mxu0 0.0
      %317 = vmatmul.mubr.f32.gmra.mxu0 %v250
      %v318 = vpop.f32.mrf.mxu0
      %v319 = vadd.f32 0.0, %v318
      %v320 = vpop.f32.mrf.mxu0
      %321 = vdwg.mxu0
      %v322 = vadd.f32 %v247, %v319
      %v323 = vxor.u32 %v322, 2147483648
      %v324 = vmul.f32 %v323, 1.442695
      %v325 = vpow.pop %v324
      %v326 = vadd.f32 %v325, 1.0
      %v327 = vrcp.pop %v326
      %v328 = vmul.f32 1.0, %v327
      %v329 = vtanh.pop %v322
      %v330 = vmul.f32 %v328, 0.0
      %332 = vrot.lane.b32.xlu0 %v329, 64
      %v333 = vpop.permute.xlu0 %332
      %v335 = vmul.f32 %v328, %v333
      %337 = vrot.lane.b32.xlu0 %v335, 32
      %v338 = vpop.permute.xlu0 %337
      %v340 = vadd.f32 %v330, %v338
      %v341 = vtanh.pop %v340
      %343 = vrot.lane.b32.xlu0 %v341, 64
      %v344 = vpop.permute.xlu0 %343
      %v346 = vmul.f32 %v328, %v344
      %348 = vrot.lane.b32.xlu0 %v346, 32
      %v349 = vpop.permute.xlu0 %348
      %s351 = scalar_lea.vmem %s230, %s245
      %352 = vst.msk [vmem:[%s351] sm:$0xff] %vm248, %v349
      %s353 = scalar_select %p243, 1, 6
      %s354 = smul.u32 %s353, 8
      %s355 = scalar_lea.vmem %s220, %s354
      %v356 = vld [vmem:[%s355] sm:$0xff]
      %v357 = vsel %vm248, %v349, 0
      %359 = vmatprep.subr.mxu0 0.0
      %360 = vmatpush1.msra.mxu0 0.0
      %361 = vmatprep.subr.mxu0 0.0
      %362 = vmatpush1.msra.mxu0 0.0
      %363 = vmatprep.subr.mxu0 0.0
      %364 = vmatpush1.msra.mxu0 0.0
      %365 = vmatprep.subr.mxu0 0.0
      %366 = vmatpush1.msra.mxu0 0.0
      %367 = vmatprep.subr.mxu0 0.0
      %368 = vmatpush1.msra.mxu0 0.0
      %369 = vmatprep.subr.mxu0 0.0
      %370 = vmatpush1.msra.mxu0 0.0
      %371 = vmatprep.subr.mxu0 0.0
      %372 = vmatpush1.msra.mxu0 0.0
      %373 = vmatprep.subr.mxu0 0.0
      %374 = vmatpush1.msra.mxu0 0.0
      %375 = vmatprep.subr.mxu0 0.0
      %376 = vmatpush1.msra.mxu0 0.0
      %377 = vmatprep.subr.mxu0 0.0
      %378 = vmatpush1.msra.mxu0 0.0
      %379 = vmatprep.subr.mxu0 0.0
      %380 = vmatpush1.msra.mxu0 0.0
      %381 = vmatprep.subr.mxu0 0.0
      %382 = vmatpush1.msra.mxu0 0.0
      %383 = vmatprep.subr.mxu0 0.0
      %384 = vmatpush1.msra.mxu0 %v242
      %385 = vmatprep.subr.mxu0 0.0
      %386 = vmatpush1.msra.mxu0 %v241
      %387 = vmatprep.subr.mxu0 0.0
      %388 = vmatpush1.msra.mxu0 %v240
      %389 = vmatprep.subr.mxu0 0.0
      %390 = vmatpush1.msra.mxu0 %v239
      %391 = vmatprep.subr.mxu0 0.0
      %392 = vmatpush2.msra.mxu0 0.0
      %393 = vmatprep.subr.mxu0 0.0
      %394 = vmatpush2.msra.mxu0 0.0
      %395 = vmatprep.subr.mxu0 0.0
      %396 = vmatpush2.msra.mxu0 0.0
      %397 = vmatprep.subr.mxu0 0.0
      %398 = vmatpush2.msra.mxu0 0.0
      %399 = vmatprep.subr.mxu0 0.0
      %400 = vmatpush2.msra.mxu0 0.0
      %401 = vmatprep.subr.mxu0 0.0
      %402 = vmatpush2.msra.mxu0 0.0
      %403 = vmatprep.subr.mxu0 0.0
      %404 = vmatpush2.msra.mxu0 0.0
      %405 = vmatprep.subr.mxu0 0.0
      %406 = vmatpush2.msra.mxu0 0.0
      %407 = vmatprep.subr.mxu0 0.0
      %408 = vmatpush2.msra.mxu0 0.0
      %409 = vmatprep.subr.mxu0 0.0
      %410 = vmatpush2.msra.mxu0 0.0
      %411 = vmatprep.subr.mxu0 0.0
      %412 = vmatpush2.msra.mxu0 0.0
      %413 = vmatprep.subr.mxu0 0.0
      %414 = vmatpush2.msra.mxu0 0.0
      %415 = vmatprep.subr.mxu0 0.0
      %416 = vmatpush2.msra.mxu0 0.0
      %417 = vmatprep.subr.mxu0 0.0
      %418 = vmatpush2.msra.mxu0 0.0
      %419 = vmatprep.subr.mxu0 0.0
      %420 = vmatpush2.msra.mxu0 0.0
      %421 = vmatprep.subr.mxu0 0.0
      %422 = vmatpush2.msra.mxu0 0.0
      %423 = vmatprep.mubr.f32.mxu0 0.0
      %424 = vmatmul.mubr.f32.gmra.mxu0 %v357
      %v425 = vpop.f32.mrf.mxu0
      %v426 = vadd.f32 0.0, %v425
      %v427 = vpop.f32.mrf.mxu0
      %428 = vdwg.mxu0
      %v429 = vadd.f32 %v356, %v426
      %v430 = vxor.u32 %v429, 2147483648
      %v431 = vmul.f32 %v430, 1.442695
      %v432 = vpow.pop %v431
      %v433 = vadd.f32 %v432, 1.0
      %v434 = vrcp.pop %v433
      %v435 = vmul.f32 1.0, %v434
      %v436 = vtanh.pop %v429
      %v437 = vmul.f32 %v435, %v340
      %439 = vrot.lane.b32.xlu0 %v436, 64
      %v440 = vpop.permute.xlu0 %439
      %v442 = vmul.f32 %v435, %v440
      %444 = vrot.lane.b32.xlu0 %v442, 32
      %v445 = vpop.permute.xlu0 %444
      %v447 = vadd.f32 %v437, %v445
      %v448 = vtanh.pop %v447
      %450 = vrot.lane.b32.xlu0 %v448, 64
      %v451 = vpop.permute.xlu0 %450
      %v453 = vmul.f32 %v435, %v451
      %455 = vrot.lane.b32.xlu0 %v453, 32
      %v456 = vpop.permute.xlu0 %455
      %s458 = scalar_lea.vmem %s230, %s354
      %459 = vst.msk [vmem:[%s458] sm:$0xff] %vm248, %v456
      %s460 = scalar_select %p243, 2, 5
      %s461 = smul.u32 %s460, 8
      %s462 = scalar_lea.vmem %s220, %s461
      %v463 = vld [vmem:[%s462] sm:$0xff]
      %v464 = vsel %vm248, %v456, 0
      %466 = vmatprep.subr.mxu0 0.0
      %467 = vmatpush1.msra.mxu0 0.0
      %468 = vmatprep.subr.mxu0 0.0
      %469 = vmatpush1.msra.mxu0 0.0
      %470 = vmatprep.subr.mxu0 0.0
      %471 = vmatpush1.msra.mxu0 0.0
      %472 = vmatprep.subr.mxu0 0.0
      %473 = vmatpush1.msra.mxu0 0.0
      %474 = vmatprep.subr.mxu0 0.0
      %475 = vmatpush1.msra.mxu0 0.0
      %476 = vmatprep.subr.mxu0 0.0
      %477 = vmatpush1.msra.mxu0 0.0
      %478 = vmatprep.subr.mxu0 0.0
      %479 = vmatpush1.msra.mxu0 0.0
      %480 = vmatprep.subr.mxu0 0.0
      %481 = vmatpush1.msra.mxu0 0.0
      %482 = vmatprep.subr.mxu0 0.0
      %483 = vmatpush1.msra.mxu0 0.0
      %484 = vmatprep.subr.mxu0 0.0
      %485 = vmatpush1.msra.mxu0 0.0
      %486 = vmatprep.subr.mxu0 0.0
      %487 = vmatpush1.msra.mxu0 0.0
      %488 = vmatprep.subr.mxu0 0.0
      %489 = vmatpush1.msra.mxu0 0.0
      %490 = vmatprep.subr.mxu0 0.0
      %491 = vmatpush1.msra.mxu0 %v242
      %492 = vmatprep.subr.mxu0 0.0
      %493 = vmatpush1.msra.mxu0 %v241
      %494 = vmatprep.subr.mxu0 0.0
      %495 = vmatpush1.msra.mxu0 %v240
      %496 = vmatprep.subr.mxu0 0.0
      %497 = vmatpush1.msra.mxu0 %v239
      %498 = vmatprep.subr.mxu0 0.0
      %499 = vmatpush2.msra.mxu0 0.0
      %500 = vmatprep.subr.mxu0 0.0
      %501 = vmatpush2.msra.mxu0 0.0
      %502 = vmatprep.subr.mxu0 0.0
      %503 = vmatpush2.msra.mxu0 0.0
      %504 = vmatprep.subr.mxu0 0.0
      %505 = vmatpush2.msra.mxu0 0.0
      %506 = vmatprep.subr.mxu0 0.0
      %507 = vmatpush2.msra.mxu0 0.0
      %508 = vmatprep.subr.mxu0 0.0
      %509 = vmatpush2.msra.mxu0 0.0
      %510 = vmatprep.subr.mxu0 0.0
      %511 = vmatpush2.msra.mxu0 0.0
      %512 = vmatprep.subr.mxu0 0.0
      %513 = vmatpush2.msra.mxu0 0.0
      %514 = vmatprep.subr.mxu0 0.0
      %515 = vmatpush2.msra.mxu0 0.0
      %516 = vmatprep.subr.mxu0 0.0
      %517 = vmatpush2.msra.mxu0 0.0
      %518 = vmatprep.subr.mxu0 0.0
      %519 = vmatpush2.msra.mxu0 0.0
      %520 = vmatprep.subr.mxu0 0.0
      %521 = vmatpush2.msra.mxu0 0.0
      %522 = vmatprep.subr.mxu0 0.0
      %523 = vmatpush2.msra.mxu0 0.0
      %524 = vmatprep.subr.mxu0 0.0
      %525 = vmatpush2.msra.mxu0 0.0
      %526 = vmatprep.subr.mxu0 0.0
      %527 = vmatpush2.msra.mxu0 0.0
      %528 = vmatprep.subr.mxu0 0.0
      %529 = vmatpush2.msra.mxu0 0.0
      %530 = vmatprep.mubr.f32.mxu0 0.0
      %531 = vmatmul.mubr.f32.gmra.mxu0 %v464
      %v532 = vpop.f32.mrf.mxu0
      %v533 = vadd.f32 0.0, %v532
      %v534 = vpop.f32.mrf.mxu0
      %535 = vdwg.mxu0
      %v536 = vadd.f32 %v463, %v533
      %v537 = vxor.u32 %v536, 2147483648
      %v538 = vmul.f32 %v537, 1.442695
      %v539 = vpow.pop %v538
      %v540 = vadd.f32 %v539, 1.0
      %v541 = vrcp.pop %v540
      %v542 = vmul.f32 1.0, %v541
      %v543 = vtanh.pop %v536
      %v544 = vmul.f32 %v542, %v447
      %546 = vrot.lane.b32.xlu0 %v543, 64
      %v547 = vpop.permute.xlu0 %546
      %v549 = vmul.f32 %v542, %v547
      %551 = vrot.lane.b32.xlu0 %v549, 32
      %v552 = vpop.permute.xlu0 %551
      %v554 = vadd.f32 %v544, %v552
      %v555 = vtanh.pop %v554
      %557 = vrot.lane.b32.xlu0 %v555, 64
      %v558 = vpop.permute.xlu0 %557
      %v560 = vmul.f32 %v542, %v558
      %562 = vrot.lane.b32.xlu0 %v560, 32
      %v563 = vpop.permute.xlu0 %562
      %s565 = scalar_lea.vmem %s230, %s461
      %566 = vst.msk [vmem:[%s565] sm:$0xff] %vm248, %v563
      %s567 = scalar_select %p243, 3, 4
      %s568 = smul.u32 %s567, 8
      %s569 = scalar_lea.vmem %s220, %s568
      %v570 = vld [vmem:[%s569] sm:$0xff]
      %v571 = vsel %vm248, %v563, 0
      %573 = vmatprep.subr.mxu0 0.0
      %574 = vmatpush1.msra.mxu0 0.0
      %575 = vmatprep.subr.mxu0 0.0
      %576 = vmatpush1.msra.mxu0 0.0
      %577 = vmatprep.subr.mxu0 0.0
      %578 = vmatpush1.msra.mxu0 0.0
      %579 = vmatprep.subr.mxu0 0.0
      %580 = vmatpush1.msra.mxu0 0.0
      %581 = vmatprep.subr.mxu0 0.0
      %582 = vmatpush1.msra.mxu0 0.0
      %583 = vmatprep.subr.mxu0 0.0
      %584 = vmatpush1.msra.mxu0 0.0
      %585 = vmatprep.subr.mxu0 0.0
      %586 = vmatpush1.msra.mxu0 0.0
      %587 = vmatprep.subr.mxu0 0.0
      %588 = vmatpush1.msra.mxu0 0.0
      %589 = vmatprep.subr.mxu0 0.0
      %590 = vmatpush1.msra.mxu0 0.0
      %591 = vmatprep.subr.mxu0 0.0
      %592 = vmatpush1.msra.mxu0 0.0
      %593 = vmatprep.subr.mxu0 0.0
      %594 = vmatpush1.msra.mxu0 0.0
      %595 = vmatprep.subr.mxu0 0.0
      %596 = vmatpush1.msra.mxu0 0.0
      %597 = vmatprep.subr.mxu0 0.0
      %598 = vmatpush1.msra.mxu0 %v242
      %599 = vmatprep.subr.mxu0 0.0
      %600 = vmatpush1.msra.mxu0 %v241
      %601 = vmatprep.subr.mxu0 0.0
      %602 = vmatpush1.msra.mxu0 %v240
      %603 = vmatprep.subr.mxu0 0.0
      %604 = vmatpush1.msra.mxu0 %v239
      %605 = vmatprep.subr.mxu0 0.0
      %606 = vmatpush2.msra.mxu0 0.0
      %607 = vmatprep.subr.mxu0 0.0
      %608 = vmatpush2.msra.mxu0 0.0
      %609 = vmatprep.subr.mxu0 0.0
      %610 = vmatpush2.msra.mxu0 0.0
      %611 = vmatprep.subr.mxu0 0.0
      %612 = vmatpush2.msra.mxu0 0.0
      %613 = vmatprep.subr.mxu0 0.0
      %614 = vmatpush2.msra.mxu0 0.0
      %615 = vmatprep.subr.mxu0 0.0
      %616 = vmatpush2.msra.mxu0 0.0
      %617 = vmatprep.subr.mxu0 0.0
      %618 = vmatpush2.msra.mxu0 0.0
      %619 = vmatprep.subr.mxu0 0.0
      %620 = vmatpush2.msra.mxu0 0.0
      %621 = vmatprep.subr.mxu0 0.0
      %622 = vmatpush2.msra.mxu0 0.0
      %623 = vmatprep.subr.mxu0 0.0
      %624 = vmatpush2.msra.mxu0 0.0
      %625 = vmatprep.subr.mxu0 0.0
      %626 = vmatpush2.msra.mxu0 0.0
      %627 = vmatprep.subr.mxu0 0.0
      %628 = vmatpush2.msra.mxu0 0.0
      %629 = vmatprep.subr.mxu0 0.0
      %630 = vmatpush2.msra.mxu0 0.0
      %631 = vmatprep.subr.mxu0 0.0
      %632 = vmatpush2.msra.mxu0 0.0
      %633 = vmatprep.subr.mxu0 0.0
      %634 = vmatpush2.msra.mxu0 0.0
      %635 = vmatprep.subr.mxu0 0.0
      %636 = vmatpush2.msra.mxu0 0.0
      %637 = vmatprep.mubr.f32.mxu0 0.0
      %638 = vmatmul.mubr.f32.gmra.mxu0 %v571
      %v639 = vpop.f32.mrf.mxu0
      %v640 = vadd.f32 0.0, %v639
      %v641 = vpop.f32.mrf.mxu0
      %642 = vdwg.mxu0
      %v643 = vadd.f32 %v570, %v640
      %v644 = vxor.u32 %v643, 2147483648
      %v645 = vmul.f32 %v644, 1.442695
      %v646 = vpow.pop %v645
      %v647 = vadd.f32 %v646, 1.0
      %v648 = vrcp.pop %v647
      %v649 = vmul.f32 1.0, %v648
      %v650 = vtanh.pop %v643
      %v651 = vmul.f32 %v649, %v554
      %653 = vrot.lane.b32.xlu0 %v650, 64
      %v654 = vpop.permute.xlu0 %653
      %v656 = vmul.f32 %v649, %v654
      %658 = vrot.lane.b32.xlu0 %v656, 32
      %v659 = vpop.permute.xlu0 %658
      %v661 = vadd.f32 %v651, %v659
      %v662 = vtanh.pop %v661
      %664 = vrot.lane.b32.xlu0 %v662, 64
      %v665 = vpop.permute.xlu0 %664
      %v667 = vmul.f32 %v649, %v665
      %669 = vrot.lane.b32.xlu0 %v667, 32
      %v670 = vpop.permute.xlu0 %669
      %s672 = scalar_lea.vmem %s230, %s568
      %673 = vst.msk [vmem:[%s672] sm:$0xff] %vm248, %v670
      %s674 = scalar_select %p243, 4, 3
      %s675 = smul.u32 %s674, 8
      %s676 = scalar_lea.vmem %s220, %s675
      %v677 = vld [vmem:[%s676] sm:$0xff]
      %v678 = vsel %vm248, %v670, 0
      %680 = vmatprep.subr.mxu0 0.0
      %681 = vmatpush1.msra.mxu0 0.0
      %682 = vmatprep.subr.mxu0 0.0
      %683 = vmatpush1.msra.mxu0 0.0
      %684 = vmatprep.subr.mxu0 0.0
      %685 = vmatpush1.msra.mxu0 0.0
      %686 = vmatprep.subr.mxu0 0.0
      %687 = vmatpush1.msra.mxu0 0.0
      %688 = vmatprep.subr.mxu0 0.0
      %689 = vmatpush1.msra.mxu0 0.0
      %690 = vmatprep.subr.mxu0 0.0
      %691 = vmatpush1.msra.mxu0 0.0
      %692 = vmatprep.subr.mxu0 0.0
      %693 = vmatpush1.msra.mxu0 0.0
      %694 = vmatprep.subr.mxu0 0.0
      %695 = vmatpush1.msra.mxu0 0.0
      %696 = vmatprep.subr.mxu0 0.0
      %697 = vmatpush1.msra.mxu0 0.0
      %698 = vmatprep.subr.mxu0 0.0
      %699 = vmatpush1.msra.mxu0 0.0
      %700 = vmatprep.subr.mxu0 0.0
      %701 = vmatpush1.msra.mxu0 0.0
      %702 = vmatprep.subr.mxu0 0.0
      %703 = vmatpush1.msra.mxu0 0.0
      %704 = vmatprep.subr.mxu0 0.0
      %705 = vmatpush1.msra.mxu0 %v242
      %706 = vmatprep.subr.mxu0 0.0
      %707 = vmatpush1.msra.mxu0 %v241
      %708 = vmatprep.subr.mxu0 0.0
      %709 = vmatpush1.msra.mxu0 %v240
      %710 = vmatprep.subr.mxu0 0.0
      %711 = vmatpush1.msra.mxu0 %v239
      %712 = vmatprep.subr.mxu0 0.0
      %713 = vmatpush2.msra.mxu0 0.0
      %714 = vmatprep.subr.mxu0 0.0
      %715 = vmatpush2.msra.mxu0 0.0
      %716 = vmatprep.subr.mxu0 0.0
      %717 = vmatpush2.msra.mxu0 0.0
      %718 = vmatprep.subr.mxu0 0.0
      %719 = vmatpush2.msra.mxu0 0.0
      %720 = vmatprep.subr.mxu0 0.0
      %721 = vmatpush2.msra.mxu0 0.0
      %722 = vmatprep.subr.mxu0 0.0
      %723 = vmatpush2.msra.mxu0 0.0
      %724 = vmatprep.subr.mxu0 0.0
      %725 = vmatpush2.msra.mxu0 0.0
      %726 = vmatprep.subr.mxu0 0.0
      %727 = vmatpush2.msra.mxu0 0.0
      %728 = vmatprep.subr.mxu0 0.0
      %729 = vmatpush2.msra.mxu0 0.0
      %730 = vmatprep.subr.mxu0 0.0
      %731 = vmatpush2.msra.mxu0 0.0
      %732 = vmatprep.subr.mxu0 0.0
      %733 = vmatpush2.msra.mxu0 0.0
      %734 = vmatprep.subr.mxu0 0.0
      %735 = vmatpush2.msra.mxu0 0.0
      %736 = vmatprep.subr.mxu0 0.0
      %737 = vmatpush2.msra.mxu0 0.0
      %738 = vmatprep.subr.mxu0 0.0
      %739 = vmatpush2.msra.mxu0 0.0
      %740 = vmatprep.subr.mxu0 0.0
      %741 = vmatpush2.msra.mxu0 0.0
      %742 = vmatprep.subr.mxu0 0.0
      %743 = vmatpush2.msra.mxu0 0.0
      %744 = vmatprep.mubr.f32.mxu0 0.0
      %745 = vmatmul.mubr.f32.gmra.mxu0 %v678
      %v746 = vpop.f32.mrf.mxu0
      %v747 = vadd.f32 0.0, %v746
      %v748 = vpop.f32.mrf.mxu0
      %749 = vdwg.mxu0
      %v750 = vadd.f32 %v677, %v747
      %v751 = vxor.u32 %v750, 2147483648
      %v752 = vmul.f32 %v751, 1.442695
      %v753 = vpow.pop %v752
      %v754 = vadd.f32 %v753, 1.0
      %v755 = vrcp.pop %v754
      %v756 = vmul.f32 1.0, %v755
      %v757 = vtanh.pop %v750
      %v758 = vmul.f32 %v756, %v661
      %760 = vrot.lane.b32.xlu0 %v757, 64
      %v761 = vpop.permute.xlu0 %760
      %v763 = vmul.f32 %v756, %v761
      %765 = vrot.lane.b32.xlu0 %v763, 32
      %v766 = vpop.permute.xlu0 %765
      %v768 = vadd.f32 %v758, %v766
      %v769 = vtanh.pop %v768
      %771 = vrot.lane.b32.xlu0 %v769, 64
      %v772 = vpop.permute.xlu0 %771
      %v774 = vmul.f32 %v756, %v772
      %776 = vrot.lane.b32.xlu0 %v774, 32
      %v777 = vpop.permute.xlu0 %776
      %s779 = scalar_lea.vmem %s230, %s675
      %780 = vst.msk [vmem:[%s779] sm:$0xff] %vm248, %v777
      %s781 = scalar_select %p243, 5, 2
      %s782 = smul.u32 %s781, 8
      %s783 = scalar_lea.vmem %s220, %s782
      %v784 = vld [vmem:[%s783] sm:$0xff]
      %v785 = vsel %vm248, %v777, 0
      %787 = vmatprep.subr.mxu0 0.0
      %788 = vmatpush1.msra.mxu0 0.0
      %789 = vmatprep.subr.mxu0 0.0
      %790 = vmatpush1.msra.mxu0 0.0
      %791 = vmatprep.subr.mxu0 0.0
      %792 = vmatpush1.msra.mxu0 0.0
      %793 = vmatprep.subr.mxu0 0.0
      %794 = vmatpush1.msra.mxu0 0.0
      %795 = vmatprep.subr.mxu0 0.0
      %796 = vmatpush1.msra.mxu0 0.0
      %797 = vmatprep.subr.mxu0 0.0
      %798 = vmatpush1.msra.mxu0 0.0
      %799 = vmatprep.subr.mxu0 0.0
      %800 = vmatpush1.msra.mxu0 0.0
      %801 = vmatprep.subr.mxu0 0.0
      %802 = vmatpush1.msra.mxu0 0.0
      %803 = vmatprep.subr.mxu0 0.0
      %804 = vmatpush1.msra.mxu0 0.0
      %805 = vmatprep.subr.mxu0 0.0
      %806 = vmatpush1.msra.mxu0 0.0
      %807 = vmatprep.subr.mxu0 0.0
      %808 = vmatpush1.msra.mxu0 0.0
      %809 = vmatprep.subr.mxu0 0.0
      %810 = vmatpush1.msra.mxu0 0.0
      %811 = vmatprep.subr.mxu0 0.0
      %812 = vmatpush1.msra.mxu0 %v242
      %813 = vmatprep.subr.mxu0 0.0
      %814 = vmatpush1.msra.mxu0 %v241
      %815 = vmatprep.subr.mxu0 0.0
      %816 = vmatpush1.msra.mxu0 %v240
      %817 = vmatprep.subr.mxu0 0.0
      %818 = vmatpush1.msra.mxu0 %v239
      %819 = vmatprep.subr.mxu0 0.0
      %820 = vmatpush2.msra.mxu0 0.0
      %821 = vmatprep.subr.mxu0 0.0
      %822 = vmatpush2.msra.mxu0 0.0
      %823 = vmatprep.subr.mxu0 0.0
      %824 = vmatpush2.msra.mxu0 0.0
      %825 = vmatprep.subr.mxu0 0.0
      %826 = vmatpush2.msra.mxu0 0.0
      %827 = vmatprep.subr.mxu0 0.0
      %828 = vmatpush2.msra.mxu0 0.0
      %829 = vmatprep.subr.mxu0 0.0
      %830 = vmatpush2.msra.mxu0 0.0
      %831 = vmatprep.subr.mxu0 0.0
      %832 = vmatpush2.msra.mxu0 0.0
      %833 = vmatprep.subr.mxu0 0.0
      %834 = vmatpush2.msra.mxu0 0.0
      %835 = vmatprep.subr.mxu0 0.0
      %836 = vmatpush2.msra.mxu0 0.0
      %837 = vmatprep.subr.mxu0 0.0
      %838 = vmatpush2.msra.mxu0 0.0
      %839 = vmatprep.subr.mxu0 0.0
      %840 = vmatpush2.msra.mxu0 0.0
      %841 = vmatprep.subr.mxu0 0.0
      %842 = vmatpush2.msra.mxu0 0.0
      %843 = vmatprep.subr.mxu0 0.0
      %844 = vmatpush2.msra.mxu0 0.0
      %845 = vmatprep.subr.mxu0 0.0
      %846 = vmatpush2.msra.mxu0 0.0
      %847 = vmatprep.subr.mxu0 0.0
      %848 = vmatpush2.msra.mxu0 0.0
      %849 = vmatprep.subr.mxu0 0.0
      %850 = vmatpush2.msra.mxu0 0.0
      %851 = vmatprep.mubr.f32.mxu0 0.0
      %852 = vmatmul.mubr.f32.gmra.mxu0 %v785
      %v853 = vpop.f32.mrf.mxu0
      %v854 = vadd.f32 0.0, %v853
      %v855 = vpop.f32.mrf.mxu0
      %856 = vdwg.mxu0
      %v857 = vadd.f32 %v784, %v854
      %v858 = vxor.u32 %v857, 2147483648
      %v859 = vmul.f32 %v858, 1.442695
      %v860 = vpow.pop %v859
      %v861 = vadd.f32 %v860, 1.0
      %v862 = vrcp.pop %v861
      %v863 = vmul.f32 1.0, %v862
      %v864 = vtanh.pop %v857
      %v865 = vmul.f32 %v863, %v768
      %867 = vrot.lane.b32.xlu0 %v864, 64
      %v868 = vpop.permute.xlu0 %867
      %v870 = vmul.f32 %v863, %v868
      %872 = vrot.lane.b32.xlu0 %v870, 32
      %v873 = vpop.permute.xlu0 %872
      %v875 = vadd.f32 %v865, %v873
      %v876 = vtanh.pop %v875
      %878 = vrot.lane.b32.xlu0 %v876, 64
      %v879 = vpop.permute.xlu0 %878
      %v881 = vmul.f32 %v863, %v879
      %883 = vrot.lane.b32.xlu0 %v881, 32
      %v884 = vpop.permute.xlu0 %883
      %s886 = scalar_lea.vmem %s230, %s782
      %887 = vst.msk [vmem:[%s886] sm:$0xff] %vm248, %v884
      %s888 = scalar_select %p243, 6, 1
      %s889 = smul.u32 %s888, 8
      %s890 = scalar_lea.vmem %s220, %s889
      %v891 = vld [vmem:[%s890] sm:$0xff]
      %v892 = vsel %vm248, %v884, 0
      %894 = vmatprep.subr.mxu0 0.0
      %895 = vmatpush1.msra.mxu0 0.0
      %896 = vmatprep.subr.mxu0 0.0
      %897 = vmatpush1.msra.mxu0 0.0
      %898 = vmatprep.subr.mxu0 0.0
      %899 = vmatpush1.msra.mxu0 0.0
      %900 = vmatprep.subr.mxu0 0.0
      %901 = vmatpush1.msra.mxu0 0.0
      %902 = vmatprep.subr.mxu0 0.0
      %903 = vmatpush1.msra.mxu0 0.0
      %904 = vmatprep.subr.mxu0 0.0
      %905 = vmatpush1.msra.mxu0 0.0
      %906 = vmatprep.subr.mxu0 0.0
      %907 = vmatpush1.msra.mxu0 0.0
      %908 = vmatprep.subr.mxu0 0.0
      %909 = vmatpush1.msra.mxu0 0.0
      %910 = vmatprep.subr.mxu0 0.0
      %911 = vmatpush1.msra.mxu0 0.0
      %912 = vmatprep.subr.mxu0 0.0
      %913 = vmatpush1.msra.mxu0 0.0
      %914 = vmatprep.subr.mxu0 0.0
      %915 = vmatpush1.msra.mxu0 0.0
      %916 = vmatprep.subr.mxu0 0.0
      %917 = vmatpush1.msra.mxu0 0.0
      %918 = vmatprep.subr.mxu0 0.0
      %919 = vmatpush1.msra.mxu0 %v242
      %920 = vmatprep.subr.mxu0 0.0
      %921 = vmatpush1.msra.mxu0 %v241
      %922 = vmatprep.subr.mxu0 0.0
      %923 = vmatpush1.msra.mxu0 %v240
      %924 = vmatprep.subr.mxu0 0.0
      %925 = vmatpush1.msra.mxu0 %v239
      %926 = vmatprep.subr.mxu0 0.0
      %927 = vmatpush2.msra.mxu0 0.0
      %928 = vmatprep.subr.mxu0 0.0
      %929 = vmatpush2.msra.mxu0 0.0
      %930 = vmatprep.subr.mxu0 0.0
      %931 = vmatpush2.msra.mxu0 0.0
      %932 = vmatprep.subr.mxu0 0.0
      %933 = vmatpush2.msra.mxu0 0.0
      %934 = vmatprep.subr.mxu0 0.0
      %935 = vmatpush2.msra.mxu0 0.0
      %936 = vmatprep.subr.mxu0 0.0
      %937 = vmatpush2.msra.mxu0 0.0
      %938 = vmatprep.subr.mxu0 0.0
      %939 = vmatpush2.msra.mxu0 0.0
      %940 = vmatprep.subr.mxu0 0.0
      %941 = vmatpush2.msra.mxu0 0.0
      %942 = vmatprep.subr.mxu0 0.0
      %943 = vmatpush2.msra.mxu0 0.0
      %944 = vmatprep.subr.mxu0 0.0
      %945 = vmatpush2.msra.mxu0 0.0
      %946 = vmatprep.subr.mxu0 0.0
      %947 = vmatpush2.msra.mxu0 0.0
      %948 = vmatprep.subr.mxu0 0.0
      %949 = vmatpush2.msra.mxu0 0.0
      %950 = vmatprep.subr.mxu0 0.0
      %951 = vmatpush2.msra.mxu0 0.0
      %952 = vmatprep.subr.mxu0 0.0
      %953 = vmatpush2.msra.mxu0 0.0
      %954 = vmatprep.subr.mxu0 0.0
      %955 = vmatpush2.msra.mxu0 0.0
      %956 = vmatprep.subr.mxu0 0.0
      %957 = vmatpush2.msra.mxu0 0.0
      %958 = vmatprep.mubr.f32.mxu0 0.0
      %959 = vmatmul.mubr.f32.gmra.mxu0 %v892
      %v960 = vpop.f32.mrf.mxu0
      %v961 = vadd.f32 0.0, %v960
      %v962 = vpop.f32.mrf.mxu0
      %963 = vdwg.mxu0
      %v964 = vadd.f32 %v891, %v961
      %v965 = vxor.u32 %v964, 2147483648
      %v966 = vmul.f32 %v965, 1.442695
      %v967 = vpow.pop %v966
      %v968 = vadd.f32 %v967, 1.0
      %v969 = vrcp.pop %v968
      %v970 = vmul.f32 1.0, %v969
      %v971 = vtanh.pop %v964
      %v972 = vmul.f32 %v970, %v875
      %974 = vrot.lane.b32.xlu0 %v971, 64
      %v975 = vpop.permute.xlu0 %974
      %v977 = vmul.f32 %v970, %v975
      %979 = vrot.lane.b32.xlu0 %v977, 32
      %v980 = vpop.permute.xlu0 %979
      %v982 = vadd.f32 %v972, %v980
      %v983 = vtanh.pop %v982
      %985 = vrot.lane.b32.xlu0 %v983, 64
      %v986 = vpop.permute.xlu0 %985
      %v988 = vmul.f32 %v970, %v986
      %990 = vrot.lane.b32.xlu0 %v988, 32
      %v991 = vpop.permute.xlu0 %990
      %s993 = scalar_lea.vmem %s230, %s889
      %994 = vst.msk [vmem:[%s993] sm:$0xff] %vm248, %v991
      %s995 = scalar_select %p243, 7, 0
      %s996 = smul.u32 %s995, 8
      %s997 = scalar_lea.vmem %s220, %s996
      %v998 = vld [vmem:[%s997] sm:$0xff]
      %v999 = vsel %vm248, %v991, 0
      %1001 = vmatprep.subr.mxu0 0.0
      %1002 = vmatpush1.msra.mxu0 0.0
      %1003 = vmatprep.subr.mxu0 0.0
      %1004 = vmatpush1.msra.mxu0 0.0
      %1005 = vmatprep.subr.mxu0 0.0
      %1006 = vmatpush1.msra.mxu0 0.0
      %1007 = vmatprep.subr.mxu0 0.0
      %1008 = vmatpush1.msra.mxu0 0.0
      %1009 = vmatprep.subr.mxu0 0.0
      %1010 = vmatpush1.msra.mxu0 0.0
      %1011 = vmatprep.subr.mxu0 0.0
      %1012 = vmatpush1.msra.mxu0 0.0
      %1013 = vmatprep.subr.mxu0 0.0
      %1014 = vmatpush1.msra.mxu0 0.0
      %1015 = vmatprep.subr.mxu0 0.0
      %1016 = vmatpush1.msra.mxu0 0.0
      %1017 = vmatprep.subr.mxu0 0.0
      %1018 = vmatpush1.msra.mxu0 0.0
      %1019 = vmatprep.subr.mxu0 0.0
      %1020 = vmatpush1.msra.mxu0 0.0
      %1021 = vmatprep.subr.mxu0 0.0
      %1022 = vmatpush1.msra.mxu0 0.0
      %1023 = vmatprep.subr.mxu0 0.0
      %1024 = vmatpush1.msra.mxu0 0.0
      %1025 = vmatprep.subr.mxu0 0.0
      %1026 = vmatpush1.msra.mxu0 %v242
      %1027 = vmatprep.subr.mxu0 0.0
      %1028 = vmatpush1.msra.mxu0 %v241
      %1029 = vmatprep.subr.mxu0 0.0
      %1030 = vmatpush1.msra.mxu0 %v240
      %1031 = vmatprep.subr.mxu0 0.0
      %1032 = vmatpush1.msra.mxu0 %v239
      %1033 = vmatprep.subr.mxu0 0.0
      %1034 = vmatpush2.msra.mxu0 0.0
      %1035 = vmatprep.subr.mxu0 0.0
      %1036 = vmatpush2.msra.mxu0 0.0
      %1037 = vmatprep.subr.mxu0 0.0
      %1038 = vmatpush2.msra.mxu0 0.0
      %1039 = vmatprep.subr.mxu0 0.0
      %1040 = vmatpush2.msra.mxu0 0.0
      %1041 = vmatprep.subr.mxu0 0.0
      %1042 = vmatpush2.msra.mxu0 0.0
      %1043 = vmatprep.subr.mxu0 0.0
      %1044 = vmatpush2.msra.mxu0 0.0
      %1045 = vmatprep.subr.mxu0 0.0
      %1046 = vmatpush2.msra.mxu0 0.0
      %1047 = vmatprep.subr.mxu0 0.0
      %1048 = vmatpush2.msra.mxu0 0.0
      %1049 = vmatprep.subr.mxu0 0.0
      %1050 = vmatpush2.msra.mxu0 0.0
      %1051 = vmatprep.subr.mxu0 0.0
      %1052 = vmatpush2.msra.mxu0 0.0
      %1053 = vmatprep.subr.mxu0 0.0
      %1054 = vmatpush2.msra.mxu0 0.0
      %1055 = vmatprep.subr.mxu0 0.0
      %1056 = vmatpush2.msra.mxu0 0.0
      %1057 = vmatprep.subr.mxu0 0.0
      %1058 = vmatpush2.msra.mxu0 0.0
      %1059 = vmatprep.subr.mxu0 0.0
      %1060 = vmatpush2.msra.mxu0 0.0
      %1061 = vmatprep.subr.mxu0 0.0
      %1062 = vmatpush2.msra.mxu0 0.0
      %1063 = vmatprep.subr.mxu0 0.0
      %1064 = vmatpush2.msra.mxu0 0.0
      %1065 = vmatprep.mubr.f32.mxu0 0.0
      %1066 = vmatmul.mubr.f32.gmra.mxu0 %v999
      %v1067 = vpop.f32.mrf.mxu0
      %v1068 = vadd.f32 0.0, %v1067
      %v1069 = vpop.f32.mrf.mxu0
      %1070 = vdwg.mxu0
      %v1071 = vadd.f32 %v998, %v1068
      %v1072 = vxor.u32 %v1071, 2147483648
      %v1073 = vmul.f32 %v1072, 1.442695
      %v1074 = vpow.pop %v1073
      %v1075 = vadd.f32 %v1074, 1.0
      %v1076 = vrcp.pop %v1075
      %v1077 = vmul.f32 1.0, %v1076
      %v1078 = vtanh.pop %v1071
      %v1079 = vmul.f32 %v1077, %v982
      %1081 = vrot.lane.b32.xlu0 %v1078, 64
      %v1082 = vpop.permute.xlu0 %1081
      %v1084 = vmul.f32 %v1077, %v1082
      %1086 = vrot.lane.b32.xlu0 %v1084, 32
      %v1087 = vpop.permute.xlu0 %1086
      %v1089 = vadd.f32 %v1079, %v1087
      %v1090 = vtanh.pop %v1089
      %1092 = vrot.lane.b32.xlu0 %v1090, 64
      %v1093 = vpop.permute.xlu0 %1092
      %v1095 = vmul.f32 %v1077, %v1093
      %1097 = vrot.lane.b32.xlu0 %v1095, 32
      %v1098 = vpop.permute.xlu0 %1097
      %s1100 = scalar_lea.vmem %s230, %s996
      %1101 = vst.msk [vmem:[%s1100] sm:$0xff] %vm248, %v1098
      %1102 = vst.msk [vmem:[%s234] sm:$0xff] %vm248, %v1098
      %1104 = vrot.lane.b32.xlu0 %v1089, 96
      %v1105 = vpop.permute.xlu0 %1104
      %1107 = vst.msk [vmem:[%s238] sm:$0xff] %vm248, %v1105
      %p1108 = scmp.lt.s32.totalorder %s16, 1
      %s1109 = scalar_select %p1108, %s16, 1
      %s1110 = smul.addr %s1109, 8
      %s1111 = smul.addr %s1110, 8
      %s1112 = scalar_lea.vmem %s2, %s1111
      %p1113 = scmp.lt.s32.totalorder %s16, 1
      %s1114 = scalar_select %p1113, %s16, 1
      %s1115 = smul.addr %s1114, 8
      %s1116 = scalar_lea.vmem %s3, %s1115
      %p1117 = scmp.lt.s32.totalorder %s16, 1
      %s1118 = scalar_select %p1117, %s16, 1
      %s1119 = smul.addr %s1118, 8
      %s1120 = scalar_lea.vmem %s4, %s1119
      // Predicated region
      $region29: #{seq2seq_forward.2} parent=27 // pred_check
        %p1121 = pneg %p86
      $region30: #{seq2seq_forward.2} parent=27 // pred_check_branch
        %1123 = sbr.rel (%p1121) target = $region32
      $region31: #{seq2seq_forward.2} parent=27 // pred_region
        _
      $region32: #{seq2seq_forward.2} parent=27 // pred_fallthru
        _
      // Predicated region
      $region33: #{seq2seq_forward.2} parent=27 // pred_check
        %p1124 = pneg %p112
      $region34: #{seq2seq_forward.2} parent=27 // pred_check_branch
        %1126 = sbr.rel (%p1124) target = $region36
      $region35: #{seq2seq_forward.2} parent=27 // pred_region
        _
      $region36: #{seq2seq_forward.2} parent=27 // pred_fallthru
        _
      // Predicated region
      $region37: #{seq2seq_forward.2} parent=27 // pred_check
        %p1127 = pneg %p138
      $region38: #{seq2seq_forward.2} parent=27 // pred_check_branch
        %1129 = sbr.rel (%p1127) target = $region40
      $region39: #{seq2seq_forward.2} parent=27 // pred_region
        _
      $region40: #{seq2seq_forward.2} parent=27 // pred_fallthru
        _
    $region28: #{seq2seq_forward.2} parent=5 // pred_fallthru
      _
    %p1130 = scmp.le.s32.totalorder 2, %s11
    // Predicated region
    $region41: #{seq2seq_forward.2} parent=5 // pred_check
      %p1131 = pneg %p1130
    $region42: #{seq2seq_forward.2} parent=5 // pred_check_branch
      %1133 = sbr.rel (%p1131) target = $region44
    $region43: #{seq2seq_forward.2} parent=5 // pred_region
      %s1134 = ssub.s32 %s11, 2
      // Predicated region
      $region45: #{seq2seq_forward.2} parent=43 // pred_check
        %p1135 = pneg %p92
      $region46: #{seq2seq_forward.2} parent=43 // pred_check_branch
        %1137 = sbr.rel (%p1135) target = $region48
      $region47: #{seq2seq_forward.2} parent=43 // pred_region
        %p1138 = scmp.lt.s32.totalorder %s17, 1
        %s1139 = scalar_select %p1138, %s17, 1
        %s1140 = smul.addr %s1139, 8
        %s1141 = smul.addr %s1140, 8
        %s1142 = scalar_lea.vmem %s2, %s1141
      $region48: #{seq2seq_forward.2} parent=43 // pred_fallthru
        _
      // Predicated region
      $region49: #{seq2seq_forward.2} parent=43 // pred_check
        %p1143 = pneg %p118
      $region50: #{seq2seq_forward.2} parent=43 // pred_check_branch
        %1145 = sbr.rel (%p1143) target = $region52
      $region51: #{seq2seq_forward.2} parent=43 // pred_region
        %p1146 = scmp.lt.s32.totalorder %s17, 1
        %s1147 = scalar_select %p1146, %s17, 1
        %s1148 = smul.addr %s1147, 8
        %s1149 = scalar_lea.vmem %s3, %s1148
      $region52: #{seq2seq_forward.2} parent=43 // pred_fallthru
        _
      // Predicated region
      $region53: #{seq2seq_forward.2} parent=43 // pred_check
        %p1150 = pneg %p144
      $region54: #{seq2seq_forward.2} parent=43 // pred_check_branch
        %1152 = sbr.rel (%p1150) target = $region56
      $region55: #{seq2seq_forward.2} parent=43 // pred_region
        %p1153 = scmp.lt.s32.totalorder %s17, 1
        %s1154 = scalar_select %p1153, %s17, 1
        %s1155 = smul.addr %s1154, 8
        %s1156 = scalar_lea.vmem %s4, %s1155
      $region56: #{seq2seq_forward.2} parent=43 // pred_fallthru
        _
    $region44: #{seq2seq_forward.2} parent=5 // pred_fallthru
      _
  $region6: #{seq2seq_forward.2} parent=0 // loop_footer
    %s15 = sadd.s32 1, %s11
  $region7: #{seq2seq_forward.2} parent=0 // loop_footer_branch
    %10 = sbr.rel target = $region3
  $region8: #{seq2seq_forward.2} parent=0 // loop_exit
    _

// kernel: seq2seq_forward.3
$region0: #{seq2seq_forward.3}
  #allocation0 [shape = 'u32[]', space=smem, size = 0x4, offset = 0x4, fixed_abs, tag = 'smem constant byte address 0x4 - core index']
  #allocation1 [shape = 'u32[144,128]{1,0:T(1,128)}', space=vmem, size = 0x12000, scoped, tag = 'internal scratch']
  %s0 = inlined_call_operand.vmem [shape: s32[5], index: 0, kind: input, shape index: {}]
  %s1 = inlined_call_operand.vmem [shape: s32[6,8,1], index: 1, kind: input, shape index: {}]
  %s2 = inlined_call_operand.vmem [shape: f32[8,8], index: 2, kind: input, shape index: {}]
  %s3 = inlined_call_operand.vmem [shape: f32[8,8,128], index: 3, kind: input, shape index: {}]
  %s4 = inlined_call_operand.vmem [shape: f32[8,32], index: 4, kind: input, shape index: {}]
  %s5 = inlined_call_operand.vmem [shape: f32[8,32], index: 5, kind: input, shape index: {}]
  %s6 = inlined_call_operand.vmem [shape: f32[128,128], index: 6, kind: input, shape index: {}]
  %s7 = inlined_call_operand.vmem [shape: f32[32,128], index: 7, kind: input, shape index: {}]
  %s8 = inlined_call_operand.vmem [shape: f32[1,128], index: 8, kind: input, shape index: {}]
  %s9 = inlined_call_operand.vmem [shape: f32[1,32], index: 9, kind: input, shape index: {}]
  %s10 = inlined_call_operand.vmem [shape: f32[32,128], index: 10, kind: input, shape index: {}]
  %s11 = inlined_call_operand.vmem [shape: f32[1,128], index: 11, kind: input, shape index: {}]
  %s12 = inlined_call_operand.vmem [shape: f32[5,8,128], index: 12, kind: output, shape index: {}]
  %s13 = sld [smem:[#allocation0]]
  $region62: #{seq2seq_forward.3} parent=0
    _
  %s15 = ssub.s32 1, %s13
  %s16 = scalar_select 0, %s15, %s13
  $region1: #{seq2seq_forward.3} parent=0
    #allocation2 [shape = 'u8[512]{0}', space=smem, size = 0x200, scoped, tag = 'input window, operand 0, single buffered']
    #allocation3 [shape = 's32[1]{0}', space=sflag, size = 0x4, scoped, tag = 'scoped memory for seq2seq_forward.3']
    %17 = vsyncpa [#allocation3], 0
    // Predicated region
    $region2: #{seq2seq_forward.3} parent=1 // pred_check
      _
    $region3: #{seq2seq_forward.3} parent=1 // pred_check_branch
      %19 = sbr.rel (0) target = $region5
    $region4: #{seq2seq_forward.3} parent=1 // pred_region
      %s21 = ssub.s32 16, 16
      %22 = vsyncadd [#allocation3], %s21
      %s24 = sshll.u32 %s0, 4
      %s25 = int_to_ptr.vmem [resolvable:$true] %s24
      %27 = dma.vmem_to_smem %s25, 16, [#allocation2], [#allocation3]
    $region5: #{seq2seq_forward.3} parent=1 // pred_fallthru
      _
    // Predicated region
    $region6: #{seq2seq_forward.3} parent=1 // pred_check
      _
    $region7: #{seq2seq_forward.3} parent=1 // pred_check_branch
      %29 = sbr.rel (0) target = $region9
    $region8: #{seq2seq_forward.3} parent=1 // pred_region
      _
    $region9: #{seq2seq_forward.3} parent=1 // pred_fallthru
      _
    // Predicated region
    $region10: #{seq2seq_forward.3} parent=1 // pred_check
      _
    $region11: #{seq2seq_forward.3} parent=1 // pred_check_branch
      %31 = sbr.rel (0) target = $region13
    $region12: #{seq2seq_forward.3} parent=1 // pred_region
      _
    $region13: #{seq2seq_forward.3} parent=1 // pred_fallthru
      _
    // Predicated region
    $region14: #{seq2seq_forward.3} parent=1 // pred_check
      _
    $region15: #{seq2seq_forward.3} parent=1 // pred_check_branch
      %33 = sbr.rel (0) target = $region17
    $region16: #{seq2seq_forward.3} parent=1 // pred_region
      _
    $region17: #{seq2seq_forward.3} parent=1 // pred_fallthru
      _
    // Predicated region
    $region18: #{seq2seq_forward.3} parent=1 // pred_check
      _
    $region19: #{seq2seq_forward.3} parent=1 // pred_check_branch
      %35 = sbr.rel (0) target = $region21
    $region20: #{seq2seq_forward.3} parent=1 // pred_region
      _
    $region21: #{seq2seq_forward.3} parent=1 // pred_fallthru
      _
    // Predicated region
    $region22: #{seq2seq_forward.3} parent=1 // pred_check
      _
    $region23: #{seq2seq_forward.3} parent=1 // pred_check_branch
      %37 = sbr.rel (0) target = $region25
    $region24: #{seq2seq_forward.3} parent=1 // pred_region
      _
    $region25: #{seq2seq_forward.3} parent=1 // pred_fallthru
      _
    // Predicated region
    $region26: #{seq2seq_forward.3} parent=1 // pred_check
      _
    $region27: #{seq2seq_forward.3} parent=1 // pred_check_branch
      %39 = sbr.rel (0) target = $region29
    $region28: #{seq2seq_forward.3} parent=1 // pred_region
      _
    $region29: #{seq2seq_forward.3} parent=1 // pred_fallthru
      _
    // Predicated region
    $region30: #{seq2seq_forward.3} parent=1 // pred_check
      _
    $region31: #{seq2seq_forward.3} parent=1 // pred_check_branch
      %41 = sbr.rel (0) target = $region33
    $region32: #{seq2seq_forward.3} parent=1 // pred_region
      _
    $region33: #{seq2seq_forward.3} parent=1 // pred_fallthru
      _
    // Predicated region
    $region34: #{seq2seq_forward.3} parent=1 // pred_check
      _
    $region35: #{seq2seq_forward.3} parent=1 // pred_check_branch
      %43 = sbr.rel (0) target = $region37
    $region36: #{seq2seq_forward.3} parent=1 // pred_region
      _
    $region37: #{seq2seq_forward.3} parent=1 // pred_fallthru
      _
    // Predicated region
    $region38: #{seq2seq_forward.3} parent=1 // pred_check
      _
    $region39: #{seq2seq_forward.3} parent=1 // pred_check_branch
      %45 = sbr.rel (0) target = $region41
    $region40: #{seq2seq_forward.3} parent=1 // pred_region
      _
    $region41: #{seq2seq_forward.3} parent=1 // pred_fallthru
      _
    // Predicated region
    $region42: #{seq2seq_forward.3} parent=1 // pred_check
      _
    $region43: #{seq2seq_forward.3} parent=1 // pred_check_branch
      %47 = sbr.rel (0) target = $region45
    $region44: #{seq2seq_forward.3} parent=1 // pred_region
      _
    $region45: #{seq2seq_forward.3} parent=1 // pred_fallthru
      _
    // Predicated region
    $region46: #{seq2seq_forward.3} parent=1 // pred_check
      _
    $region47: #{seq2seq_forward.3} parent=1 // pred_check_branch
      %49 = sbr.rel (0) target = $region49
    $region48: #{seq2seq_forward.3} parent=1 // pred_region
      _
    $region49: #{seq2seq_forward.3} parent=1 // pred_fallthru
      _
    // Predicated region
    $region50: #{seq2seq_forward.3} parent=1 // pred_check
      _
    $region51: #{seq2seq_forward.3} parent=1 // pred_check_branch
      %51 = sbr.rel (0) target = $region53
    $region52: #{seq2seq_forward.3} parent=1 // pred_region
      %52 = dma.done [#allocation3], 16
    $region53: #{seq2seq_forward.3} parent=1 // pred_fallthru
      _
    %53 = sfence
    %v54 = vld [vmem:[%s2] sm:$0xff]
    %v55 = vld [vmem:[%s3] sm:$0xff]
    %v56 = vld [vmem:[%s3 + $0x8] sm:$0xff]
    %v57 = vld [vmem:[%s3 + $0x10] sm:$0xff]
    %v58 = vld [vmem:[%s3 + $0x18] sm:$0xff]
    %v59 = vld [vmem:[%s3 + $0x20] sm:$0xff]
    %v60 = vld [vmem:[%s3 + $0x28] sm:$0xff]
    %v61 = vld [vmem:[%s3 + $0x30] sm:$0xff]
    %v62 = vld [vmem:[%s3 + $0x38] sm:$0xff]
    %v63 = vld [vmem:[%s7] sm:$0xff]
    %v64 = vld [vmem:[%s7 + $0x8] sm:$0xff]
    %v65 = vld [vmem:[%s7 + $0x10] sm:$0xff]
    %v66 = vld [vmem:[%s7 + $0x18] sm:$0xff]
    %v67 = vld [vmem:[%s8] sm:$0x1]
    %v68 = vld [vmem:[%s9] sm:$0x1]
    %v69 = vld [vmem:[%s6] sm:$0xff]
    %v70 = vld [vmem:[%s6 + $0x8] sm:$0xff]
    %v71 = vld [vmem:[%s6 + $0x10] sm:$0xff]
    %v72 = vld [vmem:[%s6 + $0x18] sm:$0xff]
    %v73 = vld [vmem:[%s6 + $0x20] sm:$0xff]
    %v74 = vld [vmem:[%s6 + $0x28] sm:$0xff]
    %v75 = vld [vmem:[%s6 + $0x30] sm:$0xff]
    %v76 = vld [vmem:[%s6 + $0x38] sm:$0xff]
    %v77 = vld [vmem:[%s6 + $0x40] sm:$0xff]
    %v78 = vld [vmem:[%s6 + $0x48] sm:$0xff]
    %v79 = vld [vmem:[%s6 + $0x50] sm:$0xff]
    %v80 = vld [vmem:[%s6 + $0x58] sm:$0xff]
    %v81 = vld [vmem:[%s6 + $0x60] sm:$0xff]
    %v82 = vld [vmem:[%s6 + $0x68] sm:$0xff]
    %v83 = vld [vmem:[%s6 + $0x70] sm:$0xff]
    %v84 = vld [vmem:[%s6 + $0x78] sm:$0xff]
    %v85 = vld [vmem:[%s10] sm:$0xff]
    %v86 = vld [vmem:[%s10 + $0x8] sm:$0xff]
    %v87 = vld [vmem:[%s10 + $0x10] sm:$0xff]
    %v88 = vld [vmem:[%s10 + $0x18] sm:$0xff]
    %v89 = vld [vmem:[%s11] sm:$0x1]
    %v90 = vlaneseq
    %v91 = vand.u32 %v90, 127
    %v92 = vld [vmem:[%s1] sm:$0xff]
    %v93 = vld [vmem:[%s4] sm:$0xff]
    %v94 = vld [vmem:[%s5] sm:$0xff]
    %v96 = vlaneseq
    %v97 = vshrl.u32 %v96, 7
    %v98 = vsub.s32 0, %v97
    %v99 = vrot.slane %v68, %v98
    %v101 = vmul.f32 %v93, %v99
    %vm102 = vcmask 261120
    %v103 = vsel %vm102, %v101, 0.0
    %104 = vadd.xlane.f32.xlu0 %v103
    %v105 = vpop.xlane.xlu0 %104
    %v106 = vadd.f32 %v54, %v105
    %v107 = vmax.f32 %v106, 0.0
    %vm108 = vcmask 64512
    %v109 = vsel %vm108, %v107, -inf
    %110 = vmax.xlane.f32.xlu0 %v109
    %v111 = vpop.xlane.xlu0 %110
    %v112 = vsub.f32 %v107, %v111
    %v113 = vmul.f32 %v112, 1.442695
    %v114 = vpow.pop %v113
    %v115 = vsel %vm108, %v114, 0.0
    %116 = vadd.xlane.f32.xlu0 %v115
    %v117 = vpop.xlane.xlu0 %116
    %v118 = vrcp.pop %v117
    %v119 = vmul.f32 %v114, %v118
    %v120 = vlaneseq
    %v121 = vshrl.u32 %v120, 7
    %v122 = vsub.s32 0, %v121
    %v123 = vrot.slane %v119, %v122
    %125 = vbcast.lane.b32.xlu0 %v123, 256
    %v126 = vpop.permute.xlu0 %125
    %v127 = vlaneseq
    %v128 = vshrl.u32 %v127, 7
    %v129 = vsub.s32 1, %v128
    %v130 = vrot.slane %v119, %v129
    %132 = vbcast.lane.b32.xlu0 %v130, 256
    %v133 = vpop.permute.xlu0 %132
    %v134 = vlaneseq
    %v135 = vshrl.u32 %v134, 7
    %v136 = vsub.s32 2, %v135
    %v137 = vrot.slane %v119, %v136
    %139 = vbcast.lane.b32.xlu0 %v137, 256
    %v140 = vpop.permute.xlu0 %139
    %v141 = vlaneseq
    %v142 = vshrl.u32 %v141, 7
    %v143 = vsub.s32 3, %v142
    %v144 = vrot.slane %v119, %v143
    %146 = vbcast.lane.b32.xlu0 %v144, 256
    %v147 = vpop.permute.xlu0 %146
    %v148 = vlaneseq
    %v149 = vshrl.u32 %v148, 7
    %v150 = vsub.s32 4, %v149
    %v151 = vrot.slane %v119, %v150
    %153 = vbcast.lane.b32.xlu0 %v151, 256
    %v154 = vpop.permute.xlu0 %153
    %v155 = vlaneseq
    %v156 = vshrl.u32 %v155, 7
    %v157 = vsub.s32 5, %v156
    %v158 = vrot.slane %v119, %v157
    %160 = vbcast.lane.b32.xlu0 %v158, 256
    %v161 = vpop.permute.xlu0 %160
    %v162 = vlaneseq
    %v163 = vshrl.u32 %v162, 7
    %v164 = vsub.s32 6, %v163
    %v165 = vrot.slane %v119, %v164
    %167 = vbcast.lane.b32.xlu0 %v165, 256
    %v168 = vpop.permute.xlu0 %167
    %v169 = vlaneseq
    %v170 = vshrl.u32 %v169, 7
    %v171 = vsub.s32 7, %v170
    %v172 = vrot.slane %v119, %v171
    %174 = vbcast.lane.b32.xlu0 %v172, 256
    %v175 = vpop.permute.xlu0 %174
    %v176 = vmul.f32 %v126, %v55
    %v177 = vmul.f32 %v133, %v56
    %v178 = vmul.f32 %v140, %v57
    %v179 = vmul.f32 %v147, %v58
    %v180 = vmul.f32 %v154, %v59
    %v181 = vmul.f32 %v161, %v60
    %v182 = vmul.f32 %v168, %v61
    %v183 = vmul.f32 %v175, %v62
    %v184 = vrot.slane %v176, 4
    %v185 = vadd.f32 %v176, %v184
    %v186 = vrot.slane %v185, 2
    %v187 = vadd.f32 %v185, %v186
    %v188 = vrot.slane %v187, 1
    %v189 = vadd.f32 %v187, %v188
    %v190 = vrot.slane %v177, 4
    %v191 = vadd.f32 %v177, %v190
    %v192 = vrot.slane %v191, 2
    %v193 = vadd.f32 %v191, %v192
    %v194 = vrot.slane %v193, 1
    %v195 = vadd.f32 %v193, %v194
    %v196 = vrot.slane %v178, 4
    %v197 = vadd.f32 %v178, %v196
    %v198 = vrot.slane %v197, 2
    %v199 = vadd.f32 %v197, %v198
    %v200 = vrot.slane %v199, 1
    %v201 = vadd.f32 %v199, %v200
    %v202 = vrot.slane %v179, 4
    %v203 = vadd.f32 %v179, %v202
    %v204 = vrot.slane %v203, 2
    %v205 = vadd.f32 %v203, %v204
    %v206 = vrot.slane %v205, 1
    %v207 = vadd.f32 %v205, %v206
    %v208 = vrot.slane %v180, 4
    %v209 = vadd.f32 %v180, %v208
    %v210 = vrot.slane %v209, 2
    %v211 = vadd.f32 %v209, %v210
    %v212 = vrot.slane %v211, 1
    %v213 = vadd.f32 %v211, %v212
    %v214 = vrot.slane %v181, 4
    %v215 = vadd.f32 %v181, %v214
    %v216 = vrot.slane %v215, 2
    %v217 = vadd.f32 %v215, %v216
    %v218 = vrot.slane %v217, 1
    %v219 = vadd.f32 %v217, %v218
    %v220 = vrot.slane %v182, 4
    %v221 = vadd.f32 %v182, %v220
    %v222 = vrot.slane %v221, 2
    %v223 = vadd.f32 %v221, %v222
    %v224 = vrot.slane %v223, 1
    %v225 = vadd.f32 %v223, %v224
    %v226 = vrot.slane %v183, 4
    %v227 = vadd.f32 %v183, %v226
    %v228 = vrot.slane %v227, 2
    %v229 = vadd.f32 %v227, %v228
    %v230 = vrot.slane %v229, 1
    %v231 = vadd.f32 %v229, %v230
    %232 = vset.pattern.permute.xlu0 0
    %233 = vperm.xlu0 %232, %v92
    %v234 = vpop.permute.xlu0 %233
    %vm235 = vcmp.eq.s32.totalorder %v91, %v234
    %v236 = vsel %vm235, 1, 0
    %v237 = vcvt.s32.f32 %v236
    %238 = vmatprep.subr.mxu0 0.0
    %239 = vmatpush1.msra.mxu0 %v84
    %240 = vmatprep.subr.mxu0 0.0
    %241 = vmatpush1.msra.mxu0 %v83
    %242 = vmatprep.subr.mxu0 0.0
    %243 = vmatpush1.msra.mxu0 %v82
    %244 = vmatprep.subr.mxu0 0.0
    %245 = vmatpush1.msra.mxu0 %v81
    %246 = vmatprep.subr.mxu0 0.0
    %247 = vmatpush1.msra.mxu0 %v80
    %248 = vmatprep.subr.mxu0 0.0
    %249 = vmatpush1.msra.mxu0 %v79
    %250 = vmatprep.subr.mxu0 0.0
    %251 = vmatpush1.msra.mxu0 %v78
    %252 = vmatprep.subr.mxu0 0.0
    %253 = vmatpush1.msra.mxu0 %v77
    %254 = vmatprep.subr.mxu0 0.0
    %255 = vmatpush1.msra.mxu0 %v76
    %256 = vmatprep.subr.mxu0 0.0
    %257 = vmatpush1.msra.mxu0 %v75
    %258 = vmatprep.subr.mxu0 0.0
    %259 = vmatpush1.msra.mxu0 %v74
    %260 = vmatprep.subr.mxu0 0.0
    %261 = vmatpush1.msra.mxu0 %v73
    %262 = vmatprep.subr.mxu0 0.0
    %263 = vmatpush1.msra.mxu0 %v72
    %264 = vmatprep.subr.mxu0 0.0
    %265 = vmatpush1.msra.mxu0 %v71
    %266 = vmatprep.subr.mxu0 0.0
    %267 = vmatpush1.msra.mxu0 %v70
    %268 = vmatprep.subr.mxu0 0.0
    %269 = vmatpush1.msra.mxu0 %v69
    %270 = vmatprep.subr.mxu0 0.0
    %271 = vmatpush2.msra.mxu0 0.0
    %272 = vmatprep.subr.mxu0 0.0
    %273 = vmatpush2.msra.mxu0 0.0
    %274 = vmatprep.subr.mxu0 0.0
    %275 = vmatpush2.msra.mxu0 0.0
    %276 = vmatprep.subr.mxu0 0.0
    %277 = vmatpush2.msra.mxu0 0.0
    %278 = vmatprep.subr.mxu0 0.0
    %279 = vmatpush2.msra.mxu0 0.0
    %280 = vmatprep.subr.mxu0 0.0
    %281 = vmatpush2.msra.mxu0 0.0
    %282 = vmatprep.subr.mxu0 0.0
    %283 = vmatpush2.msra.mxu0 0.0
    %284 = vmatprep.subr.mxu0 0.0
    %285 = vmatpush2.msra.mxu0 0.0
    %286 = vmatprep.subr.mxu0 0.0
    %287 = vmatpush2.msra.mxu0 0.0
    %288 = vmatprep.subr.mxu0 0.0
    %289 = vmatpush2.msra.mxu0 0.0
    %290 = vmatprep.subr.mxu0 0.0
    %291 = vmatpush2.msra.mxu0 0.0
    %292 = vmatprep.subr.mxu0 0.0
    %293 = vmatpush2.msra.mxu0 0.0
    %294 = vmatprep.subr.mxu0 0.0
    %295 = vmatpush2.msra.mxu0 0.0
    %296 = vmatprep.subr.mxu0 0.0
    %297 = vmatpush2.msra.mxu0 0.0
    %298 = vmatprep.subr.mxu0 0.0
    %299 = vmatpush2.msra.mxu0 0.0
    %300 = vmatprep.subr.mxu0 0.0
    %301 = vmatpush2.msra.mxu0 0.0
    %302 = vmatprep.mubr.f32.mxu0 0.0
    %303 = vmatmul.mubr.f32.gmra.mxu0 %v237
    %v304 = vpop.f32.mrf.mxu0
    %v305 = vadd.f32 0.0, %v304
    %v306 = vpop.f32.mrf.mxu0
    %307 = vdwg.mxu0
    %v309 = vrot.slane %v305, 1
    %v310 = vrot.slane %v305, 2
    %v311 = vrot.slane %v305, 3
    %v312 = vrot.slane %v305, 4
    %v313 = vrot.slane %v305, 5
    %v314 = vrot.slane %v305, 6
    %v315 = vrot.slane %v305, 7
    %v324 = vadd.f32 %v189, %v305
    %v325 = vadd.f32 %v195, %v309
    %v326 = vadd.f32 %v201, %v310
    %v327 = vadd.f32 %v207, %v311
    %v328 = vadd.f32 %v213, %v312
    %v329 = vadd.f32 %v219, %v313
    %v330 = vadd.f32 %v225, %v314
    %v331 = vadd.f32 %v231, %v315
    %v333 = vsel %vm102, %v93, 0
    %335 = vmatprep.subr.mxu0 0.0
    %336 = vmatpush1.msra.mxu0 0.0
    %337 = vmatprep.subr.mxu0 0.0
    %338 = vmatpush1.msra.mxu0 0.0
    %339 = vmatprep.subr.mxu0 0.0
    %340 = vmatpush1.msra.mxu0 0.0
    %341 = vmatprep.subr.mxu0 0.0
    %342 = vmatpush1.msra.mxu0 0.0
    %343 = vmatprep.subr.mxu0 0.0
    %344 = vmatpush1.msra.mxu0 0.0
    %345 = vmatprep.subr.mxu0 0.0
    %346 = vmatpush1.msra.mxu0 0.0
    %347 = vmatprep.subr.mxu0 0.0
    %348 = vmatpush1.msra.mxu0 0.0
    %349 = vmatprep.subr.mxu0 0.0
    %350 = vmatpush1.msra.mxu0 0.0
    %351 = vmatprep.subr.mxu0 0.0
    %352 = vmatpush1.msra.mxu0 0.0
    %353 = vmatprep.subr.mxu0 0.0
    %354 = vmatpush1.msra.mxu0 0.0
    %355 = vmatprep.subr.mxu0 0.0
    %356 = vmatpush1.msra.mxu0 0.0
    %357 = vmatprep.subr.mxu0 0.0
    %358 = vmatpush1.msra.mxu0 0.0
    %359 = vmatprep.subr.mxu0 0.0
    %360 = vmatpush1.msra.mxu0 %v66
    %361 = vmatprep.subr.mxu0 0.0
    %362 = vmatpush1.msra.mxu0 %v65
    %363 = vmatprep.subr.mxu0 0.0
    %364 = vmatpush1.msra.mxu0 %v64
    %365 = vmatprep.subr.mxu0 0.0
    %366 = vmatpush1.msra.mxu0 %v63
    %367 = vmatprep.subr.mxu0 0.0
    %368 = vmatpush2.msra.mxu0 0.0
    %369 = vmatprep.subr.mxu0 0.0
    %370 = vmatpush2.msra.mxu0 0.0
    %371 = vmatprep.subr.mxu0 0.0
    %372 = vmatpush2.msra.mxu0 0.0
    %373 = vmatprep.subr.mxu0 0.0
    %374 = vmatpush2.msra.mxu0 0.0
    %375 = vmatprep.subr.mxu0 0.0
    %376 = vmatpush2.msra.mxu0 0.0
    %377 = vmatprep.subr.mxu0 0.0
    %378 = vmatpush2.msra.mxu0 0.0
    %379 = vmatprep.subr.mxu0 0.0
    %380 = vmatpush2.msra.mxu0 0.0
    %381 = vmatprep.subr.mxu0 0.0
    %382 = vmatpush2.msra.mxu0 0.0
    %383 = vmatprep.subr.mxu0 0.0
    %384 = vmatpush2.msra.mxu0 0.0
    %385 = vmatprep.subr.mxu0 0.0
    %386 = vmatpush2.msra.mxu0 0.0
    %387 = vmatprep.subr.mxu0 0.0
    %388 = vmatpush2.msra.mxu0 0.0
    %389 = vmatprep.subr.mxu0 0.0
    %390 = vmatpush2.msra.mxu0 0.0
    %391 = vmatprep.subr.mxu0 0.0
    %392 = vmatpush2.msra.mxu0 0.0
    %393 = vmatprep.subr.mxu0 0.0
    %394 = vmatpush2.msra.mxu0 0.0
    %395 = vmatprep.subr.mxu0 0.0
    %396 = vmatpush2.msra.mxu0 0.0
    %397 = vmatprep.subr.mxu0 0.0
    %398 = vmatpush2.msra.mxu0 0.0
    %399 = vmatprep.mubr.f32.mxu0 0.0
    %400 = vmatmul.mubr.f32.gmra.mxu0 %v333
    %v401 = vpop.f32.mrf.mxu0
    %v402 = vadd.f32 0.0, %v401
    %v403 = vpop.f32.mrf.mxu0
    %404 = vdwg.mxu0
    %v406 = vrot.slane %v402, 1
    %v407 = vrot.slane %v402, 2
    %v408 = vrot.slane %v402, 3
    %v409 = vrot.slane %v402, 4
    %v410 = vrot.slane %v402, 5
    %v411 = vrot.slane %v402, 6
    %v412 = vrot.slane %v402, 7
    %v421 = vadd.f32 %v324, %v402
    %v422 = vadd.f32 %v325, %v406
    %v423 = vadd.f32 %v326, %v407
    %v424 = vadd.f32 %v327, %v408
    %v425 = vadd.f32 %v328, %v409
    %v426 = vadd.f32 %v329, %v410
    %v427 = vadd.f32 %v330, %v411
    %v428 = vadd.f32 %v331, %v412
    %v430 = vlaneseq
    %v431 = vshrl.u32 %v430, 7
    %v432 = vsub.s32 0, %v431
    %v433 = vrot.slane %v67, %v432
    %v435 = vadd.f32 %v421, %v433
    %v436 = vadd.f32 %v422, %v433
    %v437 = vadd.f32 %v423, %v433
    %v438 = vadd.f32 %v424, %v433
    %v439 = vadd.f32 %v425, %v433
    %v440 = vadd.f32 %v426, %v433
    %v441 = vadd.f32 %v427, %v433
    %v442 = vadd.f32 %v428, %v433
    %v443 = vxor.u32 %v435, 2147483648
    %v444 = vxor.u32 %v436, 2147483648
    %v445 = vxor.u32 %v437, 2147483648
    %v446 = vxor.u32 %v438, 2147483648
    %v447 = vxor.u32 %v439, 2147483648
    %v448 = vxor.u32 %v440, 2147483648
    %v449 = vxor.u32 %v441, 2147483648
    %v450 = vxor.u32 %v442, 2147483648
    %v451 = vmul.f32 %v443, 1.442695
    %v452 = vpow.pop %v451
    %v453 = vmul.f32 %v444, 1.442695
    %v454 = vpow.pop %v453
    %v455 = vmul.f32 %v445, 1.442695
    %v456 = vpow.pop %v455
    %v457 = vmul.f32 %v446, 1.442695
    %v458 = vpow.pop %v457
    %v459 = vmul.f32 %v447, 1.442695
    %v460 = vpow.pop %v459
    %v461 = vmul.f32 %v448, 1.442695
    %v462 = vpow.pop %v461
    %v463 = vmul.f32 %v449, 1.442695
    %v464 = vpow.pop %v463
    %v465 = vmul.f32 %v450, 1.442695
    %v466 = vpow.pop %v465
    %v467 = vadd.f32 %v452, 1.0
    %v468 = vadd.f32 %v454, 1.0
    %v469 = vadd.f32 %v456, 1.0
    %v470 = vadd.f32 %v458, 1.0
    %v471 = vadd.f32 %v460, 1.0
    %v472 = vadd.f32 %v462, 1.0
    %v473 = vadd.f32 %v464, 1.0
    %v474 = vadd.f32 %v466, 1.0
    %v475 = vrcp.pop %v467
    %v476 = vmul.f32 1.0, %v475
    %v477 = vrcp.pop %v468
    %v478 = vmul.f32 1.0, %v477
    %v479 = vrcp.pop %v469
    %v480 = vmul.f32 1.0, %v479
    %v481 = vrcp.pop %v470
    %v482 = vmul.f32 1.0, %v481
    %v483 = vrcp.pop %v471
    %v484 = vmul.f32 1.0, %v483
    %v485 = vrcp.pop %v472
    %v486 = vmul.f32 1.0, %v485
    %v487 = vrcp.pop %v473
    %v488 = vmul.f32 1.0, %v487
    %v489 = vrcp.pop %v474
    %v490 = vmul.f32 1.0, %v489
    %v491 = vtanh.pop %v435
    %v492 = vtanh.pop %v436
    %v493 = vtanh.pop %v437
    %v494 = vtanh.pop %v438
    %v495 = vtanh.pop %v439
    %v496 = vtanh.pop %v440
    %v497 = vtanh.pop %v441
    %v498 = vtanh.pop %v442
    %v500 = vrot.slane %v94, 1
    %v501 = vrot.slane %v94, 2
    %v502 = vrot.slane %v94, 3
    %v503 = vrot.slane %v94, 4
    %v504 = vrot.slane %v94, 5
    %v505 = vrot.slane %v94, 6
    %v506 = vrot.slane %v94, 7
    %507 = vrot.lane.b32.xlu0 %v94, 32
    %v508 = vpop.permute.xlu0 %507
    %509 = vrot.lane.b32.xlu0 %v500, 32
    %v510 = vpop.permute.xlu0 %509
    %511 = vrot.lane.b32.xlu0 %v501, 32
    %v512 = vpop.permute.xlu0 %511
    %513 = vrot.lane.b32.xlu0 %v502, 32
    %v514 = vpop.permute.xlu0 %513
    %515 = vrot.lane.b32.xlu0 %v503, 32
    %v516 = vpop.permute.xlu0 %515
    %517 = vrot.lane.b32.xlu0 %v504, 32
    %v518 = vpop.permute.xlu0 %517
    %519 = vrot.lane.b32.xlu0 %v505, 32
    %v520 = vpop.permute.xlu0 %519
    %521 = vrot.lane.b32.xlu0 %v506, 32
    %v522 = vpop.permute.xlu0 %521
    %v531 = vmul.f32 %v476, %v508
    %v532 = vmul.f32 %v478, %v510
    %v533 = vmul.f32 %v480, %v512
    %v534 = vmul.f32 %v482, %v514
    %v535 = vmul.f32 %v484, %v516
    %v536 = vmul.f32 %v486, %v518
    %v537 = vmul.f32 %v488, %v520
    %v538 = vmul.f32 %v490, %v522
    %547 = vrot.lane.b32.xlu0 %v491, 64
    %v548 = vpop.permute.xlu0 %547
    %549 = vrot.lane.b32.xlu0 %v492, 64
    %v550 = vpop.permute.xlu0 %549
    %551 = vrot.lane.b32.xlu0 %v493, 64
    %v552 = vpop.permute.xlu0 %551
    %553 = vrot.lane.b32.xlu0 %v494, 64
    %v554 = vpop.permute.xlu0 %553
    %555 = vrot.lane.b32.xlu0 %v495, 64
    %v556 = vpop.permute.xlu0 %555
    %557 = vrot.lane.b32.xlu0 %v496, 64
    %v558 = vpop.permute.xlu0 %557
    %559 = vrot.lane.b32.xlu0 %v497, 64
    %v560 = vpop.permute.xlu0 %559
    %561 = vrot.lane.b32.xlu0 %v498, 64
    %v562 = vpop.permute.xlu0 %561
    %v571 = vmul.f32 %v476, %v548
    %v572 = vmul.f32 %v478, %v550
    %v573 = vmul.f32 %v480, %v552
    %v574 = vmul.f32 %v482, %v554
    %v575 = vmul.f32 %v484, %v556
    %v576 = vmul.f32 %v486, %v558
    %v577 = vmul.f32 %v488, %v560
    %v578 = vmul.f32 %v490, %v562
    %587 = vrot.lane.b32.xlu0 %v571, 32
    %v588 = vpop.permute.xlu0 %587
    %589 = vrot.lane.b32.xlu0 %v572, 32
    %v590 = vpop.permute.xlu0 %589
    %591 = vrot.lane.b32.xlu0 %v573, 32
    %v592 = vpop.permute.xlu0 %591
    %593 = vrot.lane.b32.xlu0 %v574, 32
    %v594 = vpop.permute.xlu0 %593
    %595 = vrot.lane.b32.xlu0 %v575, 32
    %v596 = vpop.permute.xlu0 %595
    %597 = vrot.lane.b32.xlu0 %v576, 32
    %v598 = vpop.permute.xlu0 %597
    %599 = vrot.lane.b32.xlu0 %v577, 32
    %v600 = vpop.permute.xlu0 %599
    %601 = vrot.lane.b32.xlu0 %v578, 32
    %v602 = vpop.permute.xlu0 %601
    %v611 = vadd.f32 %v531, %v588
    %v612 = vadd.f32 %v532, %v590
    %v613 = vadd.f32 %v533, %v592
    %v614 = vadd.f32 %v534, %v594
    %v615 = vadd.f32 %v535, %v596
    %v616 = vadd.f32 %v536, %v598
    %v617 = vadd.f32 %v537, %v600
    %v618 = vadd.f32 %v538, %v602
    %v619 = vtanh.pop %v611
    %v620 = vtanh.pop %v612
    %v621 = vtanh.pop %v613
    %v622 = vtanh.pop %v614
    %v623 = vtanh.pop %v615
    %v624 = vtanh.pop %v616
    %v625 = vtanh.pop %v617
    %v626 = vtanh.pop %v618
    %635 = vrot.lane.b32.xlu0 %v619, 64
    %v636 = vpop.permute.xlu0 %635
    %637 = vrot.lane.b32.xlu0 %v620, 64
    %v638 = vpop.permute.xlu0 %637
    %639 = vrot.lane.b32.xlu0 %v621, 64
    %v640 = vpop.permute.xlu0 %639
    %641 = vrot.lane.b32.xlu0 %v622, 64
    %v642 = vpop.permute.xlu0 %641
    %643 = vrot.lane.b32.xlu0 %v623, 64
    %v644 = vpop.permute.xlu0 %643
    %645 = vrot.lane.b32.xlu0 %v624, 64
    %v646 = vpop.permute.xlu0 %645
    %647 = vrot.lane.b32.xlu0 %v625, 64
    %v648 = vpop.permute.xlu0 %647
    %649 = vrot.lane.b32.xlu0 %v626, 64
    %v650 = vpop.permute.xlu0 %649
    %v659 = vmul.f32 %v476, %v636
    %v660 = vmul.f32 %v478, %v638
    %v661 = vmul.f32 %v480, %v640
    %v662 = vmul.f32 %v482, %v642
    %v663 = vmul.f32 %v484, %v644
    %v664 = vmul.f32 %v486, %v646
    %v665 = vmul.f32 %v488, %v648
    %v666 = vmul.f32 %v490, %v650
    %v668 = vlaneseq
    %v669 = vshrl.u32 %v668, 7
    %v670 = vsub.s32 0, %v669
    %v671 = vrot.slane %v89, %v670
    %v681 = vrot.slane %v660, 7
    %vm682 = vcmask 1041409
    %v683 = vsel %vm682, %v681, %v659
    %v684 = vrot.slane %v661, 6
    %vm685 = vcmask 1042434
    %v686 = vsel %vm685, %v684, %v683
    %v687 = vrot.slane %v662, 5
    %vm688 = vcmask 1043459
    %v689 = vsel %vm688, %v687, %v686
    %v690 = vrot.slane %v663, 4
    %vm691 = vcmask 1044484
    %v692 = vsel %vm691, %v690, %v689
    %v693 = vrot.slane %v664, 3
    %vm694 = vcmask 1045509
    %v695 = vsel %vm694, %v693, %v692
    %v696 = vrot.slane %v665, 2
    %vm697 = vcmask 1046534
    %v698 = vsel %vm697, %v696, %v695
    %v699 = vrot.slane %v666, 1
    %vm700 = vcmask 1047559
    %v701 = vsel %vm700, %v699, %v698
    %702 = vrot.lane.b32.xlu0 %v701, 32
    %v703 = vpop.permute.xlu0 %702
    %v704 = vsel %vm102, %v703, 0
    %706 = vmatprep.subr.mxu0 0.0
    %707 = vmatpush1.msra.mxu0 0.0
    %708 = vmatprep.subr.mxu0 0.0
    %709 = vmatpush1.msra.mxu0 0.0
    %710 = vmatprep.subr.mxu0 0.0
    %711 = vmatpush1.msra.mxu0 0.0
    %712 = vmatprep.subr.mxu0 0.0
    %713 = vmatpush1.msra.mxu0 0.0
    %714 = vmatprep.subr.mxu0 0.0
    %715 = vmatpush1.msra.mxu0 0.0
    %716 = vmatprep.subr.mxu0 0.0
    %717 = vmatpush1.msra.mxu0 0.0
    %718 = vmatprep.subr.mxu0 0.0
    %719 = vmatpush1.msra.mxu0 0.0
    %720 = vmatprep.subr.mxu0 0.0
    %721 = vmatpush1.msra.mxu0 0.0
    %722 = vmatprep.subr.mxu0 0.0
    %723 = vmatpush1.msra.mxu0 0.0
    %724 = vmatprep.subr.mxu0 0.0
    %725 = vmatpush1.msra.mxu0 0.0
    %726 = vmatprep.subr.mxu0 0.0
    %727 = vmatpush1.msra.mxu0 0.0
    %728 = vmatprep.subr.mxu0 0.0
    %729 = vmatpush1.msra.mxu0 0.0
    %730 = vmatprep.subr.mxu0 0.0
    %731 = vmatpush1.msra.mxu0 %v88
    %732 = vmatprep.subr.mxu0 0.0
    %733 = vmatpush1.msra.mxu0 %v87
    %734 = vmatprep.subr.mxu0 0.0
    %735 = vmatpush1.msra.mxu0 %v86
    %736 = vmatprep.subr.mxu0 0.0
    %737 = vmatpush1.msra.mxu0 %v85
    %738 = vmatprep.subr.mxu0 0.0
    %739 = vmatpush2.msra.mxu0 0.0
    %740 = vmatprep.subr.mxu0 0.0
    %741 = vmatpush2.msra.mxu0 0.0
    %742 = vmatprep.subr.mxu0 0.0
    %743 = vmatpush2.msra.mxu0 0.0
    %744 = vmatprep.subr.mxu0 0.0
    %745 = vmatpush2.msra.mxu0 0.0
    %746 = vmatprep.subr.mxu0 0.0
    %747 = vmatpush2.msra.mxu0 0.0
    %748 = vmatprep.subr.mxu0 0.0
    %749 = vmatpush2.msra.mxu0 0.0
    %750 = vmatprep.subr.mxu0 0.0
    %751 = vmatpush2.msra.mxu0 0.0
    %752 = vmatprep.subr.mxu0 0.0
    %753 = vmatpush2.msra.mxu0 0.0
    %754 = vmatprep.subr.mxu0 0.0
    %755 = vmatpush2.msra.mxu0 0.0
    %756 = vmatprep.subr.mxu0 0.0
    %757 = vmatpush2.msra.mxu0 0.0
    %758 = vmatprep.subr.mxu0 0.0
    %759 = vmatpush2.msra.mxu0 0.0
    %760 = vmatprep.subr.mxu0 0.0
    %761 = vmatpush2.msra.mxu0 0.0
    %762 = vmatprep.subr.mxu0 0.0
    %763 = vmatpush2.msra.mxu0 0.0
    %764 = vmatprep.subr.mxu0 0.0
    %765 = vmatpush2.msra.mxu0 0.0
    %766 = vmatprep.subr.mxu0 0.0
    %767 = vmatpush2.msra.mxu0 0.0
    %768 = vmatprep.subr.mxu0 0.0
    %769 = vmatpush2.msra.mxu0 0.0
    %770 = vmatprep.mubr.f32.mxu0 0.0
    %771 = vmatmul.mubr.f32.gmra.mxu0 %v704
    %v772 = vpop.f32.mrf.mxu0
    %v773 = vadd.f32 %v671, %v772
    %v774 = vpop.f32.mrf.mxu0
    %775 = vdwg.mxu0
    %776 = vst [vmem:[%s12] sm:$0xff] %v773
    %777 = vmax.xlane.f32.xlu0 %v773
    %v778 = vpop.xlane.xlu0 %777
    %vm779 = vcmp.ge.f32.partialorder %v773, %v778
    %v780 = vsel %vm779, %v91, 128
    %v781 = vand.u32 %v780, 65535
    %v782 = vshra.s32 %v780, 16
    %v783 = vcvt.s32.f32 %v781
    %v784 = vcvt.s32.f32 %v782
    %785 = vmin.xlane.f32.xlu0 %v784
    %v786 = vpop.xlane.xlu0 %785
    %vm787 = vcmp.eq.f32.partialorder %v784, %v786
    %v788 = vsel %vm787, %v783, inf
    %789 = vmin.xlane.f32.xlu0 %v788
    %v790 = vpop.xlane.xlu0 %789
    %v791 = vcvt.f32.s32 %v790
    %v792 = vcvt.f32.s32 %v786
    %v793 = vshll.u32 %v792, 16
    %v794 = vadd.s32 %v793, %v791
    %s795 = sld [smem:[#allocation2]]
    %p796 = scmp.ne.s32.totalorder %s795, 0
    %s797 = scalar_lea.vmem %s1, 8
    %v798 = vld [vmem:[%s797] sm:$0xff]
    %s799 = scalar_select %p796, 1, 0
    %v800 = vstv %s799
    %vm801 = vcmp.eq.s32.totalorder %v800, 1
    %v802 = vsel %vm801, %v798, %v794
    %803 = vrot.lane.b32.xlu0 %v99, 96
    %v804 = vpop.permute.xlu0 %803
    %v806 = vmul.f32 %v659, %v804
    %v807 = vmul.f32 %v660, %v804
    %v808 = vmul.f32 %v661, %v804
    %v809 = vmul.f32 %v662, %v804
    %v810 = vmul.f32 %v663, %v804
    %v811 = vmul.f32 %v664, %v804
    %v812 = vmul.f32 %v665, %v804
    %v813 = vmul.f32 %v666, %v804
    %v822 = vrot.slane %v807, 7
    %v823 = vsel %vm682, %v822, %v806
    %v824 = vrot.slane %v808, 6
    %v825 = vsel %vm685, %v824, %v823
    %v826 = vrot.slane %v809, 5
    %v827 = vsel %vm688, %v826, %v825
    %v828 = vrot.slane %v810, 4
    %v829 = vsel %vm691, %v828, %v827
    %v830 = vrot.slane %v811, 3
    %v831 = vsel %vm694, %v830, %v829
    %v832 = vrot.slane %v812, 2
    %v833 = vsel %vm697, %v832, %v831
    %v834 = vrot.slane %v813, 1
    %v835 = vsel %vm700, %v834, %v833
    %836 = vrot.lane.b32.xlu0 %v835, 32
    %v837 = vpop.permute.xlu0 %836
    %v839 = vsel %vm102, %v837, 0.0
    %840 = vadd.xlane.f32.xlu0 %v839
    %v841 = vpop.xlane.xlu0 %840
    %v842 = vadd.f32 %v54, %v841
    %v843 = vmax.f32 %v842, 0.0
    %v844 = vsel %vm108, %v843, -inf
    %845 = vmax.xlane.f32.xlu0 %v844
    %v846 = vpop.xlane.xlu0 %845
    %v847 = vsub.f32 %v843, %v846
    %v848 = vmul.f32 %v847, 1.442695
    %v849 = vpow.pop %v848
    %v850 = vsel %vm108, %v849, 0.0
    %851 = vadd.xlane.f32.xlu0 %v850
    %v852 = vpop.xlane.xlu0 %851
    %v853 = vrcp.pop %v852
    %v854 = vmul.f32 %v849, %v853
    %v855 = vlaneseq
    %v856 = vshrl.u32 %v855, 7
    %v857 = vsub.s32 0, %v856
    %v858 = vrot.slane %v854, %v857
    %860 = vbcast.lane.b32.xlu0 %v858, 256
    %v861 = vpop.permute.xlu0 %860
    %v862 = vlaneseq
    %v863 = vshrl.u32 %v862, 7
    %v864 = vsub.s32 1, %v863
    %v865 = vrot.slane %v854, %v864
    %867 = vbcast.lane.b32.xlu0 %v865, 256
    %v868 = vpop.permute.xlu0 %867
    %v869 = vlaneseq
    %v870 = vshrl.u32 %v869, 7
    %v871 = vsub.s32 2, %v870
    %v872 = vrot.slane %v854, %v871
    %874 = vbcast.lane.b32.xlu0 %v872, 256
    %v875 = vpop.permute.xlu0 %874
    %v876 = vlaneseq
    %v877 = vshrl.u32 %v876, 7
    %v878 = vsub.s32 3, %v877
    %v879 = vrot.slane %v854, %v878
    %881 = vbcast.lane.b32.xlu0 %v879, 256
    %v882 = vpop.permute.xlu0 %881
    %v883 = vlaneseq
    %v884 = vshrl.u32 %v883, 7
    %v885 = vsub.s32 4, %v884
    %v886 = vrot.slane %v854, %v885
    %888 = vbcast.lane.b32.xlu0 %v886, 256
    %v889 = vpop.permute.xlu0 %888
    %v890 = vlaneseq
    %v891 = vshrl.u32 %v890, 7
    %v892 = vsub.s32 5, %v891
    %v893 = vrot.slane %v854, %v892
    %895 = vbcast.lane.b32.xlu0 %v893, 256
    %v896 = vpop.permute.xlu0 %895
    %v897 = vlaneseq
    %v898 = vshrl.u32 %v897, 7
    %v899 = vsub.s32 6, %v898
    %v900 = vrot.slane %v854, %v899
    %902 = vbcast.lane.b32.xlu0 %v900, 256
    %v903 = vpop.permute.xlu0 %902
    %v904 = vlaneseq
    %v905 = vshrl.u32 %v904, 7
    %v906 = vsub.s32 7, %v905
    %v907 = vrot.slane %v854, %v906
    %909 = vbcast.lane.b32.xlu0 %v907, 256
    %v910 = vpop.permute.xlu0 %909
    %v911 = vmul.f32 %v861, %v55
    %v912 = vmul.f32 %v868, %v56
    %v913 = vmul.f32 %v875, %v57
    %v914 = vmul.f32 %v882, %v58
    %v915 = vmul.f32 %v889, %v59
    %v916 = vmul.f32 %v896, %v60
    %v917 = vmul.f32 %v903, %v61
    %v918 = vmul.f32 %v910, %v62
    %v919 = vrot.slane %v911, 4
    %v920 = vadd.f32 %v911, %v919
    %v921 = vrot.slane %v920, 2
    %v922 = vadd.f32 %v920, %v921
    %v923 = vrot.slane %v922, 1
    %v924 = vadd.f32 %v922, %v923
    %v925 = vrot.slane %v912, 4
    %v926 = vadd.f32 %v912, %v925
    %v927 = vrot.slane %v926, 2
    %v928 = vadd.f32 %v926, %v927
    %v929 = vrot.slane %v928, 1
    %v930 = vadd.f32 %v928, %v929
    %v931 = vrot.slane %v913, 4
    %v932 = vadd.f32 %v913, %v931
    %v933 = vrot.slane %v932, 2
    %v934 = vadd.f32 %v932, %v933
    %v935 = vrot.slane %v934, 1
    %v936 = vadd.f32 %v934, %v935
    %v937 = vrot.slane %v914, 4
    %v938 = vadd.f32 %v914, %v937
    %v939 = vrot.slane %v938, 2
    %v940 = vadd.f32 %v938, %v939
    %v941 = vrot.slane %v940, 1
    %v942 = vadd.f32 %v940, %v941
    %v943 = vrot.slane %v915, 4
    %v944 = vadd.f32 %v915, %v943
    %v945 = vrot.slane %v944, 2
    %v946 = vadd.f32 %v944, %v945
    %v947 = vrot.slane %v946, 1
    %v948 = vadd.f32 %v946, %v947
    %v949 = vrot.slane %v916, 4
    %v950 = vadd.f32 %v916, %v949
    %v951 = vrot.slane %v950, 2
    %v952 = vadd.f32 %v950, %v951
    %v953 = vrot.slane %v952, 1
    %v954 = vadd.f32 %v952, %v953
    %v955 = vrot.slane %v917, 4
    %v956 = vadd.f32 %v917, %v955
    %v957 = vrot.slane %v956, 2
    %v958 = vadd.f32 %v956, %v957
    %v959 = vrot.slane %v958, 1
    %v960 = vadd.f32 %v958, %v959
    %v961 = vrot.slane %v918, 4
    %v962 = vadd.f32 %v918, %v961
    %v963 = vrot.slane %v962, 2
    %v964 = vadd.f32 %v962, %v963
    %v965 = vrot.slane %v964, 1
    %v966 = vadd.f32 %v964, %v965
    %967 = vset.pattern.permute.xlu0 0
    %968 = vperm.xlu0 %967, %v802
    %v969 = vpop.permute.xlu0 %968
    %vm970 = vcmp.eq.s32.totalorder %v91, %v969
    %v971 = vsel %vm970, 1, 0
    %v972 = vcvt.s32.f32 %v971
    %973 = vmatprep.subr.mxu0 0.0
    %974 = vmatpush1.msra.mxu0 %v84
    %975 = vmatprep.subr.mxu0 0.0
    %976 = vmatpush1.msra.mxu0 %v83
    %977 = vmatprep.subr.mxu0 0.0
    %978 = vmatpush1.msra.mxu0 %v82
    %979 = vmatprep.subr.mxu0 0.0
    %980 = vmatpush1.msra.mxu0 %v81
    %981 = vmatprep.subr.mxu0 0.0
    %982 = vmatpush1.msra.mxu0 %v80
    %983 = vmatprep.subr.mxu0 0.0
    %984 = vmatpush1.msra.mxu0 %v79
    %985 = vmatprep.subr.mxu0 0.0
    %986 = vmatpush1.msra.mxu0 %v78
    %987 = vmatprep.subr.mxu0 0.0
    %988 = vmatpush1.msra.mxu0 %v77
    %989 = vmatprep.subr.mxu0 0.0
    %990 = vmatpush1.msra.mxu0 %v76
    %991 = vmatprep.subr.mxu0 0.0
    %992 = vmatpush1.msra.mxu0 %v75
    %993 = vmatprep.subr.mxu0 0.0
    %994 = vmatpush1.msra.mxu0 %v74
    %995 = vmatprep.subr.mxu0 0.0
    %996 = vmatpush1.msra.mxu0 %v73
    %997 = vmatprep.subr.mxu0 0.0
    %998 = vmatpush1.msra.mxu0 %v72
    %999 = vmatprep.subr.mxu0 0.0
    %1000 = vmatpush1.msra.mxu0 %v71
    %1001 = vmatprep.subr.mxu0 0.0
    %1002 = vmatpush1.msra.mxu0 %v70
    %1003 = vmatprep.subr.mxu0 0.0
    %1004 = vmatpush1.msra.mxu0 %v69
    %1005 = vmatprep.subr.mxu0 0.0
    %1006 = vmatpush2.msra.mxu0 0.0
    %1007 = vmatprep.subr.mxu0 0.0
    %1008 = vmatpush2.msra.mxu0 0.0
    %1009 = vmatprep.subr.mxu0 0.0
    %1010 = vmatpush2.msra.mxu0 0.0
    %1011 = vmatprep.subr.mxu0 0.0
    %1012 = vmatpush2.msra.mxu0 0.0
    %1013 = vmatprep.subr.mxu0 0.0
    %1014 = vmatpush2.msra.mxu0 0.0
    %1015 = vmatprep.subr.mxu0 0.0
    %1016 = vmatpush2.msra.mxu0 0.0
    %1017 = vmatprep.subr.mxu0 0.0
    %1018 = vmatpush2.msra.mxu0 0.0
    %1019 = vmatprep.subr.mxu0 0.0
    %1020 = vmatpush2.msra.mxu0 0.0
    %1021 = vmatprep.subr.mxu0 0.0
    %1022 = vmatpush2.msra.mxu0 0.0
    %1023 = vmatprep.subr.mxu0 0.0
    %1024 = vmatpush2.msra.mxu0 0.0
    %1025 = vmatprep.subr.mxu0 0.0
    %1026 = vmatpush2.msra.mxu0 0.0
    %1027 = vmatprep.subr.mxu0 0.0
    %1028 = vmatpush2.msra.mxu0 0.0
    %1029 = vmatprep.subr.mxu0 0.0
    %1030 = vmatpush2.msra.mxu0 0.0
    %1031 = vmatprep.subr.mxu0 0.0
    %1032 = vmatpush2.msra.mxu0 0.0
    %1033 = vmatprep.subr.mxu0 0.0
    %1034 = vmatpush2.msra.mxu0 0.0
    %1035 = vmatprep.subr.mxu0 0.0
    %1036 = vmatpush2.msra.mxu0 0.0
    %1037 = vmatprep.mubr.f32.mxu0 0.0
    %1038 = vmatmul.mubr.f32.gmra.mxu0 %v972
    %v1039 = vpop.f32.mrf.mxu0
    %v1040 = vadd.f32 0.0, %v1039
    %v1041 = vpop.f32.mrf.mxu0
    %1042 = vdwg.mxu0
    %v1044 = vrot.slane %v1040, 1
    %v1045 = vrot.slane %v1040, 2
    %v1046 = vrot.slane %v1040, 3
    %v1047 = vrot.slane %v1040, 4
    %v1048 = vrot.slane %v1040, 5
    %v1049 = vrot.slane %v1040, 6
    %v1050 = vrot.slane %v1040, 7
    %v1059 = vadd.f32 %v924, %v1040
    %v1060 = vadd.f32 %v930, %v1044
    %v1061 = vadd.f32 %v936, %v1045
    %v1062 = vadd.f32 %v942, %v1046
    %v1063 = vadd.f32 %v948, %v1047
    %v1064 = vadd.f32 %v954, %v1048
    %v1065 = vadd.f32 %v960, %v1049
    %v1066 = vadd.f32 %v966, %v1050
    %1067 = vmatprep.subr.mxu0 0.0
    %1068 = vmatpush1.msra.mxu0 0.0
    %1069 = vmatprep.subr.mxu0 0.0
    %1070 = vmatpush1.msra.mxu0 0.0
    %1071 = vmatprep.subr.mxu0 0.0
    %1072 = vmatpush1.msra.mxu0 0.0
    %1073 = vmatprep.subr.mxu0 0.0
    %1074 = vmatpush1.msra.mxu0 0.0
    %1075 = vmatprep.subr.mxu0 0.0
    %1076 = vmatpush1.msra.mxu0 0.0
    %1077 = vmatprep.subr.mxu0 0.0
    %1078 = vmatpush1.msra.mxu0 0.0
    %1079 = vmatprep.subr.mxu0 0.0
    %1080 = vmatpush1.msra.mxu0 0.0
    %1081 = vmatprep.subr.mxu0 0.0
    %1082 = vmatpush1.msra.mxu0 0.0
    %1083 = vmatprep.subr.mxu0 0.0
    %1084 = vmatpush1.msra.mxu0 0.0
    %1085 = vmatprep.subr.mxu0 0.0
    %1086 = vmatpush1.msra.mxu0 0.0
    %1087 = vmatprep.subr.mxu0 0.0
    %1088 = vmatpush1.msra.mxu0 0.0
    %1089 = vmatprep.subr.mxu0 0.0
    %1090 = vmatpush1.msra.mxu0 0.0
    %1091 = vmatprep.subr.mxu0 0.0
    %1092 = vmatpush1.msra.mxu0 %v66
    %1093 = vmatprep.subr.mxu0 0.0
    %1094 = vmatpush1.msra.mxu0 %v65
    %1095 = vmatprep.subr.mxu0 0.0
    %1096 = vmatpush1.msra.mxu0 %v64
    %1097 = vmatprep.subr.mxu0 0.0
    %1098 = vmatpush1.msra.mxu0 %v63
    %1099 = vmatprep.subr.mxu0 0.0
    %1100 = vmatpush2.msra.mxu0 0.0
    %1101 = vmatprep.subr.mxu0 0.0
    %1102 = vmatpush2.msra.mxu0 0.0
    %1103 = vmatprep.subr.mxu0 0.0
    %1104 = vmatpush2.msra.mxu0 0.0
    %1105 = vmatprep.subr.mxu0 0.0
    %1106 = vmatpush2.msra.mxu0 0.0
    %1107 = vmatprep.subr.mxu0 0.0
    %1108 = vmatpush2.msra.mxu0 0.0
    %1109 = vmatprep.subr.mxu0 0.0
    %1110 = vmatpush2.msra.mxu0 0.0
    %1111 = vmatprep.subr.mxu0 0.0
    %1112 = vmatpush2.msra.mxu0 0.0
    %1113 = vmatprep.subr.mxu0 0.0
    %1114 = vmatpush2.msra.mxu0 0.0
    %1115 = vmatprep.subr.mxu0 0.0
    %1116 = vmatpush2.msra.mxu0 0.0
    %1117 = vmatprep.subr.mxu0 0.0
    %1118 = vmatpush2.msra.mxu0 0.0
    %1119 = vmatprep.subr.mxu0 0.0
    %1120 = vmatpush2.msra.mxu0 0.0
    %1121 = vmatprep.subr.mxu0 0.0
    %1122 = vmatpush2.msra.mxu0 0.0
    %1123 = vmatprep.subr.mxu0 0.0
    %1124 = vmatpush2.msra.mxu0 0.0
    %1125 = vmatprep.subr.mxu0 0.0
    %1126 = vmatpush2.msra.mxu0 0.0
    %1127 = vmatprep.subr.mxu0 0.0
    %1128 = vmatpush2.msra.mxu0 0.0
    %1129 = vmatprep.subr.mxu0 0.0
    %1130 = vmatpush2.msra.mxu0 0.0
    %1131 = vmatprep.mubr.f32.mxu0 0.0
    %1132 = vmatmul.mubr.f32.gmra.mxu0 %v704
    %v1133 = vpop.f32.mrf.mxu0
    %v1134 = vadd.f32 0.0, %v1133
    %v1135 = vpop.f32.mrf.mxu0
    %1136 = vdwg.mxu0
    %v1138 = vrot.slane %v1134, 1
    %v1139 = vrot.slane %v1134, 2
    %v1140 = vrot.slane %v1134, 3
    %v1141 = vrot.slane %v1134, 4
    %v1142 = vrot.slane %v1134, 5
    %v1143 = vrot.slane %v1134, 6
    %v1144 = vrot.slane %v1134, 7
    %v1153 = vadd.f32 %v1059, %v1134
    %v1154 = vadd.f32 %v1060, %v1138
    %v1155 = vadd.f32 %v1061, %v1139
    %v1156 = vadd.f32 %v1062, %v1140
    %v1157 = vadd.f32 %v1063, %v1141
    %v1158 = vadd.f32 %v1064, %v1142
    %v1159 = vadd.f32 %v1065, %v1143
    %v1160 = vadd.f32 %v1066, %v1144
    %v1161 = vadd.f32 %v1153, %v433
    %v1162 = vadd.f32 %v1154, %v433
    %v1163 = vadd.f32 %v1155, %v433
    %v1164 = vadd.f32 %v1156, %v433
    %v1165 = vadd.f32 %v1157, %v433
    %v1166 = vadd.f32 %v1158, %v433
    %v1167 = vadd.f32 %v1159, %v433
    %v1168 = vadd.f32 %v1160, %v433
    %v1169 = vxor.u32 %v1161, 2147483648
    %v1170 = vxor.u32 %v1162, 2147483648
    %v1171 = vxor.u32 %v1163, 2147483648
    %v1172 = vxor.u32 %v1164, 2147483648
    %v1173 = vxor.u32 %v1165, 2147483648
    %v1174 = vxor.u32 %v1166, 2147483648
    %v1175 = vxor.u32 %v1167, 2147483648
    %v1176 = vxor.u32 %v1168, 2147483648
    %v1177 = vmul.f32 %v1169, 1.442695
    %v1178 = vpow.pop %v1177
    %v1179 = vmul.f32 %v1170, 1.442695
    %v1180 = vpow.pop %v1179
    %v1181 = vmul.f32 %v1171, 1.442695
    %v1182 = vpow.pop %v1181
    %v1183 = vmul.f32 %v1172, 1.442695
    %v1184 = vpow.pop %v1183
    %v1185 = vmul.f32 %v1173, 1.442695
    %v1186 = vpow.pop %v1185
    %v1187 = vmul.f32 %v1174, 1.442695
    %v1188 = vpow.pop %v1187
    %v1189 = vmul.f32 %v1175, 1.442695
    %v1190 = vpow.pop %v1189
    %v1191 = vmul.f32 %v1176, 1.442695
    %v1192 = vpow.pop %v1191
    %v1193 = vadd.f32 %v1178, 1.0
    %v1194 = vadd.f32 %v1180, 1.0
    %v1195 = vadd.f32 %v1182, 1.0
    %v1196 = vadd.f32 %v1184, 1.0
    %v1197 = vadd.f32 %v1186, 1.0
    %v1198 = vadd.f32 %v1188, 1.0
    %v1199 = vadd.f32 %v1190, 1.0
    %v1200 = vadd.f32 %v1192, 1.0
    %v1201 = vrcp.pop %v1193
    %v1202 = vmul.f32 1.0, %v1201
    %v1203 = vrcp.pop %v1194
    %v1204 = vmul.f32 1.0, %v1203
    %v1205 = vrcp.pop %v1195
    %v1206 = vmul.f32 1.0, %v1205
    %v1207 = vrcp.pop %v1196
    %v1208 = vmul.f32 1.0, %v1207
    %v1209 = vrcp.pop %v1197
    %v1210 = vmul.f32 1.0, %v1209
    %v1211 = vrcp.pop %v1198
    %v1212 = vmul.f32 1.0, %v1211
    %v1213 = vrcp.pop %v1199
    %v1214 = vmul.f32 1.0, %v1213
    %v1215 = vrcp.pop %v1200
    %v1216 = vmul.f32 1.0, %v1215
    %v1217 = vtanh.pop %v1161
    %v1218 = vtanh.pop %v1162
    %v1219 = vtanh.pop %v1163
    %v1220 = vtanh.pop %v1164
    %v1221 = vtanh.pop %v1165
    %v1222 = vtanh.pop %v1166
    %v1223 = vtanh.pop %v1167
    %v1224 = vtanh.pop %v1168
    %v1225 = vmul.f32 %v1202, %v611
    %v1226 = vmul.f32 %v1204, %v612
    %v1227 = vmul.f32 %v1206, %v613
    %v1228 = vmul.f32 %v1208, %v614
    %v1229 = vmul.f32 %v1210, %v615
    %v1230 = vmul.f32 %v1212, %v616
    %v1231 = vmul.f32 %v1214, %v617
    %v1232 = vmul.f32 %v1216, %v618
    %1241 = vrot.lane.b32.xlu0 %v1217, 64
    %v1242 = vpop.permute.xlu0 %1241
    %1243 = vrot.lane.b32.xlu0 %v1218, 64
    %v1244 = vpop.permute.xlu0 %1243
    %1245 = vrot.lane.b32.xlu0 %v1219, 64
    %v1246 = vpop.permute.xlu0 %1245
    %1247 = vrot.lane.b32.xlu0 %v1220, 64
    %v1248 = vpop.permute.xlu0 %1247
    %1249 = vrot.lane.b32.xlu0 %v1221, 64
    %v1250 = vpop.permute.xlu0 %1249
    %1251 = vrot.lane.b32.xlu0 %v1222, 64
    %v1252 = vpop.permute.xlu0 %1251
    %1253 = vrot.lane.b32.xlu0 %v1223, 64
    %v1254 = vpop.permute.xlu0 %1253
    %1255 = vrot.lane.b32.xlu0 %v1224, 64
    %v1256 = vpop.permute.xlu0 %1255
    %v1265 = vmul.f32 %v1202, %v1242
    %v1266 = vmul.f32 %v1204, %v1244
    %v1267 = vmul.f32 %v1206, %v1246
    %v1268 = vmul.f32 %v1208, %v1248
    %v1269 = vmul.f32 %v1210, %v1250
    %v1270 = vmul.f32 %v1212, %v1252
    %v1271 = vmul.f32 %v1214, %v1254
    %v1272 = vmul.f32 %v1216, %v1256
    %1281 = vrot.lane.b32.xlu0 %v1265, 32
    %v1282 = vpop.permute.xlu0 %1281
    %1283 = vrot.lane.b32.xlu0 %v1266, 32
    %v1284 = vpop.permute.xlu0 %1283
    %1285 = vrot.lane.b32.xlu0 %v1267, 32
    %v1286 = vpop.permute.xlu0 %1285
    %1287 = vrot.lane.b32.xlu0 %v1268, 32
    %v1288 = vpop.permute.xlu0 %1287
    %1289 = vrot.lane.b32.xlu0 %v1269, 32
    %v1290 = vpop.permute.xlu0 %1289
    %1291 = vrot.lane.b32.xlu0 %v1270, 32
    %v1292 = vpop.permute.xlu0 %1291
    %1293 = vrot.lane.b32.xlu0 %v1271, 32
    %v1294 = vpop.permute.xlu0 %1293
    %1295 = vrot.lane.b32.xlu0 %v1272, 32
    %v1296 = vpop.permute.xlu0 %1295
    %v1305 = vadd.f32 %v1225, %v1282
    %v1306 = vadd.f32 %v1226, %v1284
    %v1307 = vadd.f32 %v1227, %v1286
    %v1308 = vadd.f32 %v1228, %v1288
    %v1309 = vadd.f32 %v1229, %v1290
    %v1310 = vadd.f32 %v1230, %v1292
    %v1311 = vadd.f32 %v1231, %v1294
    %v1312 = vadd.f32 %v1232, %v1296
    %v1313 = vtanh.pop %v1305
    %v1314 = vtanh.pop %v1306
    %v1315 = vtanh.pop %v1307
    %v1316 = vtanh.pop %v1308
    %v1317 = vtanh.pop %v1309
    %v1318 = vtanh.pop %v1310
    %v1319 = vtanh.pop %v1311
    %v1320 = vtanh.pop %v1312
    %1329 = vrot.lane.b32.xlu0 %v1313, 64
    %v1330 = vpop.permute.xlu0 %1329
    %1331 = vrot.lane.b32.xlu0 %v1314, 64
    %v1332 = vpop.permute.xlu0 %1331
    %1333 = vrot.lane.b32.xlu0 %v1315, 64
    %v1334 = vpop.permute.xlu0 %1333
    %1335 = vrot.lane.b32.xlu0 %v1316, 64
    %v1336 = vpop.permute.xlu0 %1335
    %1337 = vrot.lane.b32.xlu0 %v1317, 64
    %v1338 = vpop.permute.xlu0 %1337
    %1339 = vrot.lane.b32.xlu0 %v1318, 64
    %v1340 = vpop.permute.xlu0 %1339
    %1341 = vrot.lane.b32.xlu0 %v1319, 64
    %v1342 = vpop.permute.xlu0 %1341
    %1343 = vrot.lane.b32.xlu0 %v1320, 64
    %v1344 = vpop.permute.xlu0 %1343
    %v1353 = vmul.f32 %v1202, %v1330
    %v1354 = vmul.f32 %v1204, %v1332
    %v1355 = vmul.f32 %v1206, %v1334
    %v1356 = vmul.f32 %v1208, %v1336
    %v1357 = vmul.f32 %v1210, %v1338
    %v1358 = vmul.f32 %v1212, %v1340
    %v1359 = vmul.f32 %v1214, %v1342
    %v1360 = vmul.f32 %v1216, %v1344
    %v1369 = vrot.slane %v1354, 7
    %v1370 = vsel %vm682, %v1369, %v1353
    %v1371 = vrot.slane %v1355, 6
    %v1372 = vsel %vm685, %v1371, %v1370
    %v1373 = vrot.slane %v1356, 5
    %v1374 = vsel %vm688, %v1373, %v1372
    %v1375 = vrot.slane %v1357, 4
    %v1376 = vsel %vm691, %v1375, %v1374
    %v1377 = vrot.slane %v1358, 3
    %v1378 = vsel %vm694, %v1377, %v1376
    %v1379 = vrot.slane %v1359, 2
    %v1380 = vsel %vm697, %v1379, %v1378
    %v1381 = vrot.slane %v1360, 1
    %v1382 = vsel %vm700, %v1381, %v1380
    %1383 = vrot.lane.b32.xlu0 %v1382, 32
    %v1384 = vpop.permute.xlu0 %1383
    %v1385 = vsel %vm102, %v1384, 0
    %1387 = vmatprep.subr.mxu0 0.0
    %1388 = vmatpush1.msra.mxu0 0.0
    %1389 = vmatprep.subr.mxu0 0.0
    %1390 = vmatpush1.msra.mxu0 0.0
    %1391 = vmatprep.subr.mxu0 0.0
    %1392 = vmatpush1.msra.mxu0 0.0
    %1393 = vmatprep.subr.mxu0 0.0
    %1394 = vmatpush1.msra.mxu0 0.0
    %1395 = vmatprep.subr.mxu0 0.0
    %1396 = vmatpush1.msra.mxu0 0.0
    %1397 = vmatprep.subr.mxu0 0.0
    %1398 = vmatpush1.msra.mxu0 0.0
    %1399 = vmatprep.subr.mxu0 0.0
    %1400 = vmatpush1.msra.mxu0 0.0
    %1401 = vmatprep.subr.mxu0 0.0
    %1402 = vmatpush1.msra.mxu0 0.0
    %1403 = vmatprep.subr.mxu0 0.0
    %1404 = vmatpush1.msra.mxu0 0.0
    %1405 = vmatprep.subr.mxu0 0.0
    %1406 = vmatpush1.msra.mxu0 0.0
    %1407 = vmatprep.subr.mxu0 0.0
    %1408 = vmatpush1.msra.mxu0 0.0
    %1409 = vmatprep.subr.mxu0 0.0
    %1410 = vmatpush1.msra.mxu0 0.0
    %1411 = vmatprep.subr.mxu0 0.0
    %1412 = vmatpush1.msra.mxu0 %v88
    %1413 = vmatprep.subr.mxu0 0.0
    %1414 = vmatpush1.msra.mxu0 %v87
    %1415 = vmatprep.subr.mxu0 0.0
    %1416 = vmatpush1.msra.mxu0 %v86
    %1417 = vmatprep.subr.mxu0 0.0
    %1418 = vmatpush1.msra.mxu0 %v85
    %1419 = vmatprep.subr.mxu0 0.0
    %1420 = vmatpush2.msra.mxu0 0.0
    %1421 = vmatprep.subr.mxu0 0.0
    %1422 = vmatpush2.msra.mxu0 0.0
    %1423 = vmatprep.subr.mxu0 0.0
    %1424 = vmatpush2.msra.mxu0 0.0
    %1425 = vmatprep.subr.mxu0 0.0
    %1426 = vmatpush2.msra.mxu0 0.0
    %1427 = vmatprep.subr.mxu0 0.0
    %1428 = vmatpush2.msra.mxu0 0.0
    %1429 = vmatprep.subr.mxu0 0.0
    %1430 = vmatpush2.msra.mxu0 0.0
    %1431 = vmatprep.subr.mxu0 0.0
    %1432 = vmatpush2.msra.mxu0 0.0
    %1433 = vmatprep.subr.mxu0 0.0
    %1434 = vmatpush2.msra.mxu0 0.0
    %1435 = vmatprep.subr.mxu0 0.0
    %1436 = vmatpush2.msra.mxu0 0.0
    %1437 = vmatprep.subr.mxu0 0.0
    %1438 = vmatpush2.msra.mxu0 0.0
    %1439 = vmatprep.subr.mxu0 0.0
    %1440 = vmatpush2.msra.mxu0 0.0
    %1441 = vmatprep.subr.mxu0 0.0
    %1442 = vmatpush2.msra.mxu0 0.0
    %1443 = vmatprep.subr.mxu0 0.0
    %1444 = vmatpush2.msra.mxu0 0.0
    %1445 = vmatprep.subr.mxu0 0.0
    %1446 = vmatpush2.msra.mxu0 0.0
    %1447 = vmatprep.subr.mxu0 0.0
    %1448 = vmatpush2.msra.mxu0 0.0
    %1449 = vmatprep.subr.mxu0 0.0
    %1450 = vmatpush2.msra.mxu0 0.0
    %1451 = vmatprep.mubr.f32.mxu0 0.0
    %1452 = vmatmul.mubr.f32.gmra.mxu0 %v1385
    %v1453 = vpop.f32.mrf.mxu0
    %v1454 = vadd.f32 %v671, %v1453
    %v1455 = vpop.f32.mrf.mxu0
    %1456 = vdwg.mxu0
    %s1457 = scalar_lea.vmem %s12, 8
    %1458 = vst [vmem:[%s1457] sm:$0xff] %v1454
    %1459 = vmax.xlane.f32.xlu0 %v1454
    %v1460 = vpop.xlane.xlu0 %1459
    %vm1461 = vcmp.ge.f32.partialorder %v1454, %v1460
    %v1462 = vsel %vm1461, %v91, 128
    %v1463 = vand.u32 %v1462, 65535
    %v1464 = vshra.s32 %v1462, 16
    %v1465 = vcvt.s32.f32 %v1463
    %v1466 = vcvt.s32.f32 %v1464
    %1467 = vmin.xlane.f32.xlu0 %v1466
    %v1468 = vpop.xlane.xlu0 %1467
    %vm1469 = vcmp.eq.f32.partialorder %v1466, %v1468
    %v1470 = vsel %vm1469, %v1465, inf
    %1471 = vmin.xlane.f32.xlu0 %v1470
    %v1472 = vpop.xlane.xlu0 %1471
    %v1473 = vcvt.f32.s32 %v1472
    %v1474 = vcvt.f32.s32 %v1468
    %v1475 = vshll.u32 %v1474, 16
    %v1476 = vadd.s32 %v1475, %v1473
    %s1477 = sld [smem:[#allocation2 + $0x1]]
    %p1478 = scmp.ne.s32.totalorder %s1477, 0
    %s1479 = scalar_lea.vmem %s1, 16
    %v1480 = vld [vmem:[%s1479] sm:$0xff]
    %s1481 = scalar_select %p1478, 1, 0
    %v1482 = vstv %s1481
    %vm1483 = vcmp.eq.s32.totalorder %v1482, 1
    %v1484 = vsel %vm1483, %v1480, %v1476
    %v1485 = vmul.f32 %v1353, %v804
    %v1486 = vmul.f32 %v1354, %v804
    %v1487 = vmul.f32 %v1355, %v804
    %v1488 = vmul.f32 %v1356, %v804
    %v1489 = vmul.f32 %v1357, %v804
    %v1490 = vmul.f32 %v1358, %v804
    %v1491 = vmul.f32 %v1359, %v804
    %v1492 = vmul.f32 %v1360, %v804
    %v1501 = vrot.slane %v1486, 7
    %v1502 = vsel %vm682, %v1501, %v1485
    %v1503 = vrot.slane %v1487, 6
    %v1504 = vsel %vm685, %v1503, %v1502
    %v1505 = vrot.slane %v1488, 5
    %v1506 = vsel %vm688, %v1505, %v1504
    %v1507 = vrot.slane %v1489, 4
    %v1508 = vsel %vm691, %v1507, %v1506
    %v1509 = vrot.slane %v1490, 3
    %v1510 = vsel %vm694, %v1509, %v1508
    %v1511 = vrot.slane %v1491, 2
    %v1512 = vsel %vm697, %v1511, %v1510
    %v1513 = vrot.slane %v1492, 1
    %v1514 = vsel %vm700, %v1513, %v1512
    %1515 = vrot.lane.b32.xlu0 %v1514, 32
    %v1516 = vpop.permute.xlu0 %1515
    %v1518 = vsel %vm102, %v1516, 0.0
    %1519 = vadd.xlane.f32.xlu0 %v1518
    %v1520 = vpop.xlane.xlu0 %1519
    %v1521 = vadd.f32 %v54, %v1520
    %v1522 = vmax.f32 %v1521, 0.0
    %v1523 = vsel %vm108, %v1522, -inf
    %1524 = vmax.xlane.f32.xlu0 %v1523
    %v1525 = vpop.xlane.xlu0 %1524
    %v1526 = vsub.f32 %v1522, %v1525
    %v1527 = vmul.f32 %v1526, 1.442695
    %v1528 = vpow.pop %v1527
    %v1529 = vsel %vm108, %v1528, 0.0
    %1530 = vadd.xlane.f32.xlu0 %v1529
    %v1531 = vpop.xlane.xlu0 %1530
    %v1532 = vrcp.pop %v1531
    %v1533 = vmul.f32 %v1528, %v1532
    %v1534 = vlaneseq
    %v1535 = vshrl.u32 %v1534, 7
    %v1536 = vsub.s32 0, %v1535
    %v1537 = vrot.slane %v1533, %v1536
    %1539 = vbcast.lane.b32.xlu0 %v1537, 256
    %v1540 = vpop.permute.xlu0 %1539
    %v1541 = vlaneseq
    %v1542 = vshrl.u32 %v1541, 7
    %v1543 = vsub.s32 1, %v1542
    %v1544 = vrot.slane %v1533, %v1543
    %1546 = vbcast.lane.b32.xlu0 %v1544, 256
    %v1547 = vpop.permute.xlu0 %1546
    %v1548 = vlaneseq
    %v1549 = vshrl.u32 %v1548, 7
    %v1550 = vsub.s32 2, %v1549
    %v1551 = vrot.slane %v1533, %v1550
    %1553 = vbcast.lane.b32.xlu0 %v1551, 256
    %v1554 = vpop.permute.xlu0 %1553
    %v1555 = vlaneseq
    %v1556 = vshrl.u32 %v1555, 7
    %v1557 = vsub.s32 3, %v1556
    %v1558 = vrot.slane %v1533, %v1557
    %1560 = vbcast.lane.b32.xlu0 %v1558, 256
    %v1561 = vpop.permute.xlu0 %1560
    %v1562 = vlaneseq
    %v1563 = vshrl.u32 %v1562, 7
    %v1564 = vsub.s32 4, %v1563
    %v1565 = vrot.slane %v1533, %v1564
    %1567 = vbcast.lane.b32.xlu0 %v1565, 256
    %v1568 = vpop.permute.xlu0 %1567
    %v1569 = vlaneseq
    %v1570 = vshrl.u32 %v1569, 7
    %v1571 = vsub.s32 5, %v1570
    %v1572 = vrot.slane %v1533, %v1571
    %1574 = vbcast.lane.b32.xlu0 %v1572, 256
    %v1575 = vpop.permute.xlu0 %1574
    %v1576 = vlaneseq
    %v1577 = vshrl.u32 %v1576, 7
    %v1578 = vsub.s32 6, %v1577
    %v1579 = vrot.slane %v1533, %v1578
    %1581 = vbcast.lane.b32.xlu0 %v1579, 256
    %v1582 = vpop.permute.xlu0 %1581
    %v1583 = vlaneseq
    %v1584 = vshrl.u32 %v1583, 7
    %v1585 = vsub.s32 7, %v1584
    %v1586 = vrot.slane %v1533, %v1585
    %1588 = vbcast.lane.b32.xlu0 %v1586, 256
    %v1589 = vpop.permute.xlu0 %1588
    %v1590 = vmul.f32 %v1540, %v55
    %v1591 = vmul.f32 %v1547, %v56
    %v1592 = vmul.f32 %v1554, %v57
    %v1593 = vmul.f32 %v1561, %v58
    %v1594 = vmul.f32 %v1568, %v59
    %v1595 = vmul.f32 %v1575, %v60
    %v1596 = vmul.f32 %v1582, %v61
    %v1597 = vmul.f32 %v1589, %v62
    %v1598 = vrot.slane %v1590, 4
    %v1599 = vadd.f32 %v1590, %v1598
    %v1600 = vrot.slane %v1599, 2
    %v1601 = vadd.f32 %v1599, %v1600
    %v1602 = vrot.slane %v1601, 1
    %v1603 = vadd.f32 %v1601, %v1602
    %v1604 = vrot.slane %v1591, 4
    %v1605 = vadd.f32 %v1591, %v1604
    %v1606 = vrot.slane %v1605, 2
    %v1607 = vadd.f32 %v1605, %v1606
    %v1608 = vrot.slane %v1607, 1
    %v1609 = vadd.f32 %v1607, %v1608
    %v1610 = vrot.slane %v1592, 4
    %v1611 = vadd.f32 %v1592, %v1610
    %v1612 = vrot.slane %v1611, 2
    %v1613 = vadd.f32 %v1611, %v1612
    %v1614 = vrot.slane %v1613, 1
    %v1615 = vadd.f32 %v1613, %v1614
    %v1616 = vrot.slane %v1593, 4
    %v1617 = vadd.f32 %v1593, %v1616
    %v1618 = vrot.slane %v1617, 2
    %v1619 = vadd.f32 %v1617, %v1618
    %v1620 = vrot.slane %v1619, 1
    %v1621 = vadd.f32 %v1619, %v1620
    %v1622 = vrot.slane %v1594, 4
    %v1623 = vadd.f32 %v1594, %v1622
    %v1624 = vrot.slane %v1623, 2
    %v1625 = vadd.f32 %v1623, %v1624
    %v1626 = vrot.slane %v1625, 1
    %v1627 = vadd.f32 %v1625, %v1626
    %v1628 = vrot.slane %v1595, 4
    %v1629 = vadd.f32 %v1595, %v1628
    %v1630 = vrot.slane %v1629, 2
    %v1631 = vadd.f32 %v1629, %v1630
    %v1632 = vrot.slane %v1631, 1
    %v1633 = vadd.f32 %v1631, %v1632
    %v1634 = vrot.slane %v1596, 4
    %v1635 = vadd.f32 %v1596, %v1634
    %v1636 = vrot.slane %v1635, 2
    %v1637 = vadd.f32 %v1635, %v1636
    %v1638 = vrot.slane %v1637, 1
    %v1639 = vadd.f32 %v1637, %v1638
    %v1640 = vrot.slane %v1597, 4
    %v1641 = vadd.f32 %v1597, %v1640
    %v1642 = vrot.slane %v1641, 2
    %v1643 = vadd.f32 %v1641, %v1642
    %v1644 = vrot.slane %v1643, 1
    %v1645 = vadd.f32 %v1643, %v1644
    %1646 = vset.pattern.permute.xlu0 0
    %1647 = vperm.xlu0 %1646, %v1484
    %v1648 = vpop.permute.xlu0 %1647
    %vm1649 = vcmp.eq.s32.totalorder %v91, %v1648
    %v1650 = vsel %vm1649, 1, 0
    %v1651 = vcvt.s32.f32 %v1650
    %1652 = vmatprep.subr.mxu0 0.0
    %1653 = vmatpush1.msra.mxu0 %v84
    %1654 = vmatprep.subr.mxu0 0.0
    %1655 = vmatpush1.msra.mxu0 %v83
    %1656 = vmatprep.subr.mxu0 0.0
    %1657 = vmatpush1.msra.mxu0 %v82
    %1658 = vmatprep.subr.mxu0 0.0
    %1659 = vmatpush1.msra.mxu0 %v81
    %1660 = vmatprep.subr.mxu0 0.0
    %1661 = vmatpush1.msra.mxu0 %v80
    %1662 = vmatprep.subr.mxu0 0.0
    %1663 = vmatpush1.msra.mxu0 %v79
    %1664 = vmatprep.subr.mxu0 0.0
    %1665 = vmatpush1.msra.mxu0 %v78
    %1666 = vmatprep.subr.mxu0 0.0
    %1667 = vmatpush1.msra.mxu0 %v77
    %1668 = vmatprep.subr.mxu0 0.0
    %1669 = vmatpush1.msra.mxu0 %v76
    %1670 = vmatprep.subr.mxu0 0.0
    %1671 = vmatpush1.msra.mxu0 %v75
    %1672 = vmatprep.subr.mxu0 0.0
    %1673 = vmatpush1.msra.mxu0 %v74
    %1674 = vmatprep.subr.mxu0 0.0
    %1675 = vmatpush1.msra.mxu0 %v73
    %1676 = vmatprep.subr.mxu0 0.0
    %1677 = vmatpush1.msra.mxu0 %v72
    %1678 = vmatprep.subr.mxu0 0.0
    %1679 = vmatpush1.msra.mxu0 %v71
    %1680 = vmatprep.subr.mxu0 0.0
    %1681 = vmatpush1.msra.mxu0 %v70
    %1682 = vmatprep.subr.mxu0 0.0
    %1683 = vmatpush1.msra.mxu0 %v69
    %1684 = vmatprep.subr.mxu0 0.0
    %1685 = vmatpush2.msra.mxu0 0.0
    %1686 = vmatprep.subr.mxu0 0.0
    %1687 = vmatpush2.msra.mxu0 0.0
    %1688 = vmatprep.subr.mxu0 0.0
    %1689 = vmatpush2.msra.mxu0 0.0
    %1690 = vmatprep.subr.mxu0 0.0
    %1691 = vmatpush2.msra.mxu0 0.0
    %1692 = vmatprep.subr.mxu0 0.0
    %1693 = vmatpush2.msra.mxu0 0.0
    %1694 = vmatprep.subr.mxu0 0.0
    %1695 = vmatpush2.msra.mxu0 0.0
    %1696 = vmatprep.subr.mxu0 0.0
    %1697 = vmatpush2.msra.mxu0 0.0
    %1698 = vmatprep.subr.mxu0 0.0
    %1699 = vmatpush2.msra.mxu0 0.0
    %1700 = vmatprep.subr.mxu0 0.0
    %1701 = vmatpush2.msra.mxu0 0.0
    %1702 = vmatprep.subr.mxu0 0.0
    %1703 = vmatpush2.msra.mxu0 0.0
    %1704 = vmatprep.subr.mxu0 0.0
    %1705 = vmatpush2.msra.mxu0 0.0
    %1706 = vmatprep.subr.mxu0 0.0
    %1707 = vmatpush2.msra.mxu0 0.0
    %1708 = vmatprep.subr.mxu0 0.0
    %1709 = vmatpush2.msra.mxu0 0.0
    %1710 = vmatprep.subr.mxu0 0.0
    %1711 = vmatpush2.msra.mxu0 0.0
    %1712 = vmatprep.subr.mxu0 0.0
    %1713 = vmatpush2.msra.mxu0 0.0
    %1714 = vmatprep.subr.mxu0 0.0
    %1715 = vmatpush2.msra.mxu0 0.0
    %1716 = vmatprep.mubr.f32.mxu0 0.0
    %1717 = vmatmul.mubr.f32.gmra.mxu0 %v1651
    %v1718 = vpop.f32.mrf.mxu0
    %v1719 = vadd.f32 0.0, %v1718
    %v1720 = vpop.f32.mrf.mxu0
    %1721 = vdwg.mxu0
    %v1723 = vrot.slane %v1719, 1
    %v1724 = vrot.slane %v1719, 2
    %v1725 = vrot.slane %v1719, 3
    %v1726 = vrot.slane %v1719, 4
    %v1727 = vrot.slane %v1719, 5
    %v1728 = vrot.slane %v1719, 6
    %v1729 = vrot.slane %v1719, 7
    %v1738 = vadd.f32 %v1603, %v1719
    %v1739 = vadd.f32 %v1609, %v1723
    %v1740 = vadd.f32 %v1615, %v1724
    %v1741 = vadd.f32 %v1621, %v1725
    %v1742 = vadd.f32 %v1627, %v1726
    %v1743 = vadd.f32 %v1633, %v1727
    %v1744 = vadd.f32 %v1639, %v1728
    %v1745 = vadd.f32 %v1645, %v1729
    %1746 = vmatprep.subr.mxu0 0.0
    %1747 = vmatpush1.msra.mxu0 0.0
    %1748 = vmatprep.subr.mxu0 0.0
    %1749 = vmatpush1.msra.mxu0 0.0
    %1750 = vmatprep.subr.mxu0 0.0
    %1751 = vmatpush1.msra.mxu0 0.0
    %1752 = vmatprep.subr.mxu0 0.0
    %1753 = vmatpush1.msra.mxu0 0.0
    %1754 = vmatprep.subr.mxu0 0.0
    %1755 = vmatpush1.msra.mxu0 0.0
    %1756 = vmatprep.subr.mxu0 0.0
    %1757 = vmatpush1.msra.mxu0 0.0
    %1758 = vmatprep.subr.mxu0 0.0
    %1759 = vmatpush1.msra.mxu0 0.0
    %1760 = vmatprep.subr.mxu0 0.0
    %1761 = vmatpush1.msra.mxu0 0.0
    %1762 = vmatprep.subr.mxu0 0.0
    %1763 = vmatpush1.msra.mxu0 0.0
    %1764 = vmatprep.subr.mxu0 0.0
    %1765 = vmatpush1.msra.mxu0 0.0
    %1766 = vmatprep.subr.mxu0 0.0
    %1767 = vmatpush1.msra.mxu0 0.0
    %1768 = vmatprep.subr.mxu0 0.0
    %1769 = vmatpush1.msra.mxu0 0.0
    %1770 = vmatprep.subr.mxu0 0.0
    %1771 = vmatpush1.msra.mxu0 %v66
    %1772 = vmatprep.subr.mxu0 0.0
    %1773 = vmatpush1.msra.mxu0 %v65
    %1774 = vmatprep.subr.mxu0 0.0
    %1775 = vmatpush1.msra.mxu0 %v64
    %1776 = vmatprep.subr.mxu0 0.0
    %1777 = vmatpush1.msra.mxu0 %v63
    %1778 = vmatprep.subr.mxu0 0.0
    %1779 = vmatpush2.msra.mxu0 0.0
    %1780 = vmatprep.subr.mxu0 0.0
    %1781 = vmatpush2.msra.mxu0 0.0
    %1782 = vmatprep.subr.mxu0 0.0
    %1783 = vmatpush2.msra.mxu0 0.0
    %1784 = vmatprep.subr.mxu0 0.0
    %1785 = vmatpush2.msra.mxu0 0.0
    %1786 = vmatprep.subr.mxu0 0.0
    %1787 = vmatpush2.msra.mxu0 0.0
    %1788 = vmatprep.subr.mxu0 0.0
    %1789 = vmatpush2.msra.mxu0 0.0
    %1790 = vmatprep.subr.mxu0 0.0
    %1791 = vmatpush2.msra.mxu0 0.0
    %1792 = vmatprep.subr.mxu0 0.0
    %1793 = vmatpush2.msra.mxu0 0.0
    %1794 = vmatprep.subr.mxu0 0.0
    %1795 = vmatpush2.msra.mxu0 0.0
    %1796 = vmatprep.subr.mxu0 0.0
    %1797 = vmatpush2.msra.mxu0 0.0
    %1798 = vmatprep.subr.mxu0 0.0
    %1799 = vmatpush2.msra.mxu0 0.0
    %1800 = vmatprep.subr.mxu0 0.0
    %1801 = vmatpush2.msra.mxu0 0.0
    %1802 = vmatprep.subr.mxu0 0.0
    %1803 = vmatpush2.msra.mxu0 0.0
    %1804 = vmatprep.subr.mxu0 0.0
    %1805 = vmatpush2.msra.mxu0 0.0
    %1806 = vmatprep.subr.mxu0 0.0
    %1807 = vmatpush2.msra.mxu0 0.0
    %1808 = vmatprep.subr.mxu0 0.0
    %1809 = vmatpush2.msra.mxu0 0.0
    %1810 = vmatprep.mubr.f32.mxu0 0.0
    %1811 = vmatmul.mubr.f32.gmra.mxu0 %v1385
    %v1812 = vpop.f32.mrf.mxu0
    %v1813 = vadd.f32 0.0, %v1812
    %v1814 = vpop.f32.mrf.mxu0
    %1815 = vdwg.mxu0
    %v1817 = vrot.slane %v1813, 1
    %v1818 = vrot.slane %v1813, 2
    %v1819 = vrot.slane %v1813, 3
    %v1820 = vrot.slane %v1813, 4
    %v1821 = vrot.slane %v1813, 5
    %v1822 = vrot.slane %v1813, 6
    %v1823 = vrot.slane %v1813, 7
    %v1832 = vadd.f32 %v1738, %v1813
    %v1833 = vadd.f32 %v1739, %v1817
    %v1834 = vadd.f32 %v1740, %v1818
    %v1835 = vadd.f32 %v1741, %v1819
    %v1836 = vadd.f32 %v1742, %v1820
    %v1837 = vadd.f32 %v1743, %v1821
    %v1838 = vadd.f32 %v1744, %v1822
    %v1839 = vadd.f32 %v1745, %v1823
    %v1840 = vadd.f32 %v1832, %v433
    %v1841 = vadd.f32 %v1833, %v433
    %v1842 = vadd.f32 %v1834, %v433
    %v1843 = vadd.f32 %v1835, %v433
    %v1844 = vadd.f32 %v1836, %v433
    %v1845 = vadd.f32 %v1837, %v433
    %v1846 = vadd.f32 %v1838, %v433
    %v1847 = vadd.f32 %v1839, %v433
    %v1848 = vxor.u32 %v1840, 2147483648
    %v1849 = vxor.u32 %v1841, 2147483648
    %v1850 = vxor.u32 %v1842, 2147483648
    %v1851 = vxor.u32 %v1843, 2147483648
    %v1852 = vxor.u32 %v1844, 2147483648
    %v1853 = vxor.u32 %v1845, 2147483648
    %v1854 = vxor.u32 %v1846, 2147483648
    %v1855 = vxor.u32 %v1847, 2147483648
    %v1856 = vmul.f32 %v1848, 1.442695
    %v1857 = vpow.pop %v1856
    %v1858 = vmul.f32 %v1849, 1.442695
    %v1859 = vpow.pop %v1858
    %v1860 = vmul.f32 %v1850, 1.442695
    %v1861 = vpow.pop %v1860
    %v1862 = vmul.f32 %v1851, 1.442695
    %v1863 = vpow.pop %v1862
    %v1864 = vmul.f32 %v1852, 1.442695
    %v1865 = vpow.pop %v1864
    %v1866 = vmul.f32 %v1853, 1.442695
    %v1867 = vpow.pop %v1866
    %v1868 = vmul.f32 %v1854, 1.442695
    %v1869 = vpow.pop %v1868
    %v1870 = vmul.f32 %v1855, 1.442695
    %v1871 = vpow.pop %v1870
    %v1872 = vadd.f32 %v1857, 1.0
    %v1873 = vadd.f32 %v1859, 1.0
    %v1874 = vadd.f32 %v1861, 1.0
    %v1875 = vadd.f32 %v1863, 1.0
    %v1876 = vadd.f32 %v1865, 1.0
    %v1877 = vadd.f32 %v1867, 1.0
    %v1878 = vadd.f32 %v1869, 1.0
    %v1879 = vadd.f32 %v1871, 1.0
    %v1880 = vrcp.pop %v1872
    %v1881 = vmul.f32 1.0, %v1880
    %v1882 = vrcp.pop %v1873
    %v1883 = vmul.f32 1.0, %v1882
    %v1884 = vrcp.pop %v1874
    %v1885 = vmul.f32 1.0, %v1884
    %v1886 = vrcp.pop %v1875
    %v1887 = vmul.f32 1.0, %v1886
    %v1888 = vrcp.pop %v1876
    %v1889 = vmul.f32 1.0, %v1888
    %v1890 = vrcp.pop %v1877
    %v1891 = vmul.f32 1.0, %v1890
    %v1892 = vrcp.pop %v1878
    %v1893 = vmul.f32 1.0, %v1892
    %v1894 = vrcp.pop %v1879
    %v1895 = vmul.f32 1.0, %v1894
    %v1896 = vtanh.pop %v1840
    %v1897 = vtanh.pop %v1841
    %v1898 = vtanh.pop %v1842
    %v1899 = vtanh.pop %v1843
    %v1900 = vtanh.pop %v1844
    %v1901 = vtanh.pop %v1845
    %v1902 = vtanh.pop %v1846
    %v1903 = vtanh.pop %v1847
    %v1904 = vmul.f32 %v1881, %v1305
    %v1905 = vmul.f32 %v1883, %v1306
    %v1906 = vmul.f32 %v1885, %v1307
    %v1907 = vmul.f32 %v1887, %v1308
    %v1908 = vmul.f32 %v1889, %v1309
    %v1909 = vmul.f32 %v1891, %v1310
    %v1910 = vmul.f32 %v1893, %v1311
    %v1911 = vmul.f32 %v1895, %v1312
    %1920 = vrot.lane.b32.xlu0 %v1896, 64
    %v1921 = vpop.permute.xlu0 %1920
    %1922 = vrot.lane.b32.xlu0 %v1897, 64
    %v1923 = vpop.permute.xlu0 %1922
    %1924 = vrot.lane.b32.xlu0 %v1898, 64
    %v1925 = vpop.permute.xlu0 %1924
    %1926 = vrot.lane.b32.xlu0 %v1899, 64
    %v1927 = vpop.permute.xlu0 %1926
    %1928 = vrot.lane.b32.xlu0 %v1900, 64
    %v1929 = vpop.permute.xlu0 %1928
    %1930 = vrot.lane.b32.xlu0 %v1901, 64
    %v1931 = vpop.permute.xlu0 %1930
    %1932 = vrot.lane.b32.xlu0 %v1902, 64
    %v1933 = vpop.permute.xlu0 %1932
    %1934 = vrot.lane.b32.xlu0 %v1903, 64
    %v1935 = vpop.permute.xlu0 %1934
    %v1944 = vmul.f32 %v1881, %v1921
    %v1945 = vmul.f32 %v1883, %v1923
    %v1946 = vmul.f32 %v1885, %v1925
    %v1947 = vmul.f32 %v1887, %v1927
    %v1948 = vmul.f32 %v1889, %v1929
    %v1949 = vmul.f32 %v1891, %v1931
    %v1950 = vmul.f32 %v1893, %v1933
    %v1951 = vmul.f32 %v1895, %v1935
    %1960 = vrot.lane.b32.xlu0 %v1944, 32
    %v1961 = vpop.permute.xlu0 %1960
    %1962 = vrot.lane.b32.xlu0 %v1945, 32
    %v1963 = vpop.permute.xlu0 %1962
    %1964 = vrot.lane.b32.xlu0 %v1946, 32
    %v1965 = vpop.permute.xlu0 %1964
    %1966 = vrot.lane.b32.xlu0 %v1947, 32
    %v1967 = vpop.permute.xlu0 %1966
    %1968 = vrot.lane.b32.xlu0 %v1948, 32
    %v1969 = vpop.permute.xlu0 %1968
    %1970 = vrot.lane.b32.xlu0 %v1949, 32
    %v1971 = vpop.permute.xlu0 %1970
    %1972 = vrot.lane.b32.xlu0 %v1950, 32
    %v1973 = vpop.permute.xlu0 %1972
    %1974 = vrot.lane.b32.xlu0 %v1951, 32
    %v1975 = vpop.permute.xlu0 %1974
    %v1984 = vadd.f32 %v1904, %v1961
    %v1985 = vadd.f32 %v1905, %v1963
    %v1986 = vadd.f32 %v1906, %v1965
    %v1987 = vadd.f32 %v1907, %v1967
    %v1988 = vadd.f32 %v1908, %v1969
    %v1989 = vadd.f32 %v1909, %v1971
    %v1990 = vadd.f32 %v1910, %v1973
    %v1991 = vadd.f32 %v1911, %v1975
    %v1992 = vtanh.pop %v1984
    %v1993 = vtanh.pop %v1985
    %v1994 = vtanh.pop %v1986
    %v1995 = vtanh.pop %v1987
    %v1996 = vtanh.pop %v1988
    %v1997 = vtanh.pop %v1989
    %v1998 = vtanh.pop %v1990
    %v1999 = vtanh.pop %v1991
    %2008 = vrot.lane.b32.xlu0 %v1992, 64
    %v2009 = vpop.permute.xlu0 %2008
    %2010 = vrot.lane.b32.xlu0 %v1993, 64
    %v2011 = vpop.permute.xlu0 %2010
    %2012 = vrot.lane.b32.xlu0 %v1994, 64
    %v2013 = vpop.permute.xlu0 %2012
    %2014 = vrot.lane.b32.xlu0 %v1995, 64
    %v2015 = vpop.permute.xlu0 %2014
    %2016 = vrot.lane.b32.xlu0 %v1996, 64
    %v2017 = vpop.permute.xlu0 %2016
    %2018 = vrot.lane.b32.xlu0 %v1997, 64
    %v2019 = vpop.permute.xlu0 %2018
    %2020 = vrot.lane.b32.xlu0 %v1998, 64
    %v2021 = vpop.permute.xlu0 %2020
    %2022 = vrot.lane.b32.xlu0 %v1999, 64
    %v2023 = vpop.permute.xlu0 %2022
    %v2032 = vmul.f32 %v1881, %v2009
    %v2033 = vmul.f32 %v1883, %v2011
    %v2034 = vmul.f32 %v1885, %v2013
    %v2035 = vmul.f32 %v1887, %v2015
    %v2036 = vmul.f32 %v1889, %v2017
    %v2037 = vmul.f32 %v1891, %v2019
    %v2038 = vmul.f32 %v1893, %v2021
    %v2039 = vmul.f32 %v1895, %v2023
    %v2048 = vrot.slane %v2033, 7
    %v2049 = vsel %vm682, %v2048, %v2032
    %v2050 = vrot.slane %v2034, 6
    %v2051 = vsel %vm685, %v2050, %v2049
    %v2052 = vrot.slane %v2035, 5
    %v2053 = vsel %vm688, %v2052, %v2051
    %v2054 = vrot.slane %v2036, 4
    %v2055 = vsel %vm691, %v2054, %v2053
    %v2056 = vrot.slane %v2037, 3
    %v2057 = vsel %vm694, %v2056, %v2055
    %v2058 = vrot.slane %v2038, 2
    %v2059 = vsel %vm697, %v2058, %v2057
    %v2060 = vrot.slane %v2039, 1
    %v2061 = vsel %vm700, %v2060, %v2059
    %2062 = vrot.lane.b32.xlu0 %v2061, 32
    %v2063 = vpop.permute.xlu0 %2062
    %v2064 = vsel %vm102, %v2063, 0
    %2066 = vmatprep.subr.mxu0 0.0
    %2067 = vmatpush1.msra.mxu0 0.0
    %2068 = vmatprep.subr.mxu0 0.0
    %2069 = vmatpush1.msra.mxu0 0.0
    %2070 = vmatprep.subr.mxu0 0.0
    %2071 = vmatpush1.msra.mxu0 0.0
    %2072 = vmatprep.subr.mxu0 0.0
    %2073 = vmatpush1.msra.mxu0 0.0
    %2074 = vmatprep.subr.mxu0 0.0
    %2075 = vmatpush1.msra.mxu0 0.0
    %2076 = vmatprep.subr.mxu0 0.0
    %2077 = vmatpush1.msra.mxu0 0.0
    %2078 = vmatprep.subr.mxu0 0.0
    %2079 = vmatpush1.msra.mxu0 0.0
    %2080 = vmatprep.subr.mxu0 0.0
    %2081 = vmatpush1.msra.mxu0 0.0
    %2082 = vmatprep.subr.mxu0 0.0
    %2083 = vmatpush1.msra.mxu0 0.0
    %2084 = vmatprep.subr.mxu0 0.0
    %2085 = vmatpush1.msra.mxu0 0.0
    %2086 = vmatprep.subr.mxu0 0.0
    %2087 = vmatpush1.msra.mxu0 0.0
    %2088 = vmatprep.subr.mxu0 0.0
    %2089 = vmatpush1.msra.mxu0 0.0
    %2090 = vmatprep.subr.mxu0 0.0
    %2091 = vmatpush1.msra.mxu0 %v88
    %2092 = vmatprep.subr.mxu0 0.0
    %2093 = vmatpush1.msra.mxu0 %v87
    %2094 = vmatprep.subr.mxu0 0.0
    %2095 = vmatpush1.msra.mxu0 %v86
    %2096 = vmatprep.subr.mxu0 0.0
    %2097 = vmatpush1.msra.mxu0 %v85
    %2098 = vmatprep.subr.mxu0 0.0
    %2099 = vmatpush2.msra.mxu0 0.0
    %2100 = vmatprep.subr.mxu0 0.0
    %2101 = vmatpush2.msra.mxu0 0.0
    %2102 = vmatprep.subr.mxu0 0.0
    %2103 = vmatpush2.msra.mxu0 0.0
    %2104 = vmatprep.subr.mxu0 0.0
    %2105 = vmatpush2.msra.mxu0 0.0
    %2106 = vmatprep.subr.mxu0 0.0
    %2107 = vmatpush2.msra.mxu0 0.0
    %2108 = vmatprep.subr.mxu0 0.0
    %2109 = vmatpush2.msra.mxu0 0.0
    %2110 = vmatprep.subr.mxu0 0.0
    %2111 = vmatpush2.msra.mxu0 0.0
    %2112 = vmatprep.subr.mxu0 0.0
    %2113 = vmatpush2.msra.mxu0 0.0
    %2114 = vmatprep.subr.mxu0 0.0
    %2115 = vmatpush2.msra.mxu0 0.0
    %2116 = vmatprep.subr.mxu0 0.0
    %2117 = vmatpush2.msra.mxu0 0.0
    %2118 = vmatprep.subr.mxu0 0.0
    %2119 = vmatpush2.msra.mxu0 0.0
    %2120 = vmatprep.subr.mxu0 0.0
    %2121 = vmatpush2.msra.mxu0 0.0
    %2122 = vmatprep.subr.mxu0 0.0
    %2123 = vmatpush2.msra.mxu0 0.0
    %2124 = vmatprep.subr.mxu0 0.0
    %2125 = vmatpush2.msra.mxu0 0.0
    %2126 = vmatprep.subr.mxu0 0.0
    %2127 = vmatpush2.msra.mxu0 0.0
    %2128 = vmatprep.subr.mxu0 0.0
    %2129 = vmatpush2.msra.mxu0 0.0
    %2130 = vmatprep.mubr.f32.mxu0 0.0
    %2131 = vmatmul.mubr.f32.gmra.mxu0 %v2064
    %v2132 = vpop.f32.mrf.mxu0
    %v2133 = vadd.f32 %v671, %v2132
    %v2134 = vpop.f32.mrf.mxu0
    %2135 = vdwg.mxu0
    %s2136 = scalar_lea.vmem %s12, 16
    %2137 = vst [vmem:[%s2136] sm:$0xff] %v2133
    %2138 = vmax.xlane.f32.xlu0 %v2133
    %v2139 = vpop.xlane.xlu0 %2138
    %vm2140 = vcmp.ge.f32.partialorder %v2133, %v2139
    %v2141 = vsel %vm2140, %v91, 128
    %v2142 = vand.u32 %v2141, 65535
    %v2143 = vshra.s32 %v2141, 16
    %v2144 = vcvt.s32.f32 %v2142
    %v2145 = vcvt.s32.f32 %v2143
    %2146 = vmin.xlane.f32.xlu0 %v2145
    %v2147 = vpop.xlane.xlu0 %2146
    %vm2148 = vcmp.eq.f32.partialorder %v2145, %v2147
    %v2149 = vsel %vm2148, %v2144, inf
    %2150 = vmin.xlane.f32.xlu0 %v2149
    %v2151 = vpop.xlane.xlu0 %2150
    %v2152 = vcvt.f32.s32 %v2151
    %v2153 = vcvt.f32.s32 %v2147
    %v2154 = vshll.u32 %v2153, 16
    %v2155 = vadd.s32 %v2154, %v2152
    %s2156 = sld [smem:[#allocation2 + $0x2]]
    %p2157 = scmp.ne.s32.totalorder %s2156, 0
    %s2158 = scalar_lea.vmem %s1, 24
    %v2159 = vld [vmem:[%s2158] sm:$0xff]
    %s2160 = scalar_select %p2157, 1, 0
    %v2161 = vstv %s2160
    %vm2162 = vcmp.eq.s32.totalorder %v2161, 1
    %v2163 = vsel %vm2162, %v2159, %v2155
    %v2164 = vmul.f32 %v2032, %v804
    %v2165 = vmul.f32 %v2033, %v804
    %v2166 = vmul.f32 %v2034, %v804
    %v2167 = vmul.f32 %v2035, %v804
    %v2168 = vmul.f32 %v2036, %v804
    %v2169 = vmul.f32 %v2037, %v804
    %v2170 = vmul.f32 %v2038, %v804
    %v2171 = vmul.f32 %v2039, %v804
    %v2180 = vrot.slane %v2165, 7
    %v2181 = vsel %vm682, %v2180, %v2164
    %v2182 = vrot.slane %v2166, 6
    %v2183 = vsel %vm685, %v2182, %v2181
    %v2184 = vrot.slane %v2167, 5
    %v2185 = vsel %vm688, %v2184, %v2183
    %v2186 = vrot.slane %v2168, 4
    %v2187 = vsel %vm691, %v2186, %v2185
    %v2188 = vrot.slane %v2169, 3
    %v2189 = vsel %vm694, %v2188, %v2187
    %v2190 = vrot.slane %v2170, 2
    %v2191 = vsel %vm697, %v2190, %v2189
    %v2192 = vrot.slane %v2171, 1
    %v2193 = vsel %vm700, %v2192, %v2191
    %2194 = vrot.lane.b32.xlu0 %v2193, 32
    %v2195 = vpop.permute.xlu0 %2194
    %v2197 = vsel %vm102, %v2195, 0.0
    %2198 = vadd.xlane.f32.xlu0 %v2197
    %v2199 = vpop.xlane.xlu0 %2198
    %v2200 = vadd.f32 %v54, %v2199
    %v2201 = vmax.f32 %v2200, 0.0
    %v2202 = vsel %vm108, %v2201, -inf
    %2203 = vmax.xlane.f32.xlu0 %v2202
    %v2204 = vpop.xlane.xlu0 %2203
    %v2205 = vsub.f32 %v2201, %v2204
    %v2206 = vmul.f32 %v2205, 1.442695
    %v2207 = vpow.pop %v2206
    %v2208 = vsel %vm108, %v2207, 0.0
    %2209 = vadd.xlane.f32.xlu0 %v2208
    %v2210 = vpop.xlane.xlu0 %2209
    %v2211 = vrcp.pop %v2210
    %v2212 = vmul.f32 %v2207, %v2211
    %v2213 = vlaneseq
    %v2214 = vshrl.u32 %v2213, 7
    %v2215 = vsub.s32 0, %v2214
    %v2216 = vrot.slane %v2212, %v2215
    %2218 = vbcast.lane.b32.xlu0 %v2216, 256
    %v2219 = vpop.permute.xlu0 %2218
    %v2220 = vlaneseq
    %v2221 = vshrl.u32 %v2220, 7
    %v2222 = vsub.s32 1, %v2221
    %v2223 = vrot.slane %v2212, %v2222
    %2225 = vbcast.lane.b32.xlu0 %v2223, 256
    %v2226 = vpop.permute.xlu0 %2225
    %v2227 = vlaneseq
    %v2228 = vshrl.u32 %v2227, 7
    %v2229 = vsub.s32 2, %v2228
    %v2230 = vrot.slane %v2212, %v2229
    %2232 = vbcast.lane.b32.xlu0 %v2230, 256
    %v2233 = vpop.permute.xlu0 %2232
    %v2234 = vlaneseq
    %v2235 = vshrl.u32 %v2234, 7
    %v2236 = vsub.s32 3, %v2235
    %v2237 = vrot.slane %v2212, %v2236
    %2239 = vbcast.lane.b32.xlu0 %v2237, 256
    %v2240 = vpop.permute.xlu0 %2239
    %v2241 = vlaneseq
    %v2242 = vshrl.u32 %v2241, 7
    %v2243 = vsub.s32 4, %v2242
    %v2244 = vrot.slane %v2212, %v2243
    %2246 = vbcast.lane.b32.xlu0 %v2244, 256
    %v2247 = vpop.permute.xlu0 %2246
    %v2248 = vlaneseq
    %v2249 = vshrl.u32 %v2248, 7
    %v2250 = vsub.s32 5, %v2249
    %v2251 = vrot.slane %v2212, %v2250
    %2253 = vbcast.lane.b32.xlu0 %v2251, 256
    %v2254 = vpop.permute.xlu0 %2253
    %v2255 = vlaneseq
    %v2256 = vshrl.u32 %v2255, 7
    %v2257 = vsub.s32 6, %v2256
    %v2258 = vrot.slane %v2212, %v2257
    %2260 = vbcast.lane.b32.xlu0 %v2258, 256
    %v2261 = vpop.permute.xlu0 %2260
    %v2262 = vlaneseq
    %v2263 = vshrl.u32 %v2262, 7
    %v2264 = vsub.s32 7, %v2263
    %v2265 = vrot.slane %v2212, %v2264
    %2267 = vbcast.lane.b32.xlu0 %v2265, 256
    %v2268 = vpop.permute.xlu0 %2267
    %v2269 = vmul.f32 %v2219, %v55
    %v2270 = vmul.f32 %v2226, %v56
    %v2271 = vmul.f32 %v2233, %v57
    %v2272 = vmul.f32 %v2240, %v58
    %v2273 = vmul.f32 %v2247, %v59
    %v2274 = vmul.f32 %v2254, %v60
    %v2275 = vmul.f32 %v2261, %v61
    %v2276 = vmul.f32 %v2268, %v62
    %v2277 = vrot.slane %v2269, 4
    %v2278 = vadd.f32 %v2269, %v2277
    %v2279 = vrot.slane %v2278, 2
    %v2280 = vadd.f32 %v2278, %v2279
    %v2281 = vrot.slane %v2280, 1
    %v2282 = vadd.f32 %v2280, %v2281
    %v2283 = vrot.slane %v2270, 4
    %v2284 = vadd.f32 %v2270, %v2283
    %v2285 = vrot.slane %v2284, 2
    %v2286 = vadd.f32 %v2284, %v2285
    %v2287 = vrot.slane %v2286, 1
    %v2288 = vadd.f32 %v2286, %v2287
    %v2289 = vrot.slane %v2271, 4
    %v2290 = vadd.f32 %v2271, %v2289
    %v2291 = vrot.slane %v2290, 2
    %v2292 = vadd.f32 %v2290, %v2291
    %v2293 = vrot.slane %v2292, 1
    %v2294 = vadd.f32 %v2292, %v2293
    %v2295 = vrot.slane %v2272, 4
    %v2296 = vadd.f32 %v2272, %v2295
    %v2297 = vrot.slane %v2296, 2
    %v2298 = vadd.f32 %v2296, %v2297
    %v2299 = vrot.slane %v2298, 1
    %v2300 = vadd.f32 %v2298, %v2299
    %v2301 = vrot.slane %v2273, 4
    %v2302 = vadd.f32 %v2273, %v2301
    %v2303 = vrot.slane %v2302, 2
    %v2304 = vadd.f32 %v2302, %v2303
    %v2305 = vrot.slane %v2304, 1
    %v2306 = vadd.f32 %v2304, %v2305
    %v2307 = vrot.slane %v2274, 4
    %v2308 = vadd.f32 %v2274, %v2307
    %v2309 = vrot.slane %v2308, 2
    %v2310 = vadd.f32 %v2308, %v2309
    %v2311 = vrot.slane %v2310, 1
    %v2312 = vadd.f32 %v2310, %v2311
    %v2313 = vrot.slane %v2275, 4
    %v2314 = vadd.f32 %v2275, %v2313
    %v2315 = vrot.slane %v2314, 2
    %v2316 = vadd.f32 %v2314, %v2315
    %v2317 = vrot.slane %v2316, 1
    %v2318 = vadd.f32 %v2316, %v2317
    %v2319 = vrot.slane %v2276, 4
    %v2320 = vadd.f32 %v2276, %v2319
    %v2321 = vrot.slane %v2320, 2
    %v2322 = vadd.f32 %v2320, %v2321
    %v2323 = vrot.slane %v2322, 1
    %v2324 = vadd.f32 %v2322, %v2323
    %2325 = vset.pattern.permute.xlu0 0
    %2326 = vperm.xlu0 %2325, %v2163
    %v2327 = vpop.permute.xlu0 %2326
    %vm2328 = vcmp.eq.s32.totalorder %v91, %v2327
    %v2329 = vsel %vm2328, 1, 0
    %v2330 = vcvt.s32.f32 %v2329
    %2331 = vmatprep.subr.mxu0 0.0
    %2332 = vmatpush1.msra.mxu0 %v84
    %2333 = vmatprep.subr.mxu0 0.0
    %2334 = vmatpush1.msra.mxu0 %v83
    %2335 = vmatprep.subr.mxu0 0.0
    %2336 = vmatpush1.msra.mxu0 %v82
    %2337 = vmatprep.subr.mxu0 0.0
    %2338 = vmatpush1.msra.mxu0 %v81
    %2339 = vmatprep.subr.mxu0 0.0
    %2340 = vmatpush1.msra.mxu0 %v80
    %2341 = vmatprep.subr.mxu0 0.0
    %2342 = vmatpush1.msra.mxu0 %v79
    %2343 = vmatprep.subr.mxu0 0.0
    %2344 = vmatpush1.msra.mxu0 %v78
    %2345 = vmatprep.subr.mxu0 0.0
    %2346 = vmatpush1.msra.mxu0 %v77
    %2347 = vmatprep.subr.mxu0 0.0
    %2348 = vmatpush1.msra.mxu0 %v76
    %2349 = vmatprep.subr.mxu0 0.0
    %2350 = vmatpush1.msra.mxu0 %v75
    %2351 = vmatprep.subr.mxu0 0.0
    %2352 = vmatpush1.msra.mxu0 %v74
    %2353 = vmatprep.subr.mxu0 0.0
    %2354 = vmatpush1.msra.mxu0 %v73
    %2355 = vmatprep.subr.mxu0 0.0
    %2356 = vmatpush1.msra.mxu0 %v72
    %2357 = vmatprep.subr.mxu0 0.0
    %2358 = vmatpush1.msra.mxu0 %v71
    %2359 = vmatprep.subr.mxu0 0.0
    %2360 = vmatpush1.msra.mxu0 %v70
    %2361 = vmatprep.subr.mxu0 0.0
    %2362 = vmatpush1.msra.mxu0 %v69
    %2363 = vmatprep.subr.mxu0 0.0
    %2364 = vmatpush2.msra.mxu0 0.0
    %2365 = vmatprep.subr.mxu0 0.0
    %2366 = vmatpush2.msra.mxu0 0.0
    %2367 = vmatprep.subr.mxu0 0.0
    %2368 = vmatpush2.msra.mxu0 0.0
    %2369 = vmatprep.subr.mxu0 0.0
    %2370 = vmatpush2.msra.mxu0 0.0
    %2371 = vmatprep.subr.mxu0 0.0
    %2372 = vmatpush2.msra.mxu0 0.0
    %2373 = vmatprep.subr.mxu0 0.0
    %2374 = vmatpush2.msra.mxu0 0.0
    %2375 = vmatprep.subr.mxu0 0.0
    %2376 = vmatpush2.msra.mxu0 0.0
    %2377 = vmatprep.subr.mxu0 0.0
    %2378 = vmatpush2.msra.mxu0 0.0
    %2379 = vmatprep.subr.mxu0 0.0
    %2380 = vmatpush2.msra.mxu0 0.0
    %2381 = vmatprep.subr.mxu0 0.0
    %2382 = vmatpush2.msra.mxu0 0.0
    %2383 = vmatprep.subr.mxu0 0.0
    %2384 = vmatpush2.msra.mxu0 0.0
    %2385 = vmatprep.subr.mxu0 0.0
    %2386 = vmatpush2.msra.mxu0 0.0
    %2387 = vmatprep.subr.mxu0 0.0
    %2388 = vmatpush2.msra.mxu0 0.0
    %2389 = vmatprep.subr.mxu0 0.0
    %2390 = vmatpush2.msra.mxu0 0.0
    %2391 = vmatprep.subr.mxu0 0.0
    %2392 = vmatpush2.msra.mxu0 0.0
    %2393 = vmatprep.subr.mxu0 0.0
    %2394 = vmatpush2.msra.mxu0 0.0
    %2395 = vmatprep.mubr.f32.mxu0 0.0
    %2396 = vmatmul.mubr.f32.gmra.mxu0 %v2330
    %v2397 = vpop.f32.mrf.mxu0
    %v2398 = vadd.f32 0.0, %v2397
    %v2399 = vpop.f32.mrf.mxu0
    %2400 = vdwg.mxu0
    %v2402 = vrot.slane %v2398, 1
    %v2403 = vrot.slane %v2398, 2
    %v2404 = vrot.slane %v2398, 3
    %v2405 = vrot.slane %v2398, 4
    %v2406 = vrot.slane %v2398, 5
    %v2407 = vrot.slane %v2398, 6
    %v2408 = vrot.slane %v2398, 7
    %v2417 = vadd.f32 %v2282, %v2398
    %v2418 = vadd.f32 %v2288, %v2402
    %v2419 = vadd.f32 %v2294, %v2403
    %v2420 = vadd.f32 %v2300, %v2404
    %v2421 = vadd.f32 %v2306, %v2405
    %v2422 = vadd.f32 %v2312, %v2406
    %v2423 = vadd.f32 %v2318, %v2407
    %v2424 = vadd.f32 %v2324, %v2408
    %2425 = vmatprep.subr.mxu0 0.0
    %2426 = vmatpush1.msra.mxu0 0.0
    %2427 = vmatprep.subr.mxu0 0.0
    %2428 = vmatpush1.msra.mxu0 0.0
    %2429 = vmatprep.subr.mxu0 0.0
    %2430 = vmatpush1.msra.mxu0 0.0
    %2431 = vmatprep.subr.mxu0 0.0
    %2432 = vmatpush1.msra.mxu0 0.0
    %2433 = vmatprep.subr.mxu0 0.0
    %2434 = vmatpush1.msra.mxu0 0.0
    %2435 = vmatprep.subr.mxu0 0.0
    %2436 = vmatpush1.msra.mxu0 0.0
    %2437 = vmatprep.subr.mxu0 0.0
    %2438 = vmatpush1.msra.mxu0 0.0
    %2439 = vmatprep.subr.mxu0 0.0
    %2440 = vmatpush1.msra.mxu0 0.0
    %2441 = vmatprep.subr.mxu0 0.0
    %2442 = vmatpush1.msra.mxu0 0.0
    %2443 = vmatprep.subr.mxu0 0.0
    %2444 = vmatpush1.msra.mxu0 0.0
    %2445 = vmatprep.subr.mxu0 0.0
    %2446 = vmatpush1.msra.mxu0 0.0
    %2447 = vmatprep.subr.mxu0 0.0
    %2448 = vmatpush1.msra.mxu0 0.0
    %2449 = vmatprep.subr.mxu0 0.0
    %2450 = vmatpush1.msra.mxu0 %v66
    %2451 = vmatprep.subr.mxu0 0.0
    %2452 = vmatpush1.msra.mxu0 %v65
    %2453 = vmatprep.subr.mxu0 0.0
    %2454 = vmatpush1.msra.mxu0 %v64
    %2455 = vmatprep.subr.mxu0 0.0
    %2456 = vmatpush1.msra.mxu0 %v63
    %2457 = vmatprep.subr.mxu0 0.0
    %2458 = vmatpush2.msra.mxu0 0.0
    %2459 = vmatprep.subr.mxu0 0.0
    %2460 = vmatpush2.msra.mxu0 0.0
    %2461 = vmatprep.subr.mxu0 0.0
    %2462 = vmatpush2.msra.mxu0 0.0
    %2463 = vmatprep.subr.mxu0 0.0
    %2464 = vmatpush2.msra.mxu0 0.0
    %2465 = vmatprep.subr.mxu0 0.0
    %2466 = vmatpush2.msra.mxu0 0.0
    %2467 = vmatprep.subr.mxu0 0.0
    %2468 = vmatpush2.msra.mxu0 0.0
    %2469 = vmatprep.subr.mxu0 0.0
    %2470 = vmatpush2.msra.mxu0 0.0
    %2471 = vmatprep.subr.mxu0 0.0
    %2472 = vmatpush2.msra.mxu0 0.0
    %2473 = vmatprep.subr.mxu0 0.0
    %2474 = vmatpush2.msra.mxu0 0.0
    %2475 = vmatprep.subr.mxu0 0.0
    %2476 = vmatpush2.msra.mxu0 0.0
    %2477 = vmatprep.subr.mxu0 0.0
    %2478 = vmatpush2.msra.mxu0 0.0
    %2479 = vmatprep.subr.mxu0 0.0
    %2480 = vmatpush2.msra.mxu0 0.0
    %2481 = vmatprep.subr.mxu0 0.0
    %2482 = vmatpush2.msra.mxu0 0.0
    %2483 = vmatprep.subr.mxu0 0.0
    %2484 = vmatpush2.msra.mxu0 0.0
    %2485 = vmatprep.subr.mxu0 0.0
    %2486 = vmatpush2.msra.mxu0 0.0
    %2487 = vmatprep.subr.mxu0 0.0
    %2488 = vmatpush2.msra.mxu0 0.0
    %2489 = vmatprep.mubr.f32.mxu0 0.0
    %2490 = vmatmul.mubr.f32.gmra.mxu0 %v2064
    %v2491 = vpop.f32.mrf.mxu0
    %v2492 = vadd.f32 0.0, %v2491
    %v2493 = vpop.f32.mrf.mxu0
    %2494 = vdwg.mxu0
    %v2496 = vrot.slane %v2492, 1
    %v2497 = vrot.slane %v2492, 2
    %v2498 = vrot.slane %v2492, 3
    %v2499 = vrot.slane %v2492, 4
    %v2500 = vrot.slane %v2492, 5
    %v2501 = vrot.slane %v2492, 6
    %v2502 = vrot.slane %v2492, 7
    %v2511 = vadd.f32 %v2417, %v2492
    %v2512 = vadd.f32 %v2418, %v2496
    %v2513 = vadd.f32 %v2419, %v2497
    %v2514 = vadd.f32 %v2420, %v2498
    %v2515 = vadd.f32 %v2421, %v2499
    %v2516 = vadd.f32 %v2422, %v2500
    %v2517 = vadd.f32 %v2423, %v2501
    %v2518 = vadd.f32 %v2424, %v2502
    %v2519 = vadd.f32 %v2511, %v433
    %v2520 = vadd.f32 %v2512, %v433
    %v2521 = vadd.f32 %v2513, %v433
    %v2522 = vadd.f32 %v2514, %v433
    %v2523 = vadd.f32 %v2515, %v433
    %v2524 = vadd.f32 %v2516, %v433
    %v2525 = vadd.f32 %v2517, %v433
    %v2526 = vadd.f32 %v2518, %v433
    %v2527 = vxor.u32 %v2519, 2147483648
    %v2528 = vxor.u32 %v2520, 2147483648
    %v2529 = vxor.u32 %v2521, 2147483648
    %v2530 = vxor.u32 %v2522, 2147483648
    %v2531 = vxor.u32 %v2523, 2147483648
    %v2532 = vxor.u32 %v2524, 2147483648
    %v2533 = vxor.u32 %v2525, 2147483648
    %v2534 = vxor.u32 %v2526, 2147483648
    %v2535 = vmul.f32 %v2527, 1.442695
    %v2536 = vpow.pop %v2535
    %v2537 = vmul.f32 %v2528, 1.442695
    %v2538 = vpow.pop %v2537
    %v2539 = vmul.f32 %v2529, 1.442695
    %v2540 = vpow.pop %v2539
    %v2541 = vmul.f32 %v2530, 1.442695
    %v2542 = vpow.pop %v2541
    %v2543 = vmul.f32 %v2531, 1.442695
    %v2544 = vpow.pop %v2543
    %v2545 = vmul.f32 %v2532, 1.442695
    %v2546 = vpow.pop %v2545
    %v2547 = vmul.f32 %v2533, 1.442695
    %v2548 = vpow.pop %v2547
    %v2549 = vmul.f32 %v2534, 1.442695
    %v2550 = vpow.pop %v2549
    %v2551 = vadd.f32 %v2536, 1.0
    %v2552 = vadd.f32 %v2538, 1.0
    %v2553 = vadd.f32 %v2540, 1.0
    %v2554 = vadd.f32 %v2542, 1.0
    %v2555 = vadd.f32 %v2544, 1.0
    %v2556 = vadd.f32 %v2546, 1.0
    %v2557 = vadd.f32 %v2548, 1.0
    %v2558 = vadd.f32 %v2550, 1.0
    %v2559 = vrcp.pop %v2551
    %v2560 = vmul.f32 1.0, %v2559
    %v2561 = vrcp.pop %v2552
    %v2562 = vmul.f32 1.0, %v2561
    %v2563 = vrcp.pop %v2553
    %v2564 = vmul.f32 1.0, %v2563
    %v2565 = vrcp.pop %v2554
    %v2566 = vmul.f32 1.0, %v2565
    %v2567 = vrcp.pop %v2555
    %v2568 = vmul.f32 1.0, %v2567
    %v2569 = vrcp.pop %v2556
    %v2570 = vmul.f32 1.0, %v2569
    %v2571 = vrcp.pop %v2557
    %v2572 = vmul.f32 1.0, %v2571
    %v2573 = vrcp.pop %v2558
    %v2574 = vmul.f32 1.0, %v2573
    %v2575 = vtanh.pop %v2519
    %v2576 = vtanh.pop %v2520
    %v2577 = vtanh.pop %v2521
    %v2578 = vtanh.pop %v2522
    %v2579 = vtanh.pop %v2523
    %v2580 = vtanh.pop %v2524
    %v2581 = vtanh.pop %v2525
    %v2582 = vtanh.pop %v2526
    %v2583 = vmul.f32 %v2560, %v1984
    %v2584 = vmul.f32 %v2562, %v1985
    %v2585 = vmul.f32 %v2564, %v1986
    %v2586 = vmul.f32 %v2566, %v1987
    %v2587 = vmul.f32 %v2568, %v1988
    %v2588 = vmul.f32 %v2570, %v1989
    %v2589 = vmul.f32 %v2572, %v1990
    %v2590 = vmul.f32 %v2574, %v1991
    %2599 = vrot.lane.b32.xlu0 %v2575, 64
    %v2600 = vpop.permute.xlu0 %2599
    %2601 = vrot.lane.b32.xlu0 %v2576, 64
    %v2602 = vpop.permute.xlu0 %2601
    %2603 = vrot.lane.b32.xlu0 %v2577, 64
    %v2604 = vpop.permute.xlu0 %2603
    %2605 = vrot.lane.b32.xlu0 %v2578, 64
    %v2606 = vpop.permute.xlu0 %2605
    %2607 = vrot.lane.b32.xlu0 %v2579, 64
    %v2608 = vpop.permute.xlu0 %2607
    %2609 = vrot.lane.b32.xlu0 %v2580, 64
    %v2610 = vpop.permute.xlu0 %2609
    %2611 = vrot.lane.b32.xlu0 %v2581, 64
    %v2612 = vpop.permute.xlu0 %2611
    %2613 = vrot.lane.b32.xlu0 %v2582, 64
    %v2614 = vpop.permute.xlu0 %2613
    %v2623 = vmul.f32 %v2560, %v2600
    %v2624 = vmul.f32 %v2562, %v2602
    %v2625 = vmul.f32 %v2564, %v2604
    %v2626 = vmul.f32 %v2566, %v2606
    %v2627 = vmul.f32 %v2568, %v2608
    %v2628 = vmul.f32 %v2570, %v2610
    %v2629 = vmul.f32 %v2572, %v2612
    %v2630 = vmul.f32 %v2574, %v2614
    %2639 = vrot.lane.b32.xlu0 %v2623, 32
    %v2640 = vpop.permute.xlu0 %2639
    %2641 = vrot.lane.b32.xlu0 %v2624, 32
    %v2642 = vpop.permute.xlu0 %2641
    %2643 = vrot.lane.b32.xlu0 %v2625, 32
    %v2644 = vpop.permute.xlu0 %2643
    %2645 = vrot.lane.b32.xlu0 %v2626, 32
    %v2646 = vpop.permute.xlu0 %2645
    %2647 = vrot.lane.b32.xlu0 %v2627, 32
    %v2648 = vpop.permute.xlu0 %2647
    %2649 = vrot.lane.b32.xlu0 %v2628, 32
    %v2650 = vpop.permute.xlu0 %2649
    %2651 = vrot.lane.b32.xlu0 %v2629, 32
    %v2652 = vpop.permute.xlu0 %2651
    %2653 = vrot.lane.b32.xlu0 %v2630, 32
    %v2654 = vpop.permute.xlu0 %2653
    %v2663 = vadd.f32 %v2583, %v2640
    %v2664 = vadd.f32 %v2584, %v2642
    %v2665 = vadd.f32 %v2585, %v2644
    %v2666 = vadd.f32 %v2586, %v2646
    %v2667 = vadd.f32 %v2587, %v2648
    %v2668 = vadd.f32 %v2588, %v2650
    %v2669 = vadd.f32 %v2589, %v2652
    %v2670 = vadd.f32 %v2590, %v2654
    %v2671 = vtanh.pop %v2663
    %v2672 = vtanh.pop %v2664
    %v2673 = vtanh.pop %v2665
    %v2674 = vtanh.pop %v2666
    %v2675 = vtanh.pop %v2667
    %v2676 = vtanh.pop %v2668
    %v2677 = vtanh.pop %v2669
    %v2678 = vtanh.pop %v2670
    %2687 = vrot.lane.b32.xlu0 %v2671, 64
    %v2688 = vpop.permute.xlu0 %2687
    %2689 = vrot.lane.b32.xlu0 %v2672, 64
    %v2690 = vpop.permute.xlu0 %2689
    %2691 = vrot.lane.b32.xlu0 %v2673, 64
    %v2692 = vpop.permute.xlu0 %2691
    %2693 = vrot.lane.b32.xlu0 %v2674, 64
    %v2694 = vpop.permute.xlu0 %2693
    %2695 = vrot.lane.b32.xlu0 %v2675, 64
    %v2696 = vpop.permute.xlu0 %2695
    %2697 = vrot.lane.b32.xlu0 %v2676, 64
    %v2698 = vpop.permute.xlu0 %2697
    %2699 = vrot.lane.b32.xlu0 %v2677, 64
    %v2700 = vpop.permute.xlu0 %2699
    %2701 = vrot.lane.b32.xlu0 %v2678, 64
    %v2702 = vpop.permute.xlu0 %2701
    %v2711 = vmul.f32 %v2560, %v2688
    %v2712 = vmul.f32 %v2562, %v2690
    %v2713 = vmul.f32 %v2564, %v2692
    %v2714 = vmul.f32 %v2566, %v2694
    %v2715 = vmul.f32 %v2568, %v2696
    %v2716 = vmul.f32 %v2570, %v2698
    %v2717 = vmul.f32 %v2572, %v2700
    %v2718 = vmul.f32 %v2574, %v2702
    %v2727 = vrot.slane %v2712, 7
    %v2728 = vsel %vm682, %v2727, %v2711
    %v2729 = vrot.slane %v2713, 6
    %v2730 = vsel %vm685, %v2729, %v2728
    %v2731 = vrot.slane %v2714, 5
    %v2732 = vsel %vm688, %v2731, %v2730
    %v2733 = vrot.slane %v2715, 4
    %v2734 = vsel %vm691, %v2733, %v2732
    %v2735 = vrot.slane %v2716, 3
    %v2736 = vsel %vm694, %v2735, %v2734
    %v2737 = vrot.slane %v2717, 2
    %v2738 = vsel %vm697, %v2737, %v2736
    %v2739 = vrot.slane %v2718, 1
    %v2740 = vsel %vm700, %v2739, %v2738
    %2741 = vrot.lane.b32.xlu0 %v2740, 32
    %v2742 = vpop.permute.xlu0 %2741
    %v2743 = vsel %vm102, %v2742, 0
    %2745 = vmatprep.subr.mxu0 0.0
    %2746 = vmatpush1.msra.mxu0 0.0
    %2747 = vmatprep.subr.mxu0 0.0
    %2748 = vmatpush1.msra.mxu0 0.0
    %2749 = vmatprep.subr.mxu0 0.0
    %2750 = vmatpush1.msra.mxu0 0.0
    %2751 = vmatprep.subr.mxu0 0.0
    %2752 = vmatpush1.msra.mxu0 0.0
    %2753 = vmatprep.subr.mxu0 0.0
    %2754 = vmatpush1.msra.mxu0 0.0
    %2755 = vmatprep.subr.mxu0 0.0
    %2756 = vmatpush1.msra.mxu0 0.0
    %2757 = vmatprep.subr.mxu0 0.0
    %2758 = vmatpush1.msra.mxu0 0.0
    %2759 = vmatprep.subr.mxu0 0.0
    %2760 = vmatpush1.msra.mxu0 0.0
    %2761 = vmatprep.subr.mxu0 0.0
    %2762 = vmatpush1.msra.mxu0 0.0
    %2763 = vmatprep.subr.mxu0 0.0
    %2764 = vmatpush1.msra.mxu0 0.0
    %2765 = vmatprep.subr.mxu0 0.0
    %2766 = vmatpush1.msra.mxu0 0.0
    %2767 = vmatprep.subr.mxu0 0.0
    %2768 = vmatpush1.msra.mxu0 0.0
    %2769 = vmatprep.subr.mxu0 0.0
    %2770 = vmatpush1.msra.mxu0 %v88
    %2771 = vmatprep.subr.mxu0 0.0
    %2772 = vmatpush1.msra.mxu0 %v87
    %2773 = vmatprep.subr.mxu0 0.0
    %2774 = vmatpush1.msra.mxu0 %v86
    %2775 = vmatprep.subr.mxu0 0.0
    %2776 = vmatpush1.msra.mxu0 %v85
    %2777 = vmatprep.subr.mxu0 0.0
    %2778 = vmatpush2.msra.mxu0 0.0
    %2779 = vmatprep.subr.mxu0 0.0
    %2780 = vmatpush2.msra.mxu0 0.0
    %2781 = vmatprep.subr.mxu0 0.0
    %2782 = vmatpush2.msra.mxu0 0.0
    %2783 = vmatprep.subr.mxu0 0.0
    %2784 = vmatpush2.msra.mxu0 0.0
    %2785 = vmatprep.subr.mxu0 0.0
    %2786 = vmatpush2.msra.mxu0 0.0
    %2787 = vmatprep.subr.mxu0 0.0
    %2788 = vmatpush2.msra.mxu0 0.0
    %2789 = vmatprep.subr.mxu0 0.0
    %2790 = vmatpush2.msra.mxu0 0.0
    %2791 = vmatprep.subr.mxu0 0.0
    %2792 = vmatpush2.msra.mxu0 0.0
    %2793 = vmatprep.subr.mxu0 0.0
    %2794 = vmatpush2.msra.mxu0 0.0
    %2795 = vmatprep.subr.mxu0 0.0
    %2796 = vmatpush2.msra.mxu0 0.0
    %2797 = vmatprep.subr.mxu0 0.0
    %2798 = vmatpush2.msra.mxu0 0.0
    %2799 = vmatprep.subr.mxu0 0.0
    %2800 = vmatpush2.msra.mxu0 0.0
    %2801 = vmatprep.subr.mxu0 0.0
    %2802 = vmatpush2.msra.mxu0 0.0
    %2803 = vmatprep.subr.mxu0 0.0
    %2804 = vmatpush2.msra.mxu0 0.0
    %2805 = vmatprep.subr.mxu0 0.0
    %2806 = vmatpush2.msra.mxu0 0.0
    %2807 = vmatprep.subr.mxu0 0.0
    %2808 = vmatpush2.msra.mxu0 0.0
    %2809 = vmatprep.mubr.f32.mxu0 0.0
    %2810 = vmatmul.mubr.f32.gmra.mxu0 %v2743
    %v2811 = vpop.f32.mrf.mxu0
    %v2812 = vadd.f32 %v671, %v2811
    %v2813 = vpop.f32.mrf.mxu0
    %2814 = vdwg.mxu0
    %s2815 = scalar_lea.vmem %s12, 24
    %2816 = vst [vmem:[%s2815] sm:$0xff] %v2812
    %2817 = vmax.xlane.f32.xlu0 %v2812
    %v2818 = vpop.xlane.xlu0 %2817
    %vm2819 = vcmp.ge.f32.partialorder %v2812, %v2818
    %v2820 = vsel %vm2819, %v91, 128
    %v2821 = vand.u32 %v2820, 65535
    %v2822 = vshra.s32 %v2820, 16
    %v2823 = vcvt.s32.f32 %v2821
    %v2824 = vcvt.s32.f32 %v2822
    %2825 = vmin.xlane.f32.xlu0 %v2824
    %v2826 = vpop.xlane.xlu0 %2825
    %vm2827 = vcmp.eq.f32.partialorder %v2824, %v2826
    %v2828 = vsel %vm2827, %v2823, inf
    %2829 = vmin.xlane.f32.xlu0 %v2828
    %v2830 = vpop.xlane.xlu0 %2829
    %v2831 = vcvt.f32.s32 %v2830
    %v2832 = vcvt.f32.s32 %v2826
    %v2833 = vshll.u32 %v2832, 16
    %v2834 = vadd.s32 %v2833, %v2831
    %s2835 = sld [smem:[#allocation2 + $0x3]]
    %p2836 = scmp.ne.s32.totalorder %s2835, 0
    %s2837 = scalar_lea.vmem %s1, 32
    %v2838 = vld [vmem:[%s2837] sm:$0xff]
    %s2839 = scalar_select %p2836, 1, 0
    %v2840 = vstv %s2839
    %vm2841 = vcmp.eq.s32.totalorder %v2840, 1
    %v2842 = vsel %vm2841, %v2838, %v2834
    %v2843 = vmul.f32 %v2711, %v804
    %v2844 = vmul.f32 %v2712, %v804
    %v2845 = vmul.f32 %v2713, %v804
    %v2846 = vmul.f32 %v2714, %v804
    %v2847 = vmul.f32 %v2715, %v804
    %v2848 = vmul.f32 %v2716, %v804
    %v2849 = vmul.f32 %v2717, %v804
    %v2850 = vmul.f32 %v2718, %v804
    %v2859 = vrot.slane %v2844, 7
    %v2860 = vsel %vm682, %v2859, %v2843
    %v2861 = vrot.slane %v2845, 6
    %v2862 = vsel %vm685, %v2861, %v2860
    %v2863 = vrot.slane %v2846, 5
    %v2864 = vsel %vm688, %v2863, %v2862
    %v2865 = vrot.slane %v2847, 4
    %v2866 = vsel %vm691, %v2865, %v2864
    %v2867 = vrot.slane %v2848, 3
    %v2868 = vsel %vm694, %v2867, %v2866
    %v2869 = vrot.slane %v2849, 2
    %v2870 = vsel %vm697, %v2869, %v2868
    %v2871 = vrot.slane %v2850, 1
    %v2872 = vsel %vm700, %v2871, %v2870
    %2873 = vrot.lane.b32.xlu0 %v2872, 32
    %v2874 = vpop.permute.xlu0 %2873
    %v2876 = vsel %vm102, %v2874, 0.0
    %2877 = vadd.xlane.f32.xlu0 %v2876
    %v2878 = vpop.xlane.xlu0 %2877
    %v2879 = vadd.f32 %v54, %v2878
    %v2880 = vmax.f32 %v2879, 0.0
    %v2881 = vsel %vm108, %v2880, -inf
    %2882 = vmax.xlane.f32.xlu0 %v2881
    %v2883 = vpop.xlane.xlu0 %2882
    %v2884 = vsub.f32 %v2880, %v2883
    %v2885 = vmul.f32 %v2884, 1.442695
    %v2886 = vpow.pop %v2885
    %v2887 = vsel %vm108, %v2886, 0.0
    %2888 = vadd.xlane.f32.xlu0 %v2887
    %v2889 = vpop.xlane.xlu0 %2888
    %v2890 = vrcp.pop %v2889
    %v2891 = vmul.f32 %v2886, %v2890
    %v2892 = vlaneseq
    %v2893 = vshrl.u32 %v2892, 7
    %v2894 = vsub.s32 0, %v2893
    %v2895 = vrot.slane %v2891, %v2894
    %2897 = vbcast.lane.b32.xlu0 %v2895, 256
    %v2898 = vpop.permute.xlu0 %2897
    %v2899 = vlaneseq
    %v2900 = vshrl.u32 %v2899, 7
    %v2901 = vsub.s32 1, %v2900
    %v2902 = vrot.slane %v2891, %v2901
    %2904 = vbcast.lane.b32.xlu0 %v2902, 256
    %v2905 = vpop.permute.xlu0 %2904
    %v2906 = vlaneseq
    %v2907 = vshrl.u32 %v2906, 7
    %v2908 = vsub.s32 2, %v2907
    %v2909 = vrot.slane %v2891, %v2908
    %2911 = vbcast.lane.b32.xlu0 %v2909, 256
    %v2912 = vpop.permute.xlu0 %2911
    %v2913 = vlaneseq
    %v2914 = vshrl.u32 %v2913, 7
    %v2915 = vsub.s32 3, %v2914
    %v2916 = vrot.slane %v2891, %v2915
    %2918 = vbcast.lane.b32.xlu0 %v2916, 256
    %v2919 = vpop.permute.xlu0 %2918
    %v2920 = vlaneseq
    %v2921 = vshrl.u32 %v2920, 7
    %v2922 = vsub.s32 4, %v2921
    %v2923 = vrot.slane %v2891, %v2922
    %2925 = vbcast.lane.b32.xlu0 %v2923, 256
    %v2926 = vpop.permute.xlu0 %2925
    %v2927 = vlaneseq
    %v2928 = vshrl.u32 %v2927, 7
    %v2929 = vsub.s32 5, %v2928
    %v2930 = vrot.slane %v2891, %v2929
    %2932 = vbcast.lane.b32.xlu0 %v2930, 256
    %v2933 = vpop.permute.xlu0 %2932
    %v2934 = vlaneseq
    %v2935 = vshrl.u32 %v2934, 7
    %v2936 = vsub.s32 6, %v2935
    %v2937 = vrot.slane %v2891, %v2936
    %2939 = vbcast.lane.b32.xlu0 %v2937, 256
    %v2940 = vpop.permute.xlu0 %2939
    %v2941 = vlaneseq
    %v2942 = vshrl.u32 %v2941, 7
    %v2943 = vsub.s32 7, %v2942
    %v2944 = vrot.slane %v2891, %v2943
    %2946 = vbcast.lane.b32.xlu0 %v2944, 256
    %v2947 = vpop.permute.xlu0 %2946
    %v2948 = vmul.f32 %v2898, %v55
    %v2949 = vmul.f32 %v2905, %v56
    %v2950 = vmul.f32 %v2912, %v57
    %v2951 = vmul.f32 %v2919, %v58
    %v2952 = vmul.f32 %v2926, %v59
    %v2953 = vmul.f32 %v2933, %v60
    %v2954 = vmul.f32 %v2940, %v61
    %v2955 = vmul.f32 %v2947, %v62
    %v2956 = vrot.slane %v2948, 4
    %v2957 = vadd.f32 %v2948, %v2956
    %v2958 = vrot.slane %v2957, 2
    %v2959 = vadd.f32 %v2957, %v2958
    %v2960 = vrot.slane %v2959, 1
    %v2961 = vadd.f32 %v2959, %v2960
    %v2962 = vrot.slane %v2949, 4
    %v2963 = vadd.f32 %v2949, %v2962
    %v2964 = vrot.slane %v2963, 2
    %v2965 = vadd.f32 %v2963, %v2964
    %v2966 = vrot.slane %v2965, 1
    %v2967 = vadd.f32 %v2965, %v2966
    %v2968 = vrot.slane %v2950, 4
    %v2969 = vadd.f32 %v2950, %v2968
    %v2970 = vrot.slane %v2969, 2
    %v2971 = vadd.f32 %v2969, %v2970
    %v2972 = vrot.slane %v2971, 1
    %v2973 = vadd.f32 %v2971, %v2972
    %v2974 = vrot.slane %v2951, 4
    %v2975 = vadd.f32 %v2951, %v2974
    %v2976 = vrot.slane %v2975, 2
    %v2977 = vadd.f32 %v2975, %v2976
    %v2978 = vrot.slane %v2977, 1
    %v2979 = vadd.f32 %v2977, %v2978
    %v2980 = vrot.slane %v2952, 4
    %v2981 = vadd.f32 %v2952, %v2980
    %v2982 = vrot.slane %v2981, 2
    %v2983 = vadd.f32 %v2981, %v2982
    %v2984 = vrot.slane %v2983, 1
    %v2985 = vadd.f32 %v2983, %v2984
    %v2986 = vrot.slane %v2953, 4
    %v2987 = vadd.f32 %v2953, %v2986
    %v2988 = vrot.slane %v2987, 2
    %v2989 = vadd.f32 %v2987, %v2988
    %v2990 = vrot.slane %v2989, 1
    %v2991 = vadd.f32 %v2989, %v2990
    %v2992 = vrot.slane %v2954, 4
    %v2993 = vadd.f32 %v2954, %v2992
    %v2994 = vrot.slane %v2993, 2
    %v2995 = vadd.f32 %v2993, %v2994
    %v2996 = vrot.slane %v2995, 1
    %v2997 = vadd.f32 %v2995, %v2996
    %v2998 = vrot.slane %v2955, 4
    %v2999 = vadd.f32 %v2955, %v2998
    %v3000 = vrot.slane %v2999, 2
    %v3001 = vadd.f32 %v2999, %v3000
    %v3002 = vrot.slane %v3001, 1
    %v3003 = vadd.f32 %v3001, %v3002
    %3004 = vset.pattern.permute.xlu0 0
    %3005 = vperm.xlu0 %3004, %v2842
    %v3006 = vpop.permute.xlu0 %3005
    %vm3007 = vcmp.eq.s32.totalorder %v91, %v3006
    %v3008 = vsel %vm3007, 1, 0
    %v3009 = vcvt.s32.f32 %v3008
    %3010 = vmatprep.subr.mxu0 0.0
    %3011 = vmatpush1.msra.mxu0 %v84
    %3012 = vmatprep.subr.mxu0 0.0
    %3013 = vmatpush1.msra.mxu0 %v83
    %3014 = vmatprep.subr.mxu0 0.0
    %3015 = vmatpush1.msra.mxu0 %v82
    %3016 = vmatprep.subr.mxu0 0.0
    %3017 = vmatpush1.msra.mxu0 %v81
    %3018 = vmatprep.subr.mxu0 0.0
    %3019 = vmatpush1.msra.mxu0 %v80
    %3020 = vmatprep.subr.mxu0 0.0
    %3021 = vmatpush1.msra.mxu0 %v79
    %3022 = vmatprep.subr.mxu0 0.0
    %3023 = vmatpush1.msra.mxu0 %v78
    %3024 = vmatprep.subr.mxu0 0.0
    %3025 = vmatpush1.msra.mxu0 %v77
    %3026 = vmatprep.subr.mxu0 0.0
    %3027 = vmatpush1.msra.mxu0 %v76
    %3028 = vmatprep.subr.mxu0 0.0
    %3029 = vmatpush1.msra.mxu0 %v75
    %3030 = vmatprep.subr.mxu0 0.0
    %3031 = vmatpush1.msra.mxu0 %v74
    %3032 = vmatprep.subr.mxu0 0.0
    %3033 = vmatpush1.msra.mxu0 %v73
    %3034 = vmatprep.subr.mxu0 0.0
    %3035 = vmatpush1.msra.mxu0 %v72
    %3036 = vmatprep.subr.mxu0 0.0
    %3037 = vmatpush1.msra.mxu0 %v71
    %3038 = vmatprep.subr.mxu0 0.0
    %3039 = vmatpush1.msra.mxu0 %v70
    %3040 = vmatprep.subr.mxu0 0.0
    %3041 = vmatpush1.msra.mxu0 %v69
    %3042 = vmatprep.subr.mxu0 0.0
    %3043 = vmatpush2.msra.mxu0 0.0
    %3044 = vmatprep.subr.mxu0 0.0
    %3045 = vmatpush2.msra.mxu0 0.0
    %3046 = vmatprep.subr.mxu0 0.0
    %3047 = vmatpush2.msra.mxu0 0.0
    %3048 = vmatprep.subr.mxu0 0.0
    %3049 = vmatpush2.msra.mxu0 0.0
    %3050 = vmatprep.subr.mxu0 0.0
    %3051 = vmatpush2.msra.mxu0 0.0
    %3052 = vmatprep.subr.mxu0 0.0
    %3053 = vmatpush2.msra.mxu0 0.0
    %3054 = vmatprep.subr.mxu0 0.0
    %3055 = vmatpush2.msra.mxu0 0.0
    %3056 = vmatprep.subr.mxu0 0.0
    %3057 = vmatpush2.msra.mxu0 0.0
    %3058 = vmatprep.subr.mxu0 0.0
    %3059 = vmatpush2.msra.mxu0 0.0
    %3060 = vmatprep.subr.mxu0 0.0
    %3061 = vmatpush2.msra.mxu0 0.0
    %3062 = vmatprep.subr.mxu0 0.0
    %3063 = vmatpush2.msra.mxu0 0.0
    %3064 = vmatprep.subr.mxu0 0.0
    %3065 = vmatpush2.msra.mxu0 0.0
    %3066 = vmatprep.subr.mxu0 0.0
    %3067 = vmatpush2.msra.mxu0 0.0
    %3068 = vmatprep.subr.mxu0 0.0
    %3069 = vmatpush2.msra.mxu0 0.0
    %3070 = vmatprep.subr.mxu0 0.0
    %3071 = vmatpush2.msra.mxu0 0.0
    %3072 = vmatprep.subr.mxu0 0.0
    %3073 = vmatpush2.msra.mxu0 0.0
    %3074 = vmatprep.mubr.f32.mxu0 0.0
    %3075 = vmatmul.mubr.f32.gmra.mxu0 %v3009
    %v3076 = vpop.f32.mrf.mxu0
    %v3077 = vadd.f32 0.0, %v3076
    %v3078 = vpop.f32.mrf.mxu0
    %3079 = vdwg.mxu0
    %v3081 = vrot.slane %v3077, 1
    %v3082 = vrot.slane %v3077, 2
    %v3083 = vrot.slane %v3077, 3
    %v3084 = vrot.slane %v3077, 4
    %v3085 = vrot.slane %v3077, 5
    %v3086 = vrot.slane %v3077, 6
    %v3087 = vrot.slane %v3077, 7
    %v3096 = vadd.f32 %v2961, %v3077
    %v3097 = vadd.f32 %v2967, %v3081
    %v3098 = vadd.f32 %v2973, %v3082
    %v3099 = vadd.f32 %v2979, %v3083
    %v3100 = vadd.f32 %v2985, %v3084
    %v3101 = vadd.f32 %v2991, %v3085
    %v3102 = vadd.f32 %v2997, %v3086
    %v3103 = vadd.f32 %v3003, %v3087
    %3104 = vmatprep.subr.mxu0 0.0
    %3105 = vmatpush1.msra.mxu0 0.0
    %3106 = vmatprep.subr.mxu0 0.0
    %3107 = vmatpush1.msra.mxu0 0.0
    %3108 = vmatprep.subr.mxu0 0.0
    %3109 = vmatpush1.msra.mxu0 0.0
    %3110 = vmatprep.subr.mxu0 0.0
    %3111 = vmatpush1.msra.mxu0 0.0
    %3112 = vmatprep.subr.mxu0 0.0
    %3113 = vmatpush1.msra.mxu0 0.0
    %3114 = vmatprep.subr.mxu0 0.0
    %3115 = vmatpush1.msra.mxu0 0.0
    %3116 = vmatprep.subr.mxu0 0.0
    %3117 = vmatpush1.msra.mxu0 0.0
    %3118 = vmatprep.subr.mxu0 0.0
    %3119 = vmatpush1.msra.mxu0 0.0
    %3120 = vmatprep.subr.mxu0 0.0
    %3121 = vmatpush1.msra.mxu0 0.0
    %3122 = vmatprep.subr.mxu0 0.0
    %3123 = vmatpush1.msra.mxu0 0.0
    %3124 = vmatprep.subr.mxu0 0.0
    %3125 = vmatpush1.msra.mxu0 0.0
    %3126 = vmatprep.subr.mxu0 0.0
    %3127 = vmatpush1.msra.mxu0 0.0
    %3128 = vmatprep.subr.mxu0 0.0
    %3129 = vmatpush1.msra.mxu0 %v66
    %3130 = vmatprep.subr.mxu0 0.0
    %3131 = vmatpush1.msra.mxu0 %v65
    %3132 = vmatprep.subr.mxu0 0.0
    %3133 = vmatpush1.msra.mxu0 %v64
    %3134 = vmatprep.subr.mxu0 0.0
    %3135 = vmatpush1.msra.mxu0 %v63
    %3136 = vmatprep.subr.mxu0 0.0
    %3137 = vmatpush2.msra.mxu0 0.0
    %3138 = vmatprep.subr.mxu0 0.0
    %3139 = vmatpush2.msra.mxu0 0.0
    %3140 = vmatprep.subr.mxu0 0.0
    %3141 = vmatpush2.msra.mxu0 0.0
    %3142 = vmatprep.subr.mxu0 0.0
    %3143 = vmatpush2.msra.mxu0 0.0
    %3144 = vmatprep.subr.mxu0 0.0
    %3145 = vmatpush2.msra.mxu0 0.0
    %3146 = vmatprep.subr.mxu0 0.0
    %3147 = vmatpush2.msra.mxu0 0.0
    %3148 = vmatprep.subr.mxu0 0.0
    %3149 = vmatpush2.msra.mxu0 0.0
    %3150 = vmatprep.subr.mxu0 0.0
    %3151 = vmatpush2.msra.mxu0 0.0
    %3152 = vmatprep.subr.mxu0 0.0
    %3153 = vmatpush2.msra.mxu0 0.0
    %3154 = vmatprep.subr.mxu0 0.0
    %3155 = vmatpush2.msra.mxu0 0.0
    %3156 = vmatprep.subr.mxu0 0.0
    %3157 = vmatpush2.msra.mxu0 0.0
    %3158 = vmatprep.subr.mxu0 0.0
    %3159 = vmatpush2.msra.mxu0 0.0
    %3160 = vmatprep.subr.mxu0 0.0
    %3161 = vmatpush2.msra.mxu0 0.0
    %3162 = vmatprep.subr.mxu0 0.0
    %3163 = vmatpush2.msra.mxu0 0.0
    %3164 = vmatprep.subr.mxu0 0.0
    %3165 = vmatpush2.msra.mxu0 0.0
    %3166 = vmatprep.subr.mxu0 0.0
    %3167 = vmatpush2.msra.mxu0 0.0
    %3168 = vmatprep.mubr.f32.mxu0 0.0
    %3169 = vmatmul.mubr.f32.gmra.mxu0 %v2743
    %v3170 = vpop.f32.mrf.mxu0
    %v3171 = vadd.f32 0.0, %v3170
    %v3172 = vpop.f32.mrf.mxu0
    %3173 = vdwg.mxu0
    %v3175 = vrot.slane %v3171, 1
    %v3176 = vrot.slane %v3171, 2
    %v3177 = vrot.slane %v3171, 3
    %v3178 = vrot.slane %v3171, 4
    %v3179 = vrot.slane %v3171, 5
    %v3180 = vrot.slane %v3171, 6
    %v3181 = vrot.slane %v3171, 7
    %v3190 = vadd.f32 %v3096, %v3171
    %v3191 = vadd.f32 %v3097, %v3175
    %v3192 = vadd.f32 %v3098, %v3176
    %v3193 = vadd.f32 %v3099, %v3177
    %v3194 = vadd.f32 %v3100, %v3178
    %v3195 = vadd.f32 %v3101, %v3179
    %v3196 = vadd.f32 %v3102, %v3180
    %v3197 = vadd.f32 %v3103, %v3181
    %v3198 = vadd.f32 %v3190, %v433
    %v3199 = vadd.f32 %v3191, %v433
    %v3200 = vadd.f32 %v3192, %v433
    %v3201 = vadd.f32 %v3193, %v433
    %v3202 = vadd.f32 %v3194, %v433
    %v3203 = vadd.f32 %v3195, %v433
    %v3204 = vadd.f32 %v3196, %v433
    %v3205 = vadd.f32 %v3197, %v433
    %v3206 = vxor.u32 %v3198, 2147483648
    %v3207 = vxor.u32 %v3199, 2147483648
    %v3208 = vxor.u32 %v3200, 2147483648
    %v3209 = vxor.u32 %v3201, 2147483648
    %v3210 = vxor.u32 %v3202, 2147483648
    %v3211 = vxor.u32 %v3203, 2147483648
    %v3212 = vxor.u32 %v3204, 2147483648
    %v3213 = vxor.u32 %v3205, 2147483648
    %v3214 = vmul.f32 %v3206, 1.442695
    %v3215 = vpow.pop %v3214
    %v3216 = vmul.f32 %v3207, 1.442695
    %v3217 = vpow.pop %v3216
    %v3218 = vmul.f32 %v3208, 1.442695
    %v3219 = vpow.pop %v3218
    %v3220 = vmul.f32 %v3209, 1.442695
    %v3221 = vpow.pop %v3220
    %v3222 = vmul.f32 %v3210, 1.442695
    %v3223 = vpow.pop %v3222
    %v3224 = vmul.f32 %v3211, 1.442695
    %v3225 = vpow.pop %v3224
    %v3226 = vmul.f32 %v3212, 1.442695
    %v3227 = vpow.pop %v3226
    %v3228 = vmul.f32 %v3213, 1.442695
    %v3229 = vpow.pop %v3228
    %v3230 = vadd.f32 %v3215, 1.0
    %v3231 = vadd.f32 %v3217, 1.0
    %v3232 = vadd.f32 %v3219, 1.0
    %v3233 = vadd.f32 %v3221, 1.0
    %v3234 = vadd.f32 %v3223, 1.0
    %v3235 = vadd.f32 %v3225, 1.0
    %v3236 = vadd.f32 %v3227, 1.0
    %v3237 = vadd.f32 %v3229, 1.0
    %v3238 = vrcp.pop %v3230
    %v3239 = vmul.f32 1.0, %v3238
    %v3240 = vrcp.pop %v3231
    %v3241 = vmul.f32 1.0, %v3240
    %v3242 = vrcp.pop %v3232
    %v3243 = vmul.f32 1.0, %v3242
    %v3244 = vrcp.pop %v3233
    %v3245 = vmul.f32 1.0, %v3244
    %v3246 = vrcp.pop %v3234
    %v3247 = vmul.f32 1.0, %v3246
    %v3248 = vrcp.pop %v3235
    %v3249 = vmul.f32 1.0, %v3248
    %v3250 = vrcp.pop %v3236
    %v3251 = vmul.f32 1.0, %v3250
    %v3252 = vrcp.pop %v3237
    %v3253 = vmul.f32 1.0, %v3252
    %v3254 = vtanh.pop %v3198
    %v3255 = vtanh.pop %v3199
    %v3256 = vtanh.pop %v3200
    %v3257 = vtanh.pop %v3201
    %v3258 = vtanh.pop %v3202
    %v3259 = vtanh.pop %v3203
    %v3260 = vtanh.pop %v3204
    %v3261 = vtanh.pop %v3205
    %v3262 = vmul.f32 %v3239, %v2663
    %v3263 = vmul.f32 %v3241, %v2664
    %v3264 = vmul.f32 %v3243, %v2665
    %v3265 = vmul.f32 %v3245, %v2666
    %v3266 = vmul.f32 %v3247, %v2667
    %v3267 = vmul.f32 %v3249, %v2668
    %v3268 = vmul.f32 %v3251, %v2669
    %v3269 = vmul.f32 %v3253, %v2670
    %3278 = vrot.lane.b32.xlu0 %v3254, 64
    %v3279 = vpop.permute.xlu0 %3278
    %3280 = vrot.lane.b32.xlu0 %v3255, 64
    %v3281 = vpop.permute.xlu0 %3280
    %3282 = vrot.lane.b32.xlu0 %v3256, 64
    %v3283 = vpop.permute.xlu0 %3282
    %3284 = vrot.lane.b32.xlu0 %v3257, 64
    %v3285 = vpop.permute.xlu0 %3284
    %3286 = vrot.lane.b32.xlu0 %v3258, 64
    %v3287 = vpop.permute.xlu0 %3286
    %3288 = vrot.lane.b32.xlu0 %v3259, 64
    %v3289 = vpop.permute.xlu0 %3288
    %3290 = vrot.lane.b32.xlu0 %v3260, 64
    %v3291 = vpop.permute.xlu0 %3290
    %3292 = vrot.lane.b32.xlu0 %v3261, 64
    %v3293 = vpop.permute.xlu0 %3292
    %v3302 = vmul.f32 %v3239, %v3279
    %v3303 = vmul.f32 %v3241, %v3281
    %v3304 = vmul.f32 %v3243, %v3283
    %v3305 = vmul.f32 %v3245, %v3285
    %v3306 = vmul.f32 %v3247, %v3287
    %v3307 = vmul.f32 %v3249, %v3289
    %v3308 = vmul.f32 %v3251, %v3291
    %v3309 = vmul.f32 %v3253, %v3293
    %3318 = vrot.lane.b32.xlu0 %v3302, 32
    %v3319 = vpop.permute.xlu0 %3318
    %3320 = vrot.lane.b32.xlu0 %v3303, 32
    %v3321 = vpop.permute.xlu0 %3320
    %3322 = vrot.lane.b32.xlu0 %v3304, 32
    %v3323 = vpop.permute.xlu0 %3322
    %3324 = vrot.lane.b32.xlu0 %v3305, 32
    %v3325 = vpop.permute.xlu0 %3324
    %3326 = vrot.lane.b32.xlu0 %v3306, 32
    %v3327 = vpop.permute.xlu0 %3326
    %3328 = vrot.lane.b32.xlu0 %v3307, 32
    %v3329 = vpop.permute.xlu0 %3328
    %3330 = vrot.lane.b32.xlu0 %v3308, 32
    %v3331 = vpop.permute.xlu0 %3330
    %3332 = vrot.lane.b32.xlu0 %v3309, 32
    %v3333 = vpop.permute.xlu0 %3332
    %v3342 = vadd.f32 %v3262, %v3319
    %v3343 = vadd.f32 %v3263, %v3321
    %v3344 = vadd.f32 %v3264, %v3323
    %v3345 = vadd.f32 %v3265, %v3325
    %v3346 = vadd.f32 %v3266, %v3327
    %v3347 = vadd.f32 %v3267, %v3329
    %v3348 = vadd.f32 %v3268, %v3331
    %v3349 = vadd.f32 %v3269, %v3333
    %v3350 = vtanh.pop %v3342
    %v3351 = vtanh.pop %v3343
    %v3352 = vtanh.pop %v3344
    %v3353 = vtanh.pop %v3345
    %v3354 = vtanh.pop %v3346
    %v3355 = vtanh.pop %v3347
    %v3356 = vtanh.pop %v3348
    %v3357 = vtanh.pop %v3349
    %3366 = vrot.lane.b32.xlu0 %v3350, 64
    %v3367 = vpop.permute.xlu0 %3366
    %3368 = vrot.lane.b32.xlu0 %v3351, 64
    %v3369 = vpop.permute.xlu0 %3368
    %3370 = vrot.lane.b32.xlu0 %v3352, 64
    %v3371 = vpop.permute.xlu0 %3370
    %3372 = vrot.lane.b32.xlu0 %v3353, 64
    %v3373 = vpop.permute.xlu0 %3372
    %3374 = vrot.lane.b32.xlu0 %v3354, 64
    %v3375 = vpop.permute.xlu0 %3374
    %3376 = vrot.lane.b32.xlu0 %v3355, 64
    %v3377 = vpop.permute.xlu0 %3376
    %3378 = vrot.lane.b32.xlu0 %v3356, 64
    %v3379 = vpop.permute.xlu0 %3378
    %3380 = vrot.lane.b32.xlu0 %v3357, 64
    %v3381 = vpop.permute.xlu0 %3380
    %v3390 = vmul.f32 %v3239, %v3367
    %v3391 = vmul.f32 %v3241, %v3369
    %v3392 = vmul.f32 %v3243, %v3371
    %v3393 = vmul.f32 %v3245, %v3373
    %v3394 = vmul.f32 %v3247, %v3375
    %v3395 = vmul.f32 %v3249, %v3377
    %v3396 = vmul.f32 %v3251, %v3379
    %v3397 = vmul.f32 %v3253, %v3381
    %v3406 = vrot.slane %v3391, 7
    %v3407 = vsel %vm682, %v3406, %v3390
    %v3408 = vrot.slane %v3392, 6
    %v3409 = vsel %vm685, %v3408, %v3407
    %v3410 = vrot.slane %v3393, 5
    %v3411 = vsel %vm688, %v3410, %v3409
    %v3412 = vrot.slane %v3394, 4
    %v3413 = vsel %vm691, %v3412, %v3411
    %v3414 = vrot.slane %v3395, 3
    %v3415 = vsel %vm694, %v3414, %v3413
    %v3416 = vrot.slane %v3396, 2
    %v3417 = vsel %vm697, %v3416, %v3415
    %v3418 = vrot.slane %v3397, 1
    %v3419 = vsel %vm700, %v3418, %v3417
    %3420 = vrot.lane.b32.xlu0 %v3419, 32
    %v3421 = vpop.permute.xlu0 %3420
    %v3422 = vsel %vm102, %v3421, 0
    %3424 = vmatprep.subr.mxu0 0.0
    %3425 = vmatpush1.msra.mxu0 0.0
    %3426 = vmatprep.subr.mxu0 0.0
    %3427 = vmatpush1.msra.mxu0 0.0
    %3428 = vmatprep.subr.mxu0 0.0
    %3429 = vmatpush1.msra.mxu0 0.0
    %3430 = vmatprep.subr.mxu0 0.0
    %3431 = vmatpush1.msra.mxu0 0.0
    %3432 = vmatprep.subr.mxu0 0.0
    %3433 = vmatpush1.msra.mxu0 0.0
    %3434 = vmatprep.subr.mxu0 0.0
    %3435 = vmatpush1.msra.mxu0 0.0
    %3436 = vmatprep.subr.mxu0 0.0
    %3437 = vmatpush1.msra.mxu0 0.0
    %3438 = vmatprep.subr.mxu0 0.0
    %3439 = vmatpush1.msra.mxu0 0.0
    %3440 = vmatprep.subr.mxu0 0.0
    %3441 = vmatpush1.msra.mxu0 0.0
    %3442 = vmatprep.subr.mxu0 0.0
    %3443 = vmatpush1.msra.mxu0 0.0
    %3444 = vmatprep.subr.mxu0 0.0
    %3445 = vmatpush1.msra.mxu0 0.0
    %3446 = vmatprep.subr.mxu0 0.0
    %3447 = vmatpush1.msra.mxu0 0.0
    %3448 = vmatprep.subr.mxu0 0.0
    %3449 = vmatpush1.msra.mxu0 %v88
    %3450 = vmatprep.subr.mxu0 0.0
    %3451 = vmatpush1.msra.mxu0 %v87
    %3452 = vmatprep.subr.mxu0 0.0
    %3453 = vmatpush1.msra.mxu0 %v86
    %3454 = vmatprep.subr.mxu0 0.0
    %3455 = vmatpush1.msra.mxu0 %v85
    %3456 = vmatprep.subr.mxu0 0.0
    %3457 = vmatpush2.msra.mxu0 0.0
    %3458 = vmatprep.subr.mxu0 0.0
    %3459 = vmatpush2.msra.mxu0 0.0
    %3460 = vmatprep.subr.mxu0 0.0
    %3461 = vmatpush2.msra.mxu0 0.0
    %3462 = vmatprep.subr.mxu0 0.0
    %3463 = vmatpush2.msra.mxu0 0.0
    %3464 = vmatprep.subr.mxu0 0.0
    %3465 = vmatpush2.msra.mxu0 0.0
    %3466 = vmatprep.subr.mxu0 0.0
    %3467 = vmatpush2.msra.mxu0 0.0
    %3468 = vmatprep.subr.mxu0 0.0
    %3469 = vmatpush2.msra.mxu0 0.0
    %3470 = vmatprep.subr.mxu0 0.0
    %3471 = vmatpush2.msra.mxu0 0.0
    %3472 = vmatprep.subr.mxu0 0.0
    %3473 = vmatpush2.msra.mxu0 0.0
    %3474 = vmatprep.subr.mxu0 0.0
    %3475 = vmatpush2.msra.mxu0 0.0
    %3476 = vmatprep.subr.mxu0 0.0
    %3477 = vmatpush2.msra.mxu0 0.0
    %3478 = vmatprep.subr.mxu0 0.0
    %3479 = vmatpush2.msra.mxu0 0.0
    %3480 = vmatprep.subr.mxu0 0.0
    %3481 = vmatpush2.msra.mxu0 0.0
    %3482 = vmatprep.subr.mxu0 0.0
    %3483 = vmatpush2.msra.mxu0 0.0
    %3484 = vmatprep.subr.mxu0 0.0
    %3485 = vmatpush2.msra.mxu0 0.0
    %3486 = vmatprep.subr.mxu0 0.0
    %3487 = vmatpush2.msra.mxu0 0.0
    %3488 = vmatprep.mubr.f32.mxu0 0.0
    %3489 = vmatmul.mubr.f32.gmra.mxu0 %v3422
    %v3490 = vpop.f32.mrf.mxu0
    %v3491 = vadd.f32 %v671, %v3490
    %v3492 = vpop.f32.mrf.mxu0
    %3493 = vdwg.mxu0
    %s3494 = scalar_lea.vmem %s12, 32
    %3495 = vst [vmem:[%s3494] sm:$0xff] %v3491
    // Predicated region
    $region54: #{seq2seq_forward.3} parent=1 // pred_check
      _
    $region55: #{seq2seq_forward.3} parent=1 // pred_check_branch
      %3497 = sbr.rel (0) target = $region57
    $region56: #{seq2seq_forward.3} parent=1 // pred_region
      _
    $region57: #{seq2seq_forward.3} parent=1 // pred_fallthru
      _
    // Predicated region
    $region58: #{seq2seq_forward.3} parent=1 // pred_check
      _
    $region59: #{seq2seq_forward.3} parent=1 // pred_check_branch
      %3499 = sbr.rel (0) target = $region61
    $region60: #{seq2seq_forward.3} parent=1 // pred_region
      _
    $region61: #{seq2seq_forward.3} parent=1 // pred_fallthru
      _
    %3500 = vsyncpa [#allocation3], 1

</llo_original>
